<compile_context>
chip_gen: v5e
topology: v5e:2x2
jax: 0.10.0
libtpu: 0.0.40
codegen_flags: <defaults>
</compile_context>

<pallas_src>
import jax
import jax.numpy as jnp
from jax import lax
from jax.experimental import pallas as pl
from jax.experimental.pallas import tpu as pltpu

IN_SIZE = 7
CIN = IN_SIZE * IN_SIZE        # 49
KSZ = 3
OUT_HW = IN_SIZE - KSZ + 1     # 5
P = OUT_HW * OUT_HW            # 25 output spatial positions
ROWS_W = IN_SIZE * OUT_HW      # 35 = (h, ow) rows of the kw-expanded input
KWC = CIN * KSZ                # 147 = (c, kw) contraction length per kh group
C1 = 128
C2 = 64
LIN = P * C2                   # 1600
NOUT = 9                       # target == 'ess'
EPS = 1e-5
MAX_TB = 256                   # batch-tile cap (multiple of 16)


def _vmem_limit_bytes():
    """Scoped-VMEM limit adapted to the chip (v7x: 64 MiB/TC, v5e/v6e: 128 MiB)."""
    try:
        cap = int(pltpu.get_tpu_info().vmem_capacity_bytes)
    except Exception:
        cap = 64 << 20                       # conservative fallback (v7x physical)
    return max(32 << 20, min(int(0.75 * cap), 96 << 20))


def _fused_kernel(pw_ref, w1_ref, t1_ref, w2_ref, t2_ref, wf_ref, b_ref, out_ref):
    """One grid step = TB whole batch elements.

    pw_ref : (ROWS_W, TB, KWC) bf16  kw-expanded input; row = (h, ow), K = (c, kw)
    w1_ref : (KSZ, KWC, C1)    bf16  conv1 weight grouped by kh (BN1 scale folded)
    t1_ref : (1, C1)           f32   fused BN1 shift (conv1 bias folded in)
    w2_ref : (C1, C2)          bf16  conv2 1x1 weight (BN2 scale folded)
    t2_ref : (1, C2)           f32   fused BN2 shift
    wf_ref : (P, C2, NOUT)     bf16  fc weight, reordered from PyTorch NCHW flatten
    b_ref  : (1, NOUT)         f32   fc bias
    out_ref: (TB, NOUT)        f32
    """
    tb = pw_ref.shape[1]

    # conv1 (3x3) as 3 kh-grouped matmuls over K = CIN*KW = 147.  For tap row kh
    # the needed rows are (h, ow) with h in [kh, kh+5): a contiguous leading-dim
    # slice whose reshape only merges leading dims (tb % 16 == 0 keeps it
    # sublane aligned), giving rows ordered (p, b).
    def conv1_tap(kh):
        xk = pw_ref[kh * OUT_HW:kh * OUT_HW + P]          # (P, TB, KWC)
        xk = xk.reshape(P * tb, KWC)
        return jnp.dot(xk, w1_ref[kh], preferred_element_type=jnp.float32)

    h1 = conv1_tap(0) + conv1_tap(1) + conv1_tap(2)       # (P*TB, C1)
    h1 = jnp.maximum(h1 + t1_ref[...], 0.0)               # BN1 + ReLU

    # conv2 (1x1) + BN2 + ReLU.
    h2 = jnp.dot(h1.astype(jnp.bfloat16), w2_ref[...],
                 preferred_element_type=jnp.float32)
    h2 = jnp.maximum(h2 + t2_ref[...], 0.0)               # (P*TB, C2)

    # Fused fc: one batched bf16 matmul over p (no serial accumulator chain),
    # then a cheap VPU sum over p.
    h2b = h2.reshape(P, tb, C2).astype(jnp.bfloat16)
    y = jnp.einsum('pbc,pcn->pbn', h2b, wf_ref[...],
                   preferred_element_type=jnp.float32)    # (P, TB, NOUT)
    out_ref[...] = y.sum(axis=0) + b_ref[...]


def _kw_expand(x):
    """(B, CIN, 7, 7) f32 -> (ROWS_W, B, KWC) bf16 with
    pw[h*5 + ow, b, c*3 + kw] = x[b, c, h, ow + kw]."""
    xb = x.astype(jnp.bfloat16)
    taps = [xb[:, :, :, kw:kw + OUT_HW] for kw in range(KSZ)]   # (B,CIN,7,5) each
    stk = jnp.stack(taps, axis=-1)                              # (B,CIN,7,5,KSZ)
    return stk.transpose(2, 3, 0, 1, 4).reshape(ROWS_W, x.shape[0], KWC)


def _choose_tb(B):
    """Batch tile: multiple of 16, <= MAX_TB, adaptive to B, >=2 grid steps when
    possible so v7x megacore can shard the 'parallel' axis."""
    b16 = -(-B // 16) * 16
    n_steps = -(-b16 // MAX_TB)
    if b16 >= 32:
        n_steps = max(n_steps, 2)
    per = -(-b16 // n_steps)
    return -(-per // 16) * 16


def matching_feat_regression(x, params, *, tb=None):
    """x: (B, 49, 7, 7) float32 NCHW. Returns (B, 9) like target='ess'."""
    B = x.shape[0]
    if tb is None:
        tb = _choose_tb(B)
    b_pad = -(-B // tb) * tb

    pw = _kw_expand(x)                                     # (35, B, 147) bf16
    if b_pad != B:
        pw = jnp.pad(pw, ((0, 0), (0, b_pad - B), (0, 0)))
    # TODO(synk): the remaining ~2x kw-expansion could also be folded into the
    # kernel (9 K=49 matmuls on a raw (7,7,B,49) layout) at the cost of lower
    # MXU K-utilization; kw-only expansion is the traffic/MXU sweet spot here.

    out = pl.pallas_call(
        _fused_kernel,
        out_shape=jax.ShapeDtypeStruct((b_pad, NOUT), jnp.float32),
        grid_spec=pltpu.PrefetchScalarGridSpec(
            num_scalar_prefetch=0,
            grid=(b_pad // tb,),
            in_specs=[
                pl.BlockSpec((ROWS_W, tb, KWC), lambda j: (0, j, 0)),
                pl.BlockSpec((KSZ, KWC, C1), lambda j: (0, 0, 0)),
                pl.BlockSpec((1, C1), lambda j: (0, 0)),
                pl.BlockSpec((C1, C2), lambda j: (0, 0)),
                pl.BlockSpec((1, C2), lambda j: (0, 0)),
                pl.BlockSpec((P, C2, NOUT), lambda j: (0, 0, 0)),
                pl.BlockSpec((1, NOUT), lambda j: (0, 0)),
            ],
            out_specs=pl.BlockSpec((tb, NOUT), lambda j: (j, 0)),
        ),
        compiler_params=pltpu.CompilerParams(
            dimension_semantics=("parallel",),
            vmem_limit_bytes=_vmem_limit_bytes()),
    )(pw, params["w1k"], params["t1"], params["w2s"], params["t2"],
      params["wf3"], params["bf"])
    return out[:B]


def init_raw_params(key):
    """Deterministic synthetic parameters in PyTorch layouts."""
    ks = jax.random.split(key, 14)
    return dict(
        w1=0.05 * jax.random.normal(ks[0], (C1, CIN, KSZ, KSZ), jnp.float32),
        b1=0.05 * jax.random.normal(ks[1], (C1,), jnp.float32),
        g1=1.0 + 0.1 * jax.random.normal(ks[2], (C1,), jnp.float32),
        be1=0.1 * jax.random.normal(ks[3], (C1,), jnp.float32),
        m1=0.1 * jax.random.normal(ks[4], (C1,), jnp.float32),
        v1=0.5 + jnp.abs(jax.random.normal(ks[5], (C1,), jnp.float32)),
        w2=0.05 * jax.random.normal(ks[6], (C2, C1, 1, 1), jnp.float32),
        b2=0.05 * jax.random.normal(ks[7], (C2,), jnp.float32),
        g2=1.0 + 0.1 * jax.random.normal(ks[8], (C2,), jnp.float32),
        be2=0.1 * jax.random.normal(ks[9], (C2,), jnp.float32),
        m2=0.1 * jax.random.normal(ks[10], (C2,), jnp.float32),
        v2=0.5 + jnp.abs(jax.random.normal(ks[11], (C2,), jnp.float32)),
        wf=0.05 * jax.random.normal(ks[12], (NOUT, LIN), jnp.float32),
        bf=0.05 * jax.random.normal(ks[13], (NOUT,), jnp.float32),
    )


def fold_params(raw):
    """Fold conv bias + BatchNorm (eval mode) into weights/shifts and reorder
    into the kernel's matmul layouts."""
    s1 = raw["g1"] / jnp.sqrt(raw["v1"] + EPS)
    t1 = s1 * (raw["b1"] - raw["m1"]) + raw["be1"]
    s2 = raw["g2"] / jnp.sqrt(raw["v2"] + EPS)
    t2 = s2 * (raw["b2"] - raw["m2"]) + raw["be2"]
    # conv1 weight grouped by kh with K order (c, kw); BN1 scale folded per column.
    w1k = (raw["w1"].transpose(2, 1, 3, 0).reshape(KSZ, KWC, C1)
           * s1[None, None, :]).astype(jnp.bfloat16)                    # (3,147,128)
    w2s = (raw["w2"].reshape(C2, C1).T * s2[None, :]).astype(jnp.bfloat16)  # (128,64)
    # fc weight: PyTorch NCHW flat index is c*P + p ; kernel wants wf3[p, c, n].
    wf3 = raw["wf"].reshape(NOUT, C2, P).transpose(2, 1, 0).astype(jnp.bfloat16)
    return dict(
        w1k=w1k, t1=t1.reshape(1, C1).astype(jnp.float32),
        w2s=w2s, t2=t2.reshape(1, C2).astype(jnp.float32),
        wf3=wf3, bf=raw["bf"].reshape(1, NOUT).astype(jnp.float32),
    )


def reference(x, raw):
    """Pure-JAX f32 reference mirroring the PyTorch forward (BN in eval mode)."""
    def bn(z, g, b, m, v):
        return (g[None, :, None, None] * (z - m[None, :, None, None])
                / jnp.sqrt(v[None, :, None, None] + EPS)
                + b[None, :, None, None])

    z = lax.conv_general_dilated(
        x, raw["w1"], (1, 1), "VALID",
        dimension_numbers=("NCHW", "OIHW", "NCHW")) + raw["b1"][None, :, None, None]
    z = jnp.maximum(bn(z, raw["g1"], raw["be1"], raw["m1"], raw["v1"]), 0.0)
    z = lax.conv_general_dilated(
        z, raw["w2"], (1, 1), "VALID",
        dimension_numbers=("NCHW", "OIHW", "NCHW")) + raw["b2"][None, :, None, None]
    z = jnp.maximum(bn(z, raw["g2"], raw["be2"], raw["m2"], raw["v2"]), 0.0)
    flat = z.reshape(x.shape[0], -1)               # NCHW flatten: c*P + p
    return flat @ raw["wf"].T + raw["bf"][None, :]


if __name__ == "__main__":
    key = jax.random.PRNGKey(0)
    k_x, k_x2, k_p = jax.random.split(key, 3)

    raw = init_raw_params(k_p)
    params = fold_params(raw)
    fwd = jax.jit(matching_feat_regression)

    # Canonical small shape: batch=2, 49 channels, 7x7.
    B = 2
    x = jax.random.normal(k_x, (B, CIN, IN_SIZE, IN_SIZE), jnp.float32)
    out = jax.block_until_ready(fwd(x, params))
    ref = reference(x, raw)
    assert out.shape == (B, NOUT)
    assert jnp.allclose(out, ref, rtol=2e-2, atol=2e-2), (
        f"max abs err {jnp.max(jnp.abs(out - ref))}")

    # A second, odd batch to exercise the multi-step grid + padding path.
    B2 = 50
    x2 = jax.random.normal(k_x2, (B2, CIN, IN_SIZE, IN_SIZE), jnp.float32)
    out2 = jax.block_until_ready(fwd(x2, params))
    ref2 = reference(x2, raw)
    assert out2.shape == (B2, NOUT)
    assert jnp.allclose(out2, ref2, rtol=2e-2, atol=2e-2), (
        f"max abs err {jnp.max(jnp.abs(out2 - ref2))}")

    print("KERNEL_OK")
</pallas_src>

<mosaic_0001>
module attributes {stable_mosaic.version = 11 : i64} {
  func.func @_fused_kernel(%arg0: i32, %arg1: memref<35x16x147xbf16, #tpu.memory_space<vmem>>, %arg2: memref<3x147x128xbf16, #tpu.memory_space<vmem>>, %arg3: memref<1x128xf32, #tpu.memory_space<vmem>>, %arg4: memref<128x64xbf16, #tpu.memory_space<vmem>>, %arg5: memref<1x64xf32, #tpu.memory_space<vmem>>, %arg6: memref<25x64x9xbf16, #tpu.memory_space<vmem>>, %arg7: memref<1x9xf32, #tpu.memory_space<vmem>>, %arg8: memref<16x9xf32, #tpu.memory_space<vmem>>) attributes {dimension_semantics = [#tpu.dimension_semantics<parallel>], iteration_bounds = array<i64: 1>, scalar_prefetch = 0 : i64, scratch_operands = 0 : i64, tpu.core_type = #tpu.core_type<tc>, window_params = [{transform_indices = @transform_0, window_bounds = array<i64: 35, 16, 147>}, {pipeline_mode = #tpu.pipeline_mode<synchronous>, transform_indices = @transform_1, window_bounds = array<i64: 3, 147, 128>}, {pipeline_mode = #tpu.pipeline_mode<synchronous>, transform_indices = @transform_2, window_bounds = array<i64: 1, 128>}, {pipeline_mode = #tpu.pipeline_mode<synchronous>, transform_indices = @transform_3, window_bounds = array<i64: 128, 64>}, {pipeline_mode = #tpu.pipeline_mode<synchronous>, transform_indices = @transform_4, window_bounds = array<i64: 1, 64>}, {pipeline_mode = #tpu.pipeline_mode<synchronous>, transform_indices = @transform_5, window_bounds = array<i64: 25, 64, 9>}, {pipeline_mode = #tpu.pipeline_mode<synchronous>, transform_indices = @transform_6, window_bounds = array<i64: 1, 9>}, {transform_indices = @transform_7, window_bounds = array<i64: 16, 9>}]} {
    %c0 = arith.constant 0 : index
    %c0_0 = arith.constant 0 : index
    %c0_1 = arith.constant 0 : index
    %0 = vector.load %arg1[%c0, %c0_0, %c0_1] : memref<35x16x147xbf16, #tpu.memory_space<vmem>>, vector<25x16x147xbf16>
    %1 = vector.shape_cast %0 : vector<25x16x147xbf16> to vector<400x147xbf16>
    %c0_2 = arith.constant 0 : index
    %c0_3 = arith.constant 0 : index
    %c0_4 = arith.constant 0 : index
    %2 = vector.load %arg2[%c0_2, %c0_3, %c0_4] : memref<3x147x128xbf16, #tpu.memory_space<vmem>>, vector<1x147x128xbf16>
    %3 = vector.shape_cast %2 : vector<1x147x128xbf16> to vector<147x128xbf16>
    %cst = arith.constant dense<0.000000e+00> : vector<400x128xf32>
    %4 = tpu.matmul %1, %3, %cst {dimension_numbers = #tpu.dot_dimension_numbers<[1], [0], [0], [1], [0, 0, 1, 1], [], []>} : vector<400x147xbf16>, vector<147x128xbf16>, vector<400x128xf32> -> vector<400x128xf32>
    %c5 = arith.constant 5 : index
    %c0_5 = arith.constant 0 : index
    %c0_6 = arith.constant 0 : index
    %5 = vector.load %arg1[%c5, %c0_5, %c0_6] : memref<35x16x147xbf16, #tpu.memory_space<vmem>>, vector<25x16x147xbf16>
    %6 = vector.shape_cast %5 : vector<25x16x147xbf16> to vector<400x147xbf16>
    %c1 = arith.constant 1 : index
    %c0_7 = arith.constant 0 : index
    %c0_8 = arith.constant 0 : index
    %7 = vector.load %arg2[%c1, %c0_7, %c0_8] : memref<3x147x128xbf16, #tpu.memory_space<vmem>>, vector<1x147x128xbf16>
    %8 = vector.shape_cast %7 : vector<1x147x128xbf16> to vector<147x128xbf16>
    %cst_9 = arith.constant dense<0.000000e+00> : vector<400x128xf32>
    %9 = tpu.matmul %6, %8, %cst_9 {dimension_numbers = #tpu.dot_dimension_numbers<[1], [0], [0], [1], [0, 0, 1, 1], [], []>} : vector<400x147xbf16>, vector<147x128xbf16>, vector<400x128xf32> -> vector<400x128xf32>
    %10 = arith.addf %4, %9 : vector<400x128xf32>
    %c10 = arith.constant 10 : index
    %c0_10 = arith.constant 0 : index
    %c0_11 = arith.constant 0 : index
    %11 = vector.load %arg1[%c10, %c0_10, %c0_11] : memref<35x16x147xbf16, #tpu.memory_space<vmem>>, vector<25x16x147xbf16>
    %12 = vector.shape_cast %11 : vector<25x16x147xbf16> to vector<400x147xbf16>
    %c2 = arith.constant 2 : index
    %c0_12 = arith.constant 0 : index
    %c0_13 = arith.constant 0 : index
    %13 = vector.load %arg2[%c2, %c0_12, %c0_13] : memref<3x147x128xbf16, #tpu.memory_space<vmem>>, vector<1x147x128xbf16>
    %14 = vector.shape_cast %13 : vector<1x147x128xbf16> to vector<147x128xbf16>
    %cst_14 = arith.constant dense<0.000000e+00> : vector<400x128xf32>
    %15 = tpu.matmul %12, %14, %cst_14 {dimension_numbers = #tpu.dot_dimension_numbers<[1], [0], [0], [1], [0, 0, 1, 1], [], []>} : vector<400x147xbf16>, vector<147x128xbf16>, vector<400x128xf32> -> vector<400x128xf32>
    %16 = arith.addf %10, %15 : vector<400x128xf32>
    %c0_15 = arith.constant 0 : index
    %c0_16 = arith.constant 0 : index
    %17 = vector.load %arg3[%c0_15, %c0_16] : memref<1x128xf32, #tpu.memory_space<vmem>>, vector<1x128xf32>
    %18 = vector.broadcast %17 : vector<1x128xf32> to vector<400x128xf32>
    %19 = arith.addf %16, %18 : vector<400x128xf32>
    %cst_17 = arith.constant 0.000000e+00 : f32
    %20 = vector.broadcast %cst_17 : f32 to vector<400x128xf32>
    %21 = arith.maximumf %19, %20 : vector<400x128xf32>
    %22 = arith.truncf %21 : vector<400x128xf32> to vector<400x128xbf16>
    %c0_18 = arith.constant 0 : index
    %c0_19 = arith.constant 0 : index
    %23 = vector.load %arg4[%c0_18, %c0_19] : memref<128x64xbf16, #tpu.memory_space<vmem>>, vector<128x64xbf16>
    %cst_20 = arith.constant dense<0.000000e+00> : vector<400x64xf32>
    %24 = tpu.matmul %22, %23, %cst_20 {dimension_numbers = #tpu.dot_dimension_numbers<[1], [0], [0], [1], [0, 0, 1, 1], [], []>} : vector<400x128xbf16>, vector<128x64xbf16>, vector<400x64xf32> -> vector<400x64xf32>
    %c0_21 = arith.constant 0 : index
    %c0_22 = arith.constant 0 : index
    %25 = vector.load %arg5[%c0_21, %c0_22] : memref<1x64xf32, #tpu.memory_space<vmem>>, vector<1x64xf32>
    %26 = vector.broadcast %25 : vector<1x64xf32> to vector<400x64xf32>
    %27 = arith.addf %24, %26 : vector<400x64xf32>
    %cst_23 = arith.constant 0.000000e+00 : f32
    %28 = vector.broadcast %cst_23 : f32 to vector<400x64xf32>
    %29 = arith.maximumf %27, %28 : vector<400x64xf32>
    %30 = vector.shape_cast %29 : vector<400x64xf32> to vector<25x16x64xf32>
    %31 = arith.truncf %30 : vector<25x16x64xf32> to vector<25x16x64xbf16>
    %c0_24 = arith.constant 0 : index
    %c0_25 = arith.constant 0 : index
    %c0_26 = arith.constant 0 : index
    %32 = vector.load %arg6[%c0_24, %c0_25, %c0_26] : memref<25x64x9xbf16, #tpu.memory_space<vmem>>, vector<25x64x9xbf16>
    "tpu.trace_start"() <{level = 10 : i32, message = "pbc,pcn->pbn"}> : () -> ()
    %cst_27 = arith.constant dense<0.000000e+00> : vector<25x16x9xf32>
    %33 = tpu.matmul %31, %32, %cst_27 {dimension_numbers = #tpu.dot_dimension_numbers<[2], [1], [1], [2], [0, 0, 0, 1, 1, 2], [0], [0]>} : vector<25x16x64xbf16>, vector<25x64x9xbf16>, vector<25x16x9xf32> -> vector<25x16x9xf32>
    "tpu.trace_stop"() : () -> ()
    %cst_28 = arith.constant dense<0.000000e+00> : vector<16x9xf32>
    %34 = vector.multi_reduction <add>, %33, %cst_28 [0] : vector<25x16x9xf32> to vector<16x9xf32>
    %c0_29 = arith.constant 0 : index
    %c0_30 = arith.constant 0 : index
    %35 = vector.load %arg7[%c0_29, %c0_30] : memref<1x9xf32, #tpu.memory_space<vmem>>, vector<1x9xf32>
    %36 = vector.broadcast %35 : vector<1x9xf32> to vector<16x9xf32>
    %37 = arith.addf %34, %36 : vector<16x9xf32>
    %c0_31 = arith.constant 0 : index
    %c0_32 = arith.constant 0 : index
    %38 = vector.load %arg8[%c0_31, %c0_32] : memref<16x9xf32, #tpu.memory_space<vmem>>, vector<16x9xf32>
    tpu.vector_store %arg8[%c0_31, %c0_32], %37 {strides = array<i32>} : memref<16x9xf32, #tpu.memory_space<vmem>>, vector<16x9xf32>,
    return
  }
  func.func @transform_0(%arg0: i32) -> (i32, i32, i32) {
    %c0_i32 = arith.constant 0 : i32
    %c0_i32_0 = arith.constant 0 : i32
    %c0_i32_1 = arith.constant 0 : i32
    return %c0_i32, %arg0, %c0_i32_0 : i32, i32, i32
  }
  func.func @transform_1(%arg0: i32) -> (i32, i32, i32) {
    %c0_i32 = arith.constant 0 : i32
    %c0_i32_0 = arith.constant 0 : i32
    %c0_i32_1 = arith.constant 0 : i32
    %c0_i32_2 = arith.constant 0 : i32
    return %c0_i32, %c0_i32_0, %c0_i32_1 : i32, i32, i32
  }
  func.func @transform_2(%arg0: i32) -> (i32, i32) {
    %c0_i32 = arith.constant 0 : i32
    %c0_i32_0 = arith.constant 0 : i32
    %c0_i32_1 = arith.constant 0 : i32
    return %c0_i32, %c0_i32_0 : i32, i32
  }
  func.func @transform_3(%arg0: i32) -> (i32, i32) {
    %c0_i32 = arith.constant 0 : i32
    %c0_i32_0 = arith.constant 0 : i32
    %c0_i32_1 = arith.constant 0 : i32
    return %c0_i32, %c0_i32_0 : i32, i32
  }
  func.func @transform_4(%arg0: i32) -> (i32, i32) {
    %c0_i32 = arith.constant 0 : i32
    %c0_i32_0 = arith.constant 0 : i32
    %c0_i32_1 = arith.constant 0 : i32
    return %c0_i32, %c0_i32_0 : i32, i32
  }
  func.func @transform_5(%arg0: i32) -> (i32, i32, i32) {
    %c0_i32 = arith.constant 0 : i32
    %c0_i32_0 = arith.constant 0 : i32
    %c0_i32_1 = arith.constant 0 : i32
    %c0_i32_2 = arith.constant 0 : i32
    return %c0_i32, %c0_i32_0, %c0_i32_1 : i32, i32, i32
  }
  func.func @transform_6(%arg0: i32) -> (i32, i32) {
    %c0_i32 = arith.constant 0 : i32
    %c0_i32_0 = arith.constant 0 : i32
    %c0_i32_1 = arith.constant 0 : i32
    return %c0_i32, %c0_i32_0 : i32, i32
  }
  func.func @transform_7(%arg0: i32) -> (i32, i32) {
    %c0_i32 = arith.constant 0 : i32
    %c0_i32_0 = arith.constant 0 : i32
    return %arg0, %c0_i32 : i32, i32
  }
}

</mosaic_0001>

<llo_original>
// kernel: matching_feat_regression.1
$region0: #{matching_feat_regression.1}
  #allocation0 [shape = 'u32[]', space=smem, size = 0x4, offset = 0x4, fixed_abs, tag = 'smem constant byte address 0x4 - core index']
  #allocation1 [shape = 'u32[72,128]{1,0:T(1,128)}', space=vmem, size = 0x9000, scoped, tag = 'internal scratch']
  %s0 = inlined_call_operand.vmem [shape: bf16[35,16,147], index: 0, kind: input, shape index: {}]
  %s1 = inlined_call_operand.vmem [shape: bf16[3,147,128], index: 1, kind: input, shape index: {}]
  %s2 = inlined_call_operand.vmem [shape: f32[1,128], index: 2, kind: input, shape index: {}]
  %s3 = inlined_call_operand.vmem [shape: bf16[128,64], index: 3, kind: input, shape index: {}]
  %s4 = inlined_call_operand.vmem [shape: f32[1,64], index: 4, kind: input, shape index: {}]
  %s5 = inlined_call_operand.vmem [shape: bf16[25,64,9], index: 5, kind: input, shape index: {}]
  %s6 = inlined_call_operand.vmem [shape: f32[1,9], index: 6, kind: input, shape index: {}]
  %s7 = inlined_call_operand.vmem [shape: f32[16,9], index: 7, kind: output, shape index: {}]
  %s8 = sld [smem:[#allocation0]]
  $region38: #{matching_feat_regression.1} parent=0
    _
  %s10 = ssub.s32 1, %s8
  %s11 = scalar_select 0, %s10, %s8
  // Predicated region
  $region2: #{matching_feat_regression.1} parent=0 // pred_check
    _
  $region3: #{matching_feat_regression.1} parent=0 // pred_check_branch
    %13 = sbr.rel (0) target = $region5
  $region4: #{matching_feat_regression.1} parent=0 // pred_region
    _
  $region5: #{matching_feat_regression.1} parent=0 // pred_fallthru
    _
  // Predicated region
  $region6: #{matching_feat_regression.1} parent=0 // pred_check
    _
  $region7: #{matching_feat_regression.1} parent=0 // pred_check_branch
    %15 = sbr.rel (0) target = $region9
  $region8: #{matching_feat_regression.1} parent=0 // pred_region
    _
  $region9: #{matching_feat_regression.1} parent=0 // pred_fallthru
    _
  // Predicated region
  $region10: #{matching_feat_regression.1} parent=0 // pred_check
    _
  $region11: #{matching_feat_regression.1} parent=0 // pred_check_branch
    %17 = sbr.rel (0) target = $region13
  $region12: #{matching_feat_regression.1} parent=0 // pred_region
    _
  $region13: #{matching_feat_regression.1} parent=0 // pred_fallthru
    _
  // Predicated region
  $region14: #{matching_feat_regression.1} parent=0 // pred_check
    _
  $region15: #{matching_feat_regression.1} parent=0 // pred_check_branch
    %19 = sbr.rel (0) target = $region17
  $region16: #{matching_feat_regression.1} parent=0 // pred_region
    _
  $region17: #{matching_feat_regression.1} parent=0 // pred_fallthru
    _
  // Predicated region
  $region18: #{matching_feat_regression.1} parent=0 // pred_check
    _
  $region19: #{matching_feat_regression.1} parent=0 // pred_check_branch
    %21 = sbr.rel (0) target = $region21
  $region20: #{matching_feat_regression.1} parent=0 // pred_region
    _
  $region21: #{matching_feat_regression.1} parent=0 // pred_fallthru
    _
  // Predicated region
  $region22: #{matching_feat_regression.1} parent=0 // pred_check
    _
  $region23: #{matching_feat_regression.1} parent=0 // pred_check_branch
    %23 = sbr.rel (0) target = $region25
  $region24: #{matching_feat_regression.1} parent=0 // pred_region
    _
  $region25: #{matching_feat_regression.1} parent=0 // pred_fallthru
    _
  // Predicated region
  $region26: #{matching_feat_regression.1} parent=0 // pred_check
    _
  $region27: #{matching_feat_regression.1} parent=0 // pred_check_branch
    %25 = sbr.rel (0) target = $region29
  $region28: #{matching_feat_regression.1} parent=0 // pred_region
    _
  $region29: #{matching_feat_regression.1} parent=0 // pred_fallthru
    _
  %v27 = vld [vmem:[%s0] sm:$0xff]
  %v28 = vld [vmem:[%s0 + $0x8] sm:$0xff]
  %v29 = vld [vmem:[%s0 + $0x10] sm:$0xff]
  %v30 = vld [vmem:[%s0 + $0x18] sm:$0xff]
  %v31 = vld [vmem:[%s0 + $0x20] sm:$0xff]
  %v32 = vld [vmem:[%s0 + $0x28] sm:$0xff]
  %v33 = vld [vmem:[%s0 + $0x30] sm:$0xff]
  %v34 = vld [vmem:[%s0 + $0x38] sm:$0xff]
  %v35 = vld [vmem:[%s0 + $0x40] sm:$0xff]
  %v36 = vld [vmem:[%s0 + $0x48] sm:$0xff]
  %v37 = vld [vmem:[%s0 + $0x50] sm:$0xff]
  %v38 = vld [vmem:[%s0 + $0x58] sm:$0xff]
  %v39 = vld [vmem:[%s0 + $0x60] sm:$0xff]
  %v40 = vld [vmem:[%s0 + $0x68] sm:$0xff]
  %v41 = vld [vmem:[%s0 + $0x70] sm:$0xff]
  %v42 = vld [vmem:[%s0 + $0x78] sm:$0xff]
  %v43 = vld [vmem:[%s0 + $0x80] sm:$0xff]
  %v44 = vld [vmem:[%s0 + $0x88] sm:$0xff]
  %v45 = vld [vmem:[%s0 + $0x90] sm:$0xff]
  %v46 = vld [vmem:[%s0 + $0x98] sm:$0xff]
  %v47 = vld [vmem:[%s0 + $0xa0] sm:$0xff]
  %v48 = vld [vmem:[%s0 + $0xa8] sm:$0xff]
  %v49 = vld [vmem:[%s0 + $0xb0] sm:$0xff]
  %v50 = vld [vmem:[%s0 + $0xb8] sm:$0xff]
  %v51 = vld [vmem:[%s0 + $0xc0] sm:$0xff]
  %v52 = vld [vmem:[%s0 + $0xc8] sm:$0xff]
  %v53 = vld [vmem:[%s0 + $0xd0] sm:$0xff]
  %v54 = vld [vmem:[%s0 + $0xd8] sm:$0xff]
  %v55 = vld [vmem:[%s0 + $0xe0] sm:$0xff]
  %v56 = vld [vmem:[%s0 + $0xe8] sm:$0xff]
  %v57 = vld [vmem:[%s0 + $0xf0] sm:$0xff]
  %v58 = vld [vmem:[%s0 + $0xf8] sm:$0xff]
  %v59 = vld [vmem:[%s0 + $0x100] sm:$0xff]
  %v60 = vld [vmem:[%s0 + $0x108] sm:$0xff]
  %v61 = vld [vmem:[%s0 + $0x110] sm:$0xff]
  %v62 = vld [vmem:[%s0 + $0x118] sm:$0xff]
  %v63 = vld [vmem:[%s0 + $0x120] sm:$0xff]
  %v64 = vld [vmem:[%s0 + $0x128] sm:$0xff]
  %v65 = vld [vmem:[%s0 + $0x130] sm:$0xff]
  %v66 = vld [vmem:[%s0 + $0x138] sm:$0xff]
  %v67 = vld [vmem:[%s0 + $0x140] sm:$0xff]
  %v68 = vld [vmem:[%s0 + $0x148] sm:$0xff]
  %v69 = vld [vmem:[%s0 + $0x150] sm:$0xff]
  %v70 = vld [vmem:[%s0 + $0x158] sm:$0xff]
  %v71 = vld [vmem:[%s0 + $0x160] sm:$0xff]
  %v72 = vld [vmem:[%s0 + $0x168] sm:$0xff]
  %v73 = vld [vmem:[%s0 + $0x170] sm:$0xff]
  %v74 = vld [vmem:[%s0 + $0x178] sm:$0xff]
  %v75 = vld [vmem:[%s0 + $0x180] sm:$0xff]
  %v76 = vld [vmem:[%s0 + $0x188] sm:$0xff]
  %v77 = vld [vmem:[%s1] sm:$0xf]
  %v78 = vld [vmem:[%s1 + $0x4] sm:$0xf]
  %v79 = vld [vmem:[%s1 + $0x8] sm:$0xf]
  %v80 = vld [vmem:[%s1 + $0xc] sm:$0xf]
  %v81 = vld [vmem:[%s1 + $0x10] sm:$0xf]
  %v82 = vld [vmem:[%s1 + $0x14] sm:$0xf]
  %v83 = vld [vmem:[%s1 + $0x18] sm:$0xf]
  %v84 = vld [vmem:[%s1 + $0x1c] sm:$0xf]
  %v85 = vld [vmem:[%s1 + $0x20] sm:$0xf]
  %v86 = vld [vmem:[%s1 + $0x24] sm:$0xf]
  %v87 = vld [vmem:[%s1 + $0x28] sm:$0xf]
  %v88 = vld [vmem:[%s1 + $0x2c] sm:$0xf]
  %v89 = vld [vmem:[%s1 + $0x30] sm:$0xf]
  %v90 = vld [vmem:[%s1 + $0x34] sm:$0xf]
  %v91 = vld [vmem:[%s1 + $0x38] sm:$0xf]
  %v92 = vld [vmem:[%s1 + $0x3c] sm:$0xf]
  %v93 = vld [vmem:[%s1 + $0x40] sm:$0xf]
  %v94 = vld [vmem:[%s1 + $0x44] sm:$0xf]
  %v95 = vld [vmem:[%s1 + $0x48] sm:$0x3]
  %s96 = scalar_lea.vmem %s0, 80
  %v97 = vld [vmem:[%s96] sm:$0xff]
  %v98 = vld [vmem:[%s96 + $0x8] sm:$0xff]
  %v99 = vld [vmem:[%s96 + $0x10] sm:$0xff]
  %v100 = vld [vmem:[%s96 + $0x18] sm:$0xff]
  %v101 = vld [vmem:[%s96 + $0x20] sm:$0xff]
  %v102 = vld [vmem:[%s96 + $0x28] sm:$0xff]
  %v103 = vld [vmem:[%s96 + $0x30] sm:$0xff]
  %v104 = vld [vmem:[%s96 + $0x38] sm:$0xff]
  %v105 = vld [vmem:[%s96 + $0x40] sm:$0xff]
  %v106 = vld [vmem:[%s96 + $0x48] sm:$0xff]
  %v107 = vld [vmem:[%s96 + $0x50] sm:$0xff]
  %v108 = vld [vmem:[%s96 + $0x58] sm:$0xff]
  %v109 = vld [vmem:[%s96 + $0x60] sm:$0xff]
  %v110 = vld [vmem:[%s96 + $0x68] sm:$0xff]
  %v111 = vld [vmem:[%s96 + $0x70] sm:$0xff]
  %v112 = vld [vmem:[%s96 + $0x78] sm:$0xff]
  %v113 = vld [vmem:[%s96 + $0x80] sm:$0xff]
  %v114 = vld [vmem:[%s96 + $0x88] sm:$0xff]
  %v115 = vld [vmem:[%s96 + $0x90] sm:$0xff]
  %v116 = vld [vmem:[%s96 + $0x98] sm:$0xff]
  %v117 = vld [vmem:[%s96 + $0xa0] sm:$0xff]
  %v118 = vld [vmem:[%s96 + $0xa8] sm:$0xff]
  %v119 = vld [vmem:[%s96 + $0xb0] sm:$0xff]
  %v120 = vld [vmem:[%s96 + $0xb8] sm:$0xff]
  %v121 = vld [vmem:[%s96 + $0xc0] sm:$0xff]
  %v122 = vld [vmem:[%s96 + $0xc8] sm:$0xff]
  %v123 = vld [vmem:[%s96 + $0xd0] sm:$0xff]
  %v124 = vld [vmem:[%s96 + $0xd8] sm:$0xff]
  %v125 = vld [vmem:[%s96 + $0xe0] sm:$0xff]
  %v126 = vld [vmem:[%s96 + $0xe8] sm:$0xff]
  %v127 = vld [vmem:[%s96 + $0xf0] sm:$0xff]
  %v128 = vld [vmem:[%s96 + $0xf8] sm:$0xff]
  %v129 = vld [vmem:[%s96 + $0x100] sm:$0xff]
  %v130 = vld [vmem:[%s96 + $0x108] sm:$0xff]
  %v131 = vld [vmem:[%s96 + $0x110] sm:$0xff]
  %v132 = vld [vmem:[%s96 + $0x118] sm:$0xff]
  %v133 = vld [vmem:[%s96 + $0x120] sm:$0xff]
  %v134 = vld [vmem:[%s96 + $0x128] sm:$0xff]
  %v135 = vld [vmem:[%s96 + $0x130] sm:$0xff]
  %v136 = vld [vmem:[%s96 + $0x138] sm:$0xff]
  %v137 = vld [vmem:[%s96 + $0x140] sm:$0xff]
  %v138 = vld [vmem:[%s96 + $0x148] sm:$0xff]
  %v139 = vld [vmem:[%s96 + $0x150] sm:$0xff]
  %v140 = vld [vmem:[%s96 + $0x158] sm:$0xff]
  %v141 = vld [vmem:[%s96 + $0x160] sm:$0xff]
  %v142 = vld [vmem:[%s96 + $0x168] sm:$0xff]
  %v143 = vld [vmem:[%s96 + $0x170] sm:$0xff]
  %v144 = vld [vmem:[%s96 + $0x178] sm:$0xff]
  %v145 = vld [vmem:[%s96 + $0x180] sm:$0xff]
  %v146 = vld [vmem:[%s96 + $0x188] sm:$0xff]
  %s147 = scalar_lea.vmem %s1, 76
  %v148 = vld [vmem:[%s147] sm:$0xf]
  %v149 = vld [vmem:[%s147 + $0x4] sm:$0xf]
  %v150 = vld [vmem:[%s147 + $0x8] sm:$0xf]
  %v151 = vld [vmem:[%s147 + $0xc] sm:$0xf]
  %v152 = vld [vmem:[%s147 + $0x10] sm:$0xf]
  %v153 = vld [vmem:[%s147 + $0x14] sm:$0xf]
  %v154 = vld [vmem:[%s147 + $0x18] sm:$0xf]
  %v155 = vld [vmem:[%s147 + $0x1c] sm:$0xf]
  %v156 = vld [vmem:[%s147 + $0x20] sm:$0xf]
  %v157 = vld [vmem:[%s147 + $0x24] sm:$0xf]
  %v158 = vld [vmem:[%s147 + $0x28] sm:$0xf]
  %v159 = vld [vmem:[%s147 + $0x2c] sm:$0xf]
  %v160 = vld [vmem:[%s147 + $0x30] sm:$0xf]
  %v161 = vld [vmem:[%s147 + $0x34] sm:$0xf]
  %v162 = vld [vmem:[%s147 + $0x38] sm:$0xf]
  %v163 = vld [vmem:[%s147 + $0x3c] sm:$0xf]
  %v164 = vld [vmem:[%s147 + $0x40] sm:$0xf]
  %v165 = vld [vmem:[%s147 + $0x44] sm:$0xf]
  %v166 = vld [vmem:[%s147 + $0x48] sm:$0x3]
  %v217 = vunpack.c.l.b16 %v97
  %v218 = vunpack.c.h.b16 %v97
  %v219 = vunpack.c.l.b16 %v98
  %v220 = vunpack.c.h.b16 %v98
  %v221 = vunpack.c.l.b16 %v99
  %v222 = vunpack.c.h.b16 %v99
  %v223 = vunpack.c.l.b16 %v100
  %v224 = vunpack.c.h.b16 %v100
  %v225 = vunpack.c.l.b16 %v101
  %v226 = vunpack.c.h.b16 %v101
  %v227 = vunpack.c.l.b16 %v102
  %v228 = vunpack.c.h.b16 %v102
  %v229 = vunpack.c.l.b16 %v103
  %v230 = vunpack.c.h.b16 %v103
  %v231 = vunpack.c.l.b16 %v104
  %v232 = vunpack.c.h.b16 %v104
  %v233 = vunpack.c.l.b16 %v105
  %v234 = vunpack.c.h.b16 %v105
  %v235 = vunpack.c.l.b16 %v106
  %v236 = vunpack.c.h.b16 %v106
  %v237 = vunpack.c.l.b16 %v107
  %v238 = vunpack.c.h.b16 %v107
  %v239 = vunpack.c.l.b16 %v108
  %v240 = vunpack.c.h.b16 %v108
  %v241 = vunpack.c.l.b16 %v109
  %v242 = vunpack.c.h.b16 %v109
  %v243 = vunpack.c.l.b16 %v110
  %v244 = vunpack.c.h.b16 %v110
  %v245 = vunpack.c.l.b16 %v111
  %v246 = vunpack.c.h.b16 %v111
  %v247 = vunpack.c.l.b16 %v112
  %v248 = vunpack.c.h.b16 %v112
  %v249 = vunpack.c.l.b16 %v113
  %v250 = vunpack.c.h.b16 %v113
  %v251 = vunpack.c.l.b16 %v114
  %v252 = vunpack.c.h.b16 %v114
  %v253 = vunpack.c.l.b16 %v115
  %v254 = vunpack.c.h.b16 %v115
  %v255 = vunpack.c.l.b16 %v116
  %v256 = vunpack.c.h.b16 %v116
  %v257 = vunpack.c.l.b16 %v117
  %v258 = vunpack.c.h.b16 %v117
  %v259 = vunpack.c.l.b16 %v118
  %v260 = vunpack.c.h.b16 %v118
  %v261 = vunpack.c.l.b16 %v119
  %v262 = vunpack.c.h.b16 %v119
  %v263 = vunpack.c.l.b16 %v120
  %v264 = vunpack.c.h.b16 %v120
  %v265 = vunpack.c.l.b16 %v121
  %v266 = vunpack.c.h.b16 %v121
  %v267 = vunpack.c.l.b16 %v122
  %v268 = vunpack.c.h.b16 %v122
  %v269 = vunpack.c.l.b16 %v123
  %v270 = vunpack.c.h.b16 %v123
  %v271 = vunpack.c.l.b16 %v124
  %v272 = vunpack.c.h.b16 %v124
  %v273 = vunpack.c.l.b16 %v125
  %v274 = vunpack.c.h.b16 %v125
  %v275 = vunpack.c.l.b16 %v126
  %v276 = vunpack.c.h.b16 %v126
  %v277 = vunpack.c.l.b16 %v127
  %v278 = vunpack.c.h.b16 %v127
  %v279 = vunpack.c.l.b16 %v128
  %v280 = vunpack.c.h.b16 %v128
  %v281 = vunpack.c.l.b16 %v129
  %v282 = vunpack.c.h.b16 %v129
  %v283 = vunpack.c.l.b16 %v130
  %v284 = vunpack.c.h.b16 %v130
  %v285 = vunpack.c.l.b16 %v131
  %v286 = vunpack.c.h.b16 %v131
  %v287 = vunpack.c.l.b16 %v132
  %v288 = vunpack.c.h.b16 %v132
  %v289 = vunpack.c.l.b16 %v133
  %v290 = vunpack.c.h.b16 %v133
  %v291 = vunpack.c.l.b16 %v134
  %v292 = vunpack.c.h.b16 %v134
  %v293 = vunpack.c.l.b16 %v135
  %v294 = vunpack.c.h.b16 %v135
  %v295 = vunpack.c.l.b16 %v136
  %v296 = vunpack.c.h.b16 %v136
  %v297 = vunpack.c.l.b16 %v137
  %v298 = vunpack.c.h.b16 %v137
  %v299 = vunpack.c.l.b16 %v138
  %v300 = vunpack.c.h.b16 %v138
  %v301 = vunpack.c.l.b16 %v139
  %v302 = vunpack.c.h.b16 %v139
  %v303 = vunpack.c.l.b16 %v140
  %v304 = vunpack.c.h.b16 %v140
  %v305 = vunpack.c.l.b16 %v141
  %v306 = vunpack.c.h.b16 %v141
  %v307 = vunpack.c.l.b16 %v142
  %v308 = vunpack.c.h.b16 %v142
  %v309 = vunpack.c.l.b16 %v143
  %v310 = vunpack.c.h.b16 %v143
  %v311 = vunpack.c.l.b16 %v144
  %v312 = vunpack.c.h.b16 %v144
  %v313 = vunpack.c.l.b16 %v145
  %v314 = vunpack.c.h.b16 %v145
  %v315 = vunpack.c.l.b16 %v146
  %v316 = vunpack.c.h.b16 %v146
  %v317 = vpack.c.b16 %v219, %v217
  %v318 = vpack.c.b16 %v220, %v218
  %v319 = vpack.c.b16 %v223, %v221
  %v320 = vpack.c.b16 %v224, %v222
  %v321 = vpack.c.b16 %v227, %v225
  %v322 = vpack.c.b16 %v228, %v226
  %v323 = vpack.c.b16 %v231, %v229
  %v324 = vpack.c.b16 %v232, %v230
  %v325 = vpack.c.b16 %v235, %v233
  %v326 = vpack.c.b16 %v236, %v234
  %v327 = vpack.c.b16 %v239, %v237
  %v328 = vpack.c.b16 %v240, %v238
  %v329 = vpack.c.b16 %v243, %v241
  %v330 = vpack.c.b16 %v244, %v242
  %v331 = vpack.c.b16 %v247, %v245
  %v332 = vpack.c.b16 %v248, %v246
  %v333 = vpack.c.b16 %v251, %v249
  %v334 = vpack.c.b16 %v252, %v250
  %v335 = vpack.c.b16 %v255, %v253
  %v336 = vpack.c.b16 %v256, %v254
  %v337 = vpack.c.b16 %v259, %v257
  %v338 = vpack.c.b16 %v260, %v258
  %v339 = vpack.c.b16 %v263, %v261
  %v340 = vpack.c.b16 %v264, %v262
  %v341 = vpack.c.b16 %v267, %v265
  %v342 = vpack.c.b16 %v268, %v266
  %v343 = vpack.c.b16 %v271, %v269
  %v344 = vpack.c.b16 %v272, %v270
  %v345 = vpack.c.b16 %v275, %v273
  %v346 = vpack.c.b16 %v276, %v274
  %v347 = vpack.c.b16 %v279, %v277
  %v348 = vpack.c.b16 %v280, %v278
  %v349 = vpack.c.b16 %v283, %v281
  %v350 = vpack.c.b16 %v284, %v282
  %v351 = vpack.c.b16 %v287, %v285
  %v352 = vpack.c.b16 %v288, %v286
  %v353 = vpack.c.b16 %v291, %v289
  %v354 = vpack.c.b16 %v292, %v290
  %v355 = vpack.c.b16 %v295, %v293
  %v356 = vpack.c.b16 %v296, %v294
  %v357 = vpack.c.b16 %v299, %v297
  %v358 = vpack.c.b16 %v300, %v298
  %v359 = vpack.c.b16 %v303, %v301
  %v360 = vpack.c.b16 %v304, %v302
  %v361 = vpack.c.b16 %v307, %v305
  %v362 = vpack.c.b16 %v308, %v306
  %v363 = vpack.c.b16 %v311, %v309
  %v364 = vpack.c.b16 %v312, %v310
  %v365 = vpack.c.b16 %v315, %v313
  %v366 = vpack.c.b16 %v316, %v314
  %v411 = vunpack.c.l.b16 %v148
  %v412 = vunpack.c.l.b16 %v149
  %v413 = vunpack.c.l.b16 %v150
  %v414 = vunpack.c.l.b16 %v151
  %v415 = vunpack.c.l.b16 %v152
  %v416 = vunpack.c.l.b16 %v153
  %v417 = vunpack.c.l.b16 %v154
  %v418 = vunpack.c.l.b16 %v155
  %v419 = vunpack.c.l.b16 %v156
  %v420 = vunpack.c.l.b16 %v157
  %v421 = vunpack.c.l.b16 %v158
  %v422 = vunpack.c.l.b16 %v159
  %v423 = vunpack.c.l.b16 %v160
  %v424 = vunpack.c.l.b16 %v161
  %v425 = vunpack.c.l.b16 %v162
  %v426 = vunpack.c.l.b16 %v163
  %v427 = vunpack.c.l.b16 %v164
  %v428 = vunpack.c.l.b16 %v165
  %v429 = vunpack.c.l.b16 %v166
  %v430 = vpack.c.b16 %v412, %v411
  %v431 = vpack.c.b16 %v414, %v413
  %v432 = vpack.c.b16 %v416, %v415
  %v433 = vpack.c.b16 %v418, %v417
  %v434 = vpack.c.b16 %v420, %v419
  %v435 = vpack.c.b16 %v422, %v421
  %v436 = vpack.c.b16 %v424, %v423
  %v437 = vpack.c.b16 %v426, %v425
  %v438 = vpack.c.b16 %v428, %v427
  %v439 = vpack.c.b16 %v429, %v429
  %vm449 = vcmask 154624
  %v451 = vsel %vm449, %v318, 0
  %v454 = vsel %vm449, %v320, 0
  %v457 = vsel %vm449, %v322, 0
  %v460 = vsel %vm449, %v324, 0
  %v463 = vsel %vm449, %v326, 0
  %v466 = vsel %vm449, %v328, 0
  %v469 = vsel %vm449, %v330, 0
  %v472 = vsel %vm449, %v332, 0
  %v475 = vsel %vm449, %v334, 0
  %v478 = vsel %vm449, %v336, 0
  %v481 = vsel %vm449, %v338, 0
  %v484 = vsel %vm449, %v340, 0
  %v487 = vsel %vm449, %v342, 0
  %v490 = vsel %vm449, %v344, 0
  %v493 = vsel %vm449, %v346, 0
  %v496 = vsel %vm449, %v348, 0
  %v499 = vsel %vm449, %v350, 0
  %v502 = vsel %vm449, %v352, 0
  %v505 = vsel %vm449, %v354, 0
  %v508 = vsel %vm449, %v356, 0
  %v511 = vsel %vm449, %v358, 0
  %v514 = vsel %vm449, %v360, 0
  %v517 = vsel %vm449, %v362, 0
  %v520 = vsel %vm449, %v364, 0
  %v523 = vsel %vm449, %v366, 0
  %vm525 = vcmask 1040384
  %vm526 = vcmask 1041408
  %v527 = vsel %vm525, 4294967295, 65535
  %v528 = vsel %vm526, %v527, 0
  %v530 = vand.u32 %v439, %v528
  %532 = vmatpush.bf16.msra.mxu0 %v437
  %533 = vmatpush.bf16.msra.mxu0 %v436
  %534 = vmatpush.bf16.msra.mxu0 %v435
  %535 = vmatpush.bf16.msra.mxu0 %v434
  %536 = vmatpush.bf16.msra.mxu0 %v433
  %537 = vmatpush.bf16.msra.mxu0 %v432
  %538 = vmatpush.bf16.msra.mxu0 %v431
  %539 = vmatpush.bf16.msra.mxu0 %v430
  %540 = vmatmul.bf16.gmra.mxu0 %v317
  %v541 = vpop.f32.mrf.mxu0
  %v542 = vadd.f32 0.0, %v541
  %v543 = vpop.f32.mrf.mxu0
  %v544 = vadd.f32 0.0, %v543
  %545 = vmatmul.bf16.gmra.mxu0 %v319
  %v546 = vpop.f32.mrf.mxu0
  %v547 = vadd.f32 0.0, %v546
  %v548 = vpop.f32.mrf.mxu0
  %v549 = vadd.f32 0.0, %v548
  %550 = vmatmul.bf16.gmra.mxu0 %v321
  %v551 = vpop.f32.mrf.mxu0
  %v552 = vadd.f32 0.0, %v551
  %v553 = vpop.f32.mrf.mxu0
  %v554 = vadd.f32 0.0, %v553
  %555 = vmatmul.bf16.gmra.mxu0 %v323
  %v556 = vpop.f32.mrf.mxu0
  %v557 = vadd.f32 0.0, %v556
  %v558 = vpop.f32.mrf.mxu0
  %v559 = vadd.f32 0.0, %v558
  %560 = vmatmul.bf16.gmra.mxu0 %v325
  %v561 = vpop.f32.mrf.mxu0
  %v562 = vadd.f32 0.0, %v561
  %v563 = vpop.f32.mrf.mxu0
  %v564 = vadd.f32 0.0, %v563
  %565 = vmatmul.bf16.gmra.mxu0 %v327
  %v566 = vpop.f32.mrf.mxu0
  %v567 = vadd.f32 0.0, %v566
  %v568 = vpop.f32.mrf.mxu0
  %v569 = vadd.f32 0.0, %v568
  %570 = vmatmul.bf16.gmra.mxu0 %v329
  %v571 = vpop.f32.mrf.mxu0
  %v572 = vadd.f32 0.0, %v571
  %v573 = vpop.f32.mrf.mxu0
  %v574 = vadd.f32 0.0, %v573
  %575 = vmatmul.bf16.gmra.mxu0 %v331
  %v576 = vpop.f32.mrf.mxu0
  %v577 = vadd.f32 0.0, %v576
  %v578 = vpop.f32.mrf.mxu0
  %v579 = vadd.f32 0.0, %v578
  %580 = vmatmul.bf16.gmra.mxu0 %v333
  %v581 = vpop.f32.mrf.mxu0
  %v582 = vadd.f32 0.0, %v581
  %v583 = vpop.f32.mrf.mxu0
  %v584 = vadd.f32 0.0, %v583
  %585 = vmatmul.bf16.gmra.mxu0 %v335
  %v586 = vpop.f32.mrf.mxu0
  %v587 = vadd.f32 0.0, %v586
  %v588 = vpop.f32.mrf.mxu0
  %v589 = vadd.f32 0.0, %v588
  %590 = vmatmul.bf16.gmra.mxu0 %v337
  %v591 = vpop.f32.mrf.mxu0
  %v592 = vadd.f32 0.0, %v591
  %v593 = vpop.f32.mrf.mxu0
  %v594 = vadd.f32 0.0, %v593
  %595 = vmatmul.bf16.gmra.mxu0 %v339
  %v596 = vpop.f32.mrf.mxu0
  %v597 = vadd.f32 0.0, %v596
  %v598 = vpop.f32.mrf.mxu0
  %v599 = vadd.f32 0.0, %v598
  %600 = vmatmul.bf16.gmra.mxu0 %v341
  %v601 = vpop.f32.mrf.mxu0
  %v602 = vadd.f32 0.0, %v601
  %v603 = vpop.f32.mrf.mxu0
  %v604 = vadd.f32 0.0, %v603
  %605 = vmatmul.bf16.gmra.mxu0 %v343
  %v606 = vpop.f32.mrf.mxu0
  %v607 = vadd.f32 0.0, %v606
  %v608 = vpop.f32.mrf.mxu0
  %v609 = vadd.f32 0.0, %v608
  %610 = vmatmul.bf16.gmra.mxu0 %v345
  %v611 = vpop.f32.mrf.mxu0
  %v612 = vadd.f32 0.0, %v611
  %v613 = vpop.f32.mrf.mxu0
  %v614 = vadd.f32 0.0, %v613
  %615 = vmatmul.bf16.gmra.mxu0 %v347
  %v616 = vpop.f32.mrf.mxu0
  %v617 = vadd.f32 0.0, %v616
  %v618 = vpop.f32.mrf.mxu0
  %v619 = vadd.f32 0.0, %v618
  %620 = vmatmul.bf16.gmra.mxu0 %v349
  %v621 = vpop.f32.mrf.mxu0
  %v622 = vadd.f32 0.0, %v621
  %v623 = vpop.f32.mrf.mxu0
  %v624 = vadd.f32 0.0, %v623
  %625 = vmatmul.bf16.gmra.mxu0 %v351
  %v626 = vpop.f32.mrf.mxu0
  %v627 = vadd.f32 0.0, %v626
  %v628 = vpop.f32.mrf.mxu0
  %v629 = vadd.f32 0.0, %v628
  %630 = vmatmul.bf16.gmra.mxu0 %v353
  %v631 = vpop.f32.mrf.mxu0
  %v632 = vadd.f32 0.0, %v631
  %v633 = vpop.f32.mrf.mxu0
  %v634 = vadd.f32 0.0, %v633
  %635 = vmatmul.bf16.gmra.mxu0 %v355
  %v636 = vpop.f32.mrf.mxu0
  %v637 = vadd.f32 0.0, %v636
  %v638 = vpop.f32.mrf.mxu0
  %v639 = vadd.f32 0.0, %v638
  %640 = vmatmul.bf16.gmra.mxu0 %v357
  %v641 = vpop.f32.mrf.mxu0
  %v642 = vadd.f32 0.0, %v641
  %v643 = vpop.f32.mrf.mxu0
  %v644 = vadd.f32 0.0, %v643
  %645 = vmatmul.bf16.gmra.mxu0 %v359
  %v646 = vpop.f32.mrf.mxu0
  %v647 = vadd.f32 0.0, %v646
  %v648 = vpop.f32.mrf.mxu0
  %v649 = vadd.f32 0.0, %v648
  %650 = vmatmul.bf16.gmra.mxu0 %v361
  %v651 = vpop.f32.mrf.mxu0
  %v652 = vadd.f32 0.0, %v651
  %v653 = vpop.f32.mrf.mxu0
  %v654 = vadd.f32 0.0, %v653
  %655 = vmatmul.bf16.gmra.mxu0 %v363
  %v656 = vpop.f32.mrf.mxu0
  %v657 = vadd.f32 0.0, %v656
  %v658 = vpop.f32.mrf.mxu0
  %v659 = vadd.f32 0.0, %v658
  %660 = vmatmul.bf16.gmra.mxu0 %v365
  %v661 = vpop.f32.mrf.mxu0
  %v662 = vadd.f32 0.0, %v661
  %v663 = vpop.f32.mrf.mxu0
  %v664 = vadd.f32 0.0, %v663
  %665 = vdwg.mxu0
  %666 = vmatpush.bf16.msra.mxu0 0
  %667 = vmatpush.bf16.msra.mxu0 0
  %668 = vmatpush.bf16.msra.mxu0 0
  %669 = vmatpush.bf16.msra.mxu0 0
  %670 = vmatpush.bf16.msra.mxu0 0
  %671 = vmatpush.bf16.msra.mxu0 0
  %672 = vmatpush.bf16.msra.mxu0 %v530
  %673 = vmatpush.bf16.msra.mxu0 %v438
  %674 = vmatmul.bf16.gmra.mxu0 %v451
  %v675 = vpop.f32.mrf.mxu0
  %v676 = vadd.f32 %v542, %v675
  %v677 = vpop.f32.mrf.mxu0
  %v678 = vadd.f32 %v544, %v677
  %679 = vmatmul.bf16.gmra.mxu0 %v454
  %v680 = vpop.f32.mrf.mxu0
  %v681 = vadd.f32 %v547, %v680
  %v682 = vpop.f32.mrf.mxu0
  %v683 = vadd.f32 %v549, %v682
  %684 = vmatmul.bf16.gmra.mxu0 %v457
  %v685 = vpop.f32.mrf.mxu0
  %v686 = vadd.f32 %v552, %v685
  %v687 = vpop.f32.mrf.mxu0
  %v688 = vadd.f32 %v554, %v687
  %689 = vmatmul.bf16.gmra.mxu0 %v460
  %v690 = vpop.f32.mrf.mxu0
  %v691 = vadd.f32 %v557, %v690
  %v692 = vpop.f32.mrf.mxu0
  %v693 = vadd.f32 %v559, %v692
  %694 = vmatmul.bf16.gmra.mxu0 %v463
  %v695 = vpop.f32.mrf.mxu0
  %v696 = vadd.f32 %v562, %v695
  %v697 = vpop.f32.mrf.mxu0
  %v698 = vadd.f32 %v564, %v697
  %699 = vmatmul.bf16.gmra.mxu0 %v466
  %v700 = vpop.f32.mrf.mxu0
  %v701 = vadd.f32 %v567, %v700
  %v702 = vpop.f32.mrf.mxu0
  %v703 = vadd.f32 %v569, %v702
  %704 = vmatmul.bf16.gmra.mxu0 %v469
  %v705 = vpop.f32.mrf.mxu0
  %v706 = vadd.f32 %v572, %v705
  %v707 = vpop.f32.mrf.mxu0
  %v708 = vadd.f32 %v574, %v707
  %709 = vmatmul.bf16.gmra.mxu0 %v472
  %v710 = vpop.f32.mrf.mxu0
  %v711 = vadd.f32 %v577, %v710
  %v712 = vpop.f32.mrf.mxu0
  %v713 = vadd.f32 %v579, %v712
  %714 = vmatmul.bf16.gmra.mxu0 %v475
  %v715 = vpop.f32.mrf.mxu0
  %v716 = vadd.f32 %v582, %v715
  %v717 = vpop.f32.mrf.mxu0
  %v718 = vadd.f32 %v584, %v717
  %719 = vmatmul.bf16.gmra.mxu0 %v478
  %v720 = vpop.f32.mrf.mxu0
  %v721 = vadd.f32 %v587, %v720
  %v722 = vpop.f32.mrf.mxu0
  %v723 = vadd.f32 %v589, %v722
  %724 = vmatmul.bf16.gmra.mxu0 %v481
  %v725 = vpop.f32.mrf.mxu0
  %v726 = vadd.f32 %v592, %v725
  %v727 = vpop.f32.mrf.mxu0
  %v728 = vadd.f32 %v594, %v727
  %729 = vmatmul.bf16.gmra.mxu0 %v484
  %v730 = vpop.f32.mrf.mxu0
  %v731 = vadd.f32 %v597, %v730
  %v732 = vpop.f32.mrf.mxu0
  %v733 = vadd.f32 %v599, %v732
  %734 = vmatmul.bf16.gmra.mxu0 %v487
  %v735 = vpop.f32.mrf.mxu0
  %v736 = vadd.f32 %v602, %v735
  %v737 = vpop.f32.mrf.mxu0
  %v738 = vadd.f32 %v604, %v737
  %739 = vmatmul.bf16.gmra.mxu0 %v490
  %v740 = vpop.f32.mrf.mxu0
  %v741 = vadd.f32 %v607, %v740
  %v742 = vpop.f32.mrf.mxu0
  %v743 = vadd.f32 %v609, %v742
  %744 = vmatmul.bf16.gmra.mxu0 %v493
  %v745 = vpop.f32.mrf.mxu0
  %v746 = vadd.f32 %v612, %v745
  %v747 = vpop.f32.mrf.mxu0
  %v748 = vadd.f32 %v614, %v747
  %749 = vmatmul.bf16.gmra.mxu0 %v496
  %v750 = vpop.f32.mrf.mxu0
  %v751 = vadd.f32 %v617, %v750
  %v752 = vpop.f32.mrf.mxu0
  %v753 = vadd.f32 %v619, %v752
  %754 = vmatmul.bf16.gmra.mxu0 %v499
  %v755 = vpop.f32.mrf.mxu0
  %v756 = vadd.f32 %v622, %v755
  %v757 = vpop.f32.mrf.mxu0
  %v758 = vadd.f32 %v624, %v757
  %759 = vmatmul.bf16.gmra.mxu0 %v502
  %v760 = vpop.f32.mrf.mxu0
  %v761 = vadd.f32 %v627, %v760
  %v762 = vpop.f32.mrf.mxu0
  %v763 = vadd.f32 %v629, %v762
  %764 = vmatmul.bf16.gmra.mxu0 %v505
  %v765 = vpop.f32.mrf.mxu0
  %v766 = vadd.f32 %v632, %v765
  %v767 = vpop.f32.mrf.mxu0
  %v768 = vadd.f32 %v634, %v767
  %769 = vmatmul.bf16.gmra.mxu0 %v508
  %v770 = vpop.f32.mrf.mxu0
  %v771 = vadd.f32 %v637, %v770
  %v772 = vpop.f32.mrf.mxu0
  %v773 = vadd.f32 %v639, %v772
  %774 = vmatmul.bf16.gmra.mxu0 %v511
  %v775 = vpop.f32.mrf.mxu0
  %v776 = vadd.f32 %v642, %v775
  %v777 = vpop.f32.mrf.mxu0
  %v778 = vadd.f32 %v644, %v777
  %779 = vmatmul.bf16.gmra.mxu0 %v514
  %v780 = vpop.f32.mrf.mxu0
  %v781 = vadd.f32 %v647, %v780
  %v782 = vpop.f32.mrf.mxu0
  %v783 = vadd.f32 %v649, %v782
  %784 = vmatmul.bf16.gmra.mxu0 %v517
  %v785 = vpop.f32.mrf.mxu0
  %v786 = vadd.f32 %v652, %v785
  %v787 = vpop.f32.mrf.mxu0
  %v788 = vadd.f32 %v654, %v787
  %789 = vmatmul.bf16.gmra.mxu0 %v520
  %v790 = vpop.f32.mrf.mxu0
  %v791 = vadd.f32 %v657, %v790
  %v792 = vpop.f32.mrf.mxu0
  %v793 = vadd.f32 %v659, %v792
  %794 = vmatmul.bf16.gmra.mxu0 %v523
  %v795 = vpop.f32.mrf.mxu0
  %v796 = vadd.f32 %v662, %v795
  %v797 = vpop.f32.mrf.mxu0
  %v798 = vadd.f32 %v664, %v797
  %799 = vdwg.mxu0
  %v850 = vunpack.c.l.b16 %v27
  %v851 = vunpack.c.h.b16 %v27
  %v852 = vunpack.c.l.b16 %v28
  %v853 = vunpack.c.h.b16 %v28
  %v854 = vunpack.c.l.b16 %v29
  %v855 = vunpack.c.h.b16 %v29
  %v856 = vunpack.c.l.b16 %v30
  %v857 = vunpack.c.h.b16 %v30
  %v858 = vunpack.c.l.b16 %v31
  %v859 = vunpack.c.h.b16 %v31
  %v860 = vunpack.c.l.b16 %v32
  %v861 = vunpack.c.h.b16 %v32
  %v862 = vunpack.c.l.b16 %v33
  %v863 = vunpack.c.h.b16 %v33
  %v864 = vunpack.c.l.b16 %v34
  %v865 = vunpack.c.h.b16 %v34
  %v866 = vunpack.c.l.b16 %v35
  %v867 = vunpack.c.h.b16 %v35
  %v868 = vunpack.c.l.b16 %v36
  %v869 = vunpack.c.h.b16 %v36
  %v870 = vunpack.c.l.b16 %v37
  %v871 = vunpack.c.h.b16 %v37
  %v872 = vunpack.c.l.b16 %v38
  %v873 = vunpack.c.h.b16 %v38
  %v874 = vunpack.c.l.b16 %v39
  %v875 = vunpack.c.h.b16 %v39
  %v876 = vunpack.c.l.b16 %v40
  %v877 = vunpack.c.h.b16 %v40
  %v878 = vunpack.c.l.b16 %v41
  %v879 = vunpack.c.h.b16 %v41
  %v880 = vunpack.c.l.b16 %v42
  %v881 = vunpack.c.h.b16 %v42
  %v882 = vunpack.c.l.b16 %v43
  %v883 = vunpack.c.h.b16 %v43
  %v884 = vunpack.c.l.b16 %v44
  %v885 = vunpack.c.h.b16 %v44
  %v886 = vunpack.c.l.b16 %v45
  %v887 = vunpack.c.h.b16 %v45
  %v888 = vunpack.c.l.b16 %v46
  %v889 = vunpack.c.h.b16 %v46
  %v890 = vunpack.c.l.b16 %v47
  %v891 = vunpack.c.h.b16 %v47
  %v892 = vunpack.c.l.b16 %v48
  %v893 = vunpack.c.h.b16 %v48
  %v894 = vunpack.c.l.b16 %v49
  %v895 = vunpack.c.h.b16 %v49
  %v896 = vunpack.c.l.b16 %v50
  %v897 = vunpack.c.h.b16 %v50
  %v898 = vunpack.c.l.b16 %v51
  %v899 = vunpack.c.h.b16 %v51
  %v900 = vunpack.c.l.b16 %v52
  %v901 = vunpack.c.h.b16 %v52
  %v902 = vunpack.c.l.b16 %v53
  %v903 = vunpack.c.h.b16 %v53
  %v904 = vunpack.c.l.b16 %v54
  %v905 = vunpack.c.h.b16 %v54
  %v906 = vunpack.c.l.b16 %v55
  %v907 = vunpack.c.h.b16 %v55
  %v908 = vunpack.c.l.b16 %v56
  %v909 = vunpack.c.h.b16 %v56
  %v910 = vunpack.c.l.b16 %v57
  %v911 = vunpack.c.h.b16 %v57
  %v912 = vunpack.c.l.b16 %v58
  %v913 = vunpack.c.h.b16 %v58
  %v914 = vunpack.c.l.b16 %v59
  %v915 = vunpack.c.h.b16 %v59
  %v916 = vunpack.c.l.b16 %v60
  %v917 = vunpack.c.h.b16 %v60
  %v918 = vunpack.c.l.b16 %v61
  %v919 = vunpack.c.h.b16 %v61
  %v920 = vunpack.c.l.b16 %v62
  %v921 = vunpack.c.h.b16 %v62
  %v922 = vunpack.c.l.b16 %v63
  %v923 = vunpack.c.h.b16 %v63
  %v924 = vunpack.c.l.b16 %v64
  %v925 = vunpack.c.h.b16 %v64
  %v926 = vunpack.c.l.b16 %v65
  %v927 = vunpack.c.h.b16 %v65
  %v928 = vunpack.c.l.b16 %v66
  %v929 = vunpack.c.h.b16 %v66
  %v930 = vunpack.c.l.b16 %v67
  %v931 = vunpack.c.h.b16 %v67
  %v932 = vunpack.c.l.b16 %v68
  %v933 = vunpack.c.h.b16 %v68
  %v934 = vunpack.c.l.b16 %v69
  %v935 = vunpack.c.h.b16 %v69
  %v936 = vunpack.c.l.b16 %v70
  %v937 = vunpack.c.h.b16 %v70
  %v938 = vunpack.c.l.b16 %v71
  %v939 = vunpack.c.h.b16 %v71
  %v940 = vunpack.c.l.b16 %v72
  %v941 = vunpack.c.h.b16 %v72
  %v942 = vunpack.c.l.b16 %v73
  %v943 = vunpack.c.h.b16 %v73
  %v944 = vunpack.c.l.b16 %v74
  %v945 = vunpack.c.h.b16 %v74
  %v946 = vunpack.c.l.b16 %v75
  %v947 = vunpack.c.h.b16 %v75
  %v948 = vunpack.c.l.b16 %v76
  %v949 = vunpack.c.h.b16 %v76
  %v950 = vpack.c.b16 %v852, %v850
  %v951 = vpack.c.b16 %v853, %v851
  %v952 = vpack.c.b16 %v856, %v854
  %v953 = vpack.c.b16 %v857, %v855
  %v954 = vpack.c.b16 %v860, %v858
  %v955 = vpack.c.b16 %v861, %v859
  %v956 = vpack.c.b16 %v864, %v862
  %v957 = vpack.c.b16 %v865, %v863
  %v958 = vpack.c.b16 %v868, %v866
  %v959 = vpack.c.b16 %v869, %v867
  %v960 = vpack.c.b16 %v872, %v870
  %v961 = vpack.c.b16 %v873, %v871
  %v962 = vpack.c.b16 %v876, %v874
  %v963 = vpack.c.b16 %v877, %v875
  %v964 = vpack.c.b16 %v880, %v878
  %v965 = vpack.c.b16 %v881, %v879
  %v966 = vpack.c.b16 %v884, %v882
  %v967 = vpack.c.b16 %v885, %v883
  %v968 = vpack.c.b16 %v888, %v886
  %v969 = vpack.c.b16 %v889, %v887
  %v970 = vpack.c.b16 %v892, %v890
  %v971 = vpack.c.b16 %v893, %v891
  %v972 = vpack.c.b16 %v896, %v894
  %v973 = vpack.c.b16 %v897, %v895
  %v974 = vpack.c.b16 %v900, %v898
  %v975 = vpack.c.b16 %v901, %v899
  %v976 = vpack.c.b16 %v904, %v902
  %v977 = vpack.c.b16 %v905, %v903
  %v978 = vpack.c.b16 %v908, %v906
  %v979 = vpack.c.b16 %v909, %v907
  %v980 = vpack.c.b16 %v912, %v910
  %v981 = vpack.c.b16 %v913, %v911
  %v982 = vpack.c.b16 %v916, %v914
  %v983 = vpack.c.b16 %v917, %v915
  %v984 = vpack.c.b16 %v920, %v918
  %v985 = vpack.c.b16 %v921, %v919
  %v986 = vpack.c.b16 %v924, %v922
  %v987 = vpack.c.b16 %v925, %v923
  %v988 = vpack.c.b16 %v928, %v926
  %v989 = vpack.c.b16 %v929, %v927
  %v990 = vpack.c.b16 %v932, %v930
  %v991 = vpack.c.b16 %v933, %v931
  %v992 = vpack.c.b16 %v936, %v934
  %v993 = vpack.c.b16 %v937, %v935
  %v994 = vpack.c.b16 %v940, %v938
  %v995 = vpack.c.b16 %v941, %v939
  %v996 = vpack.c.b16 %v944, %v942
  %v997 = vpack.c.b16 %v945, %v943
  %v998 = vpack.c.b16 %v948, %v946
  %v999 = vpack.c.b16 %v949, %v947
  %v1044 = vunpack.c.l.b16 %v77
  %v1045 = vunpack.c.l.b16 %v78
  %v1046 = vunpack.c.l.b16 %v79
  %v1047 = vunpack.c.l.b16 %v80
  %v1048 = vunpack.c.l.b16 %v81
  %v1049 = vunpack.c.l.b16 %v82
  %v1050 = vunpack.c.l.b16 %v83
  %v1051 = vunpack.c.l.b16 %v84
  %v1052 = vunpack.c.l.b16 %v85
  %v1053 = vunpack.c.l.b16 %v86
  %v1054 = vunpack.c.l.b16 %v87
  %v1055 = vunpack.c.l.b16 %v88
  %v1056 = vunpack.c.l.b16 %v89
  %v1057 = vunpack.c.l.b16 %v90
  %v1058 = vunpack.c.l.b16 %v91
  %v1059 = vunpack.c.l.b16 %v92
  %v1060 = vunpack.c.l.b16 %v93
  %v1061 = vunpack.c.l.b16 %v94
  %v1062 = vunpack.c.l.b16 %v95
  %v1063 = vpack.c.b16 %v1045, %v1044
  %v1064 = vpack.c.b16 %v1047, %v1046
  %v1065 = vpack.c.b16 %v1049, %v1048
  %v1066 = vpack.c.b16 %v1051, %v1050
  %v1067 = vpack.c.b16 %v1053, %v1052
  %v1068 = vpack.c.b16 %v1055, %v1054
  %v1069 = vpack.c.b16 %v1057, %v1056
  %v1070 = vpack.c.b16 %v1059, %v1058
  %v1071 = vpack.c.b16 %v1061, %v1060
  %v1072 = vpack.c.b16 %v1062, %v1062
  %v1083 = vsel %vm449, %v951, 0
  %v1086 = vsel %vm449, %v953, 0
  %v1089 = vsel %vm449, %v955, 0
  %v1092 = vsel %vm449, %v957, 0
  %v1095 = vsel %vm449, %v959, 0
  %v1098 = vsel %vm449, %v961, 0
  %v1101 = vsel %vm449, %v963, 0
  %v1104 = vsel %vm449, %v965, 0
  %v1107 = vsel %vm449, %v967, 0
  %v1110 = vsel %vm449, %v969, 0
  %v1113 = vsel %vm449, %v971, 0
  %v1116 = vsel %vm449, %v973, 0
  %v1119 = vsel %vm449, %v975, 0
  %v1122 = vsel %vm449, %v977, 0
  %v1125 = vsel %vm449, %v979, 0
  %v1128 = vsel %vm449, %v981, 0
  %v1131 = vsel %vm449, %v983, 0
  %v1134 = vsel %vm449, %v985, 0
  %v1137 = vsel %vm449, %v987, 0
  %v1140 = vsel %vm449, %v989, 0
  %v1143 = vsel %vm449, %v991, 0
  %v1146 = vsel %vm449, %v993, 0
  %v1149 = vsel %vm449, %v995, 0
  %v1152 = vsel %vm449, %v997, 0
  %v1155 = vsel %vm449, %v999, 0
  %v1158 = vand.u32 %v1072, %v528
  %1160 = vmatpush.bf16.msra.mxu0 %v1070
  %1161 = vmatpush.bf16.msra.mxu0 %v1069
  %1162 = vmatpush.bf16.msra.mxu0 %v1068
  %1163 = vmatpush.bf16.msra.mxu0 %v1067
  %1164 = vmatpush.bf16.msra.mxu0 %v1066
  %1165 = vmatpush.bf16.msra.mxu0 %v1065
  %1166 = vmatpush.bf16.msra.mxu0 %v1064
  %1167 = vmatpush.bf16.msra.mxu0 %v1063
  %1168 = vmatmul.bf16.gmra.mxu0 %v950
  %v1169 = vpop.f32.mrf.mxu0
  %v1170 = vadd.f32 %v676, %v1169
  %v1171 = vpop.f32.mrf.mxu0
  %v1172 = vadd.f32 %v678, %v1171
  %1173 = vmatmul.bf16.gmra.mxu0 %v952
  %v1174 = vpop.f32.mrf.mxu0
  %v1175 = vadd.f32 %v681, %v1174
  %v1176 = vpop.f32.mrf.mxu0
  %v1177 = vadd.f32 %v683, %v1176
  %1178 = vmatmul.bf16.gmra.mxu0 %v954
  %v1179 = vpop.f32.mrf.mxu0
  %v1180 = vadd.f32 %v686, %v1179
  %v1181 = vpop.f32.mrf.mxu0
  %v1182 = vadd.f32 %v688, %v1181
  %1183 = vmatmul.bf16.gmra.mxu0 %v956
  %v1184 = vpop.f32.mrf.mxu0
  %v1185 = vadd.f32 %v691, %v1184
  %v1186 = vpop.f32.mrf.mxu0
  %v1187 = vadd.f32 %v693, %v1186
  %1188 = vmatmul.bf16.gmra.mxu0 %v958
  %v1189 = vpop.f32.mrf.mxu0
  %v1190 = vadd.f32 %v696, %v1189
  %v1191 = vpop.f32.mrf.mxu0
  %v1192 = vadd.f32 %v698, %v1191
  %1193 = vmatmul.bf16.gmra.mxu0 %v960
  %v1194 = vpop.f32.mrf.mxu0
  %v1195 = vadd.f32 %v701, %v1194
  %v1196 = vpop.f32.mrf.mxu0
  %v1197 = vadd.f32 %v703, %v1196
  %1198 = vmatmul.bf16.gmra.mxu0 %v962
  %v1199 = vpop.f32.mrf.mxu0
  %v1200 = vadd.f32 %v706, %v1199
  %v1201 = vpop.f32.mrf.mxu0
  %v1202 = vadd.f32 %v708, %v1201
  %1203 = vmatmul.bf16.gmra.mxu0 %v964
  %v1204 = vpop.f32.mrf.mxu0
  %v1205 = vadd.f32 %v711, %v1204
  %v1206 = vpop.f32.mrf.mxu0
  %v1207 = vadd.f32 %v713, %v1206
  %1208 = vmatmul.bf16.gmra.mxu0 %v966
  %v1209 = vpop.f32.mrf.mxu0
  %v1210 = vadd.f32 %v716, %v1209
  %v1211 = vpop.f32.mrf.mxu0
  %v1212 = vadd.f32 %v718, %v1211
  %1213 = vmatmul.bf16.gmra.mxu0 %v968
  %v1214 = vpop.f32.mrf.mxu0
  %v1215 = vadd.f32 %v721, %v1214
  %v1216 = vpop.f32.mrf.mxu0
  %v1217 = vadd.f32 %v723, %v1216
  %1218 = vmatmul.bf16.gmra.mxu0 %v970
  %v1219 = vpop.f32.mrf.mxu0
  %v1220 = vadd.f32 %v726, %v1219
  %v1221 = vpop.f32.mrf.mxu0
  %v1222 = vadd.f32 %v728, %v1221
  %1223 = vmatmul.bf16.gmra.mxu0 %v972
  %v1224 = vpop.f32.mrf.mxu0
  %v1225 = vadd.f32 %v731, %v1224
  %v1226 = vpop.f32.mrf.mxu0
  %v1227 = vadd.f32 %v733, %v1226
  %1228 = vmatmul.bf16.gmra.mxu0 %v974
  %v1229 = vpop.f32.mrf.mxu0
  %v1230 = vadd.f32 %v736, %v1229
  %v1231 = vpop.f32.mrf.mxu0
  %v1232 = vadd.f32 %v738, %v1231
  %1233 = vmatmul.bf16.gmra.mxu0 %v976
  %v1234 = vpop.f32.mrf.mxu0
  %v1235 = vadd.f32 %v741, %v1234
  %v1236 = vpop.f32.mrf.mxu0
  %v1237 = vadd.f32 %v743, %v1236
  %1238 = vmatmul.bf16.gmra.mxu0 %v978
  %v1239 = vpop.f32.mrf.mxu0
  %v1240 = vadd.f32 %v746, %v1239
  %v1241 = vpop.f32.mrf.mxu0
  %v1242 = vadd.f32 %v748, %v1241
  %1243 = vmatmul.bf16.gmra.mxu0 %v980
  %v1244 = vpop.f32.mrf.mxu0
  %v1245 = vadd.f32 %v751, %v1244
  %v1246 = vpop.f32.mrf.mxu0
  %v1247 = vadd.f32 %v753, %v1246
  %1248 = vmatmul.bf16.gmra.mxu0 %v982
  %v1249 = vpop.f32.mrf.mxu0
  %v1250 = vadd.f32 %v756, %v1249
  %v1251 = vpop.f32.mrf.mxu0
  %v1252 = vadd.f32 %v758, %v1251
  %1253 = vmatmul.bf16.gmra.mxu0 %v984
  %v1254 = vpop.f32.mrf.mxu0
  %v1255 = vadd.f32 %v761, %v1254
  %v1256 = vpop.f32.mrf.mxu0
  %v1257 = vadd.f32 %v763, %v1256
  %1258 = vmatmul.bf16.gmra.mxu0 %v986
  %v1259 = vpop.f32.mrf.mxu0
  %v1260 = vadd.f32 %v766, %v1259
  %v1261 = vpop.f32.mrf.mxu0
  %v1262 = vadd.f32 %v768, %v1261
  %1263 = vmatmul.bf16.gmra.mxu0 %v988
  %v1264 = vpop.f32.mrf.mxu0
  %v1265 = vadd.f32 %v771, %v1264
  %v1266 = vpop.f32.mrf.mxu0
  %v1267 = vadd.f32 %v773, %v1266
  %1268 = vmatmul.bf16.gmra.mxu0 %v990
  %v1269 = vpop.f32.mrf.mxu0
  %v1270 = vadd.f32 %v776, %v1269
  %v1271 = vpop.f32.mrf.mxu0
  %v1272 = vadd.f32 %v778, %v1271
  %1273 = vmatmul.bf16.gmra.mxu0 %v992
  %v1274 = vpop.f32.mrf.mxu0
  %v1275 = vadd.f32 %v781, %v1274
  %v1276 = vpop.f32.mrf.mxu0
  %v1277 = vadd.f32 %v783, %v1276
  %1278 = vmatmul.bf16.gmra.mxu0 %v994
  %v1279 = vpop.f32.mrf.mxu0
  %v1280 = vadd.f32 %v786, %v1279
  %v1281 = vpop.f32.mrf.mxu0
  %v1282 = vadd.f32 %v788, %v1281
  %1283 = vmatmul.bf16.gmra.mxu0 %v996
  %v1284 = vpop.f32.mrf.mxu0
  %v1285 = vadd.f32 %v791, %v1284
  %v1286 = vpop.f32.mrf.mxu0
  %v1287 = vadd.f32 %v793, %v1286
  %1288 = vmatmul.bf16.gmra.mxu0 %v998
  %v1289 = vpop.f32.mrf.mxu0
  %v1290 = vadd.f32 %v796, %v1289
  %v1291 = vpop.f32.mrf.mxu0
  %v1292 = vadd.f32 %v798, %v1291
  %1293 = vdwg.mxu0
  %1294 = vmatpush.bf16.msra.mxu0 0
  %1295 = vmatpush.bf16.msra.mxu0 0
  %1296 = vmatpush.bf16.msra.mxu0 0
  %1297 = vmatpush.bf16.msra.mxu0 0
  %1298 = vmatpush.bf16.msra.mxu0 0
  %1299 = vmatpush.bf16.msra.mxu0 0
  %1300 = vmatpush.bf16.msra.mxu0 %v1158
  %1301 = vmatpush.bf16.msra.mxu0 %v1071
  %1302 = vmatmul.bf16.gmra.mxu0 %v1083
  %v1303 = vpop.f32.mrf.mxu0
  %v1304 = vadd.f32 %v1170, %v1303
  %v1305 = vpop.f32.mrf.mxu0
  %v1306 = vadd.f32 %v1172, %v1305
  %1307 = vmatmul.bf16.gmra.mxu0 %v1086
  %v1308 = vpop.f32.mrf.mxu0
  %v1309 = vadd.f32 %v1175, %v1308
  %v1310 = vpop.f32.mrf.mxu0
  %v1311 = vadd.f32 %v1177, %v1310
  %1312 = vmatmul.bf16.gmra.mxu0 %v1089
  %v1313 = vpop.f32.mrf.mxu0
  %v1314 = vadd.f32 %v1180, %v1313
  %v1315 = vpop.f32.mrf.mxu0
  %v1316 = vadd.f32 %v1182, %v1315
  %1317 = vmatmul.bf16.gmra.mxu0 %v1092
  %v1318 = vpop.f32.mrf.mxu0
  %v1319 = vadd.f32 %v1185, %v1318
  %v1320 = vpop.f32.mrf.mxu0
  %v1321 = vadd.f32 %v1187, %v1320
  %1322 = vmatmul.bf16.gmra.mxu0 %v1095
  %v1323 = vpop.f32.mrf.mxu0
  %v1324 = vadd.f32 %v1190, %v1323
  %v1325 = vpop.f32.mrf.mxu0
  %v1326 = vadd.f32 %v1192, %v1325
  %1327 = vmatmul.bf16.gmra.mxu0 %v1098
  %v1328 = vpop.f32.mrf.mxu0
  %v1329 = vadd.f32 %v1195, %v1328
  %v1330 = vpop.f32.mrf.mxu0
  %v1331 = vadd.f32 %v1197, %v1330
  %1332 = vmatmul.bf16.gmra.mxu0 %v1101
  %v1333 = vpop.f32.mrf.mxu0
  %v1334 = vadd.f32 %v1200, %v1333
  %v1335 = vpop.f32.mrf.mxu0
  %v1336 = vadd.f32 %v1202, %v1335
  %1337 = vmatmul.bf16.gmra.mxu0 %v1104
  %v1338 = vpop.f32.mrf.mxu0
  %v1339 = vadd.f32 %v1205, %v1338
  %v1340 = vpop.f32.mrf.mxu0
  %v1341 = vadd.f32 %v1207, %v1340
  %1342 = vmatmul.bf16.gmra.mxu0 %v1107
  %v1343 = vpop.f32.mrf.mxu0
  %v1344 = vadd.f32 %v1210, %v1343
  %v1345 = vpop.f32.mrf.mxu0
  %v1346 = vadd.f32 %v1212, %v1345
  %1347 = vmatmul.bf16.gmra.mxu0 %v1110
  %v1348 = vpop.f32.mrf.mxu0
  %v1349 = vadd.f32 %v1215, %v1348
  %v1350 = vpop.f32.mrf.mxu0
  %v1351 = vadd.f32 %v1217, %v1350
  %1352 = vmatmul.bf16.gmra.mxu0 %v1113
  %v1353 = vpop.f32.mrf.mxu0
  %v1354 = vadd.f32 %v1220, %v1353
  %v1355 = vpop.f32.mrf.mxu0
  %v1356 = vadd.f32 %v1222, %v1355
  %1357 = vmatmul.bf16.gmra.mxu0 %v1116
  %v1358 = vpop.f32.mrf.mxu0
  %v1359 = vadd.f32 %v1225, %v1358
  %v1360 = vpop.f32.mrf.mxu0
  %v1361 = vadd.f32 %v1227, %v1360
  %1362 = vmatmul.bf16.gmra.mxu0 %v1119
  %v1363 = vpop.f32.mrf.mxu0
  %v1364 = vadd.f32 %v1230, %v1363
  %v1365 = vpop.f32.mrf.mxu0
  %v1366 = vadd.f32 %v1232, %v1365
  %1367 = vmatmul.bf16.gmra.mxu0 %v1122
  %v1368 = vpop.f32.mrf.mxu0
  %v1369 = vadd.f32 %v1235, %v1368
  %v1370 = vpop.f32.mrf.mxu0
  %v1371 = vadd.f32 %v1237, %v1370
  %1372 = vmatmul.bf16.gmra.mxu0 %v1125
  %v1373 = vpop.f32.mrf.mxu0
  %v1374 = vadd.f32 %v1240, %v1373
  %v1375 = vpop.f32.mrf.mxu0
  %v1376 = vadd.f32 %v1242, %v1375
  %1377 = vmatmul.bf16.gmra.mxu0 %v1128
  %v1378 = vpop.f32.mrf.mxu0
  %v1379 = vadd.f32 %v1245, %v1378
  %v1380 = vpop.f32.mrf.mxu0
  %v1381 = vadd.f32 %v1247, %v1380
  %1382 = vmatmul.bf16.gmra.mxu0 %v1131
  %v1383 = vpop.f32.mrf.mxu0
  %v1384 = vadd.f32 %v1250, %v1383
  %v1385 = vpop.f32.mrf.mxu0
  %v1386 = vadd.f32 %v1252, %v1385
  %1387 = vmatmul.bf16.gmra.mxu0 %v1134
  %v1388 = vpop.f32.mrf.mxu0
  %v1389 = vadd.f32 %v1255, %v1388
  %v1390 = vpop.f32.mrf.mxu0
  %v1391 = vadd.f32 %v1257, %v1390
  %1392 = vmatmul.bf16.gmra.mxu0 %v1137
  %v1393 = vpop.f32.mrf.mxu0
  %v1394 = vadd.f32 %v1260, %v1393
  %v1395 = vpop.f32.mrf.mxu0
  %v1396 = vadd.f32 %v1262, %v1395
  %1397 = vmatmul.bf16.gmra.mxu0 %v1140
  %v1398 = vpop.f32.mrf.mxu0
  %v1399 = vadd.f32 %v1265, %v1398
  %v1400 = vpop.f32.mrf.mxu0
  %v1401 = vadd.f32 %v1267, %v1400
  %1402 = vmatmul.bf16.gmra.mxu0 %v1143
  %v1403 = vpop.f32.mrf.mxu0
  %v1404 = vadd.f32 %v1270, %v1403
  %v1405 = vpop.f32.mrf.mxu0
  %v1406 = vadd.f32 %v1272, %v1405
  %1407 = vmatmul.bf16.gmra.mxu0 %v1146
  %v1408 = vpop.f32.mrf.mxu0
  %v1409 = vadd.f32 %v1275, %v1408
  %v1410 = vpop.f32.mrf.mxu0
  %v1411 = vadd.f32 %v1277, %v1410
  %1412 = vmatmul.bf16.gmra.mxu0 %v1149
  %v1413 = vpop.f32.mrf.mxu0
  %v1414 = vadd.f32 %v1280, %v1413
  %v1415 = vpop.f32.mrf.mxu0
  %v1416 = vadd.f32 %v1282, %v1415
  %1417 = vmatmul.bf16.gmra.mxu0 %v1152
  %v1418 = vpop.f32.mrf.mxu0
  %v1419 = vadd.f32 %v1285, %v1418
  %v1420 = vpop.f32.mrf.mxu0
  %v1421 = vadd.f32 %v1287, %v1420
  %1422 = vmatmul.bf16.gmra.mxu0 %v1155
  %v1423 = vpop.f32.mrf.mxu0
  %v1424 = vadd.f32 %v1290, %v1423
  %v1425 = vpop.f32.mrf.mxu0
  %v1426 = vadd.f32 %v1292, %v1425
  %1427 = vdwg.mxu0
  %s1428 = scalar_lea.vmem %s0, 160
  %v1429 = vld [vmem:[%s1428] sm:$0xff]
  %v1430 = vld [vmem:[%s1428 + $0x8] sm:$0xff]
  %v1431 = vld [vmem:[%s1428 + $0x10] sm:$0xff]
  %v1432 = vld [vmem:[%s1428 + $0x18] sm:$0xff]
  %v1433 = vld [vmem:[%s1428 + $0x20] sm:$0xff]
  %v1434 = vld [vmem:[%s1428 + $0x28] sm:$0xff]
  %v1435 = vld [vmem:[%s1428 + $0x30] sm:$0xff]
  %v1436 = vld [vmem:[%s1428 + $0x38] sm:$0xff]
  %v1437 = vld [vmem:[%s1428 + $0x40] sm:$0xff]
  %v1438 = vld [vmem:[%s1428 + $0x48] sm:$0xff]
  %v1439 = vld [vmem:[%s1428 + $0x50] sm:$0xff]
  %v1440 = vld [vmem:[%s1428 + $0x58] sm:$0xff]
  %v1441 = vld [vmem:[%s1428 + $0x60] sm:$0xff]
  %v1442 = vld [vmem:[%s1428 + $0x68] sm:$0xff]
  %v1443 = vld [vmem:[%s1428 + $0x70] sm:$0xff]
  %v1444 = vld [vmem:[%s1428 + $0x78] sm:$0xff]
  %v1445 = vld [vmem:[%s1428 + $0x80] sm:$0xff]
  %v1446 = vld [vmem:[%s1428 + $0x88] sm:$0xff]
  %v1447 = vld [vmem:[%s1428 + $0x90] sm:$0xff]
  %v1448 = vld [vmem:[%s1428 + $0x98] sm:$0xff]
  %v1449 = vld [vmem:[%s1428 + $0xa0] sm:$0xff]
  %v1450 = vld [vmem:[%s1428 + $0xa8] sm:$0xff]
  %v1451 = vld [vmem:[%s1428 + $0xb0] sm:$0xff]
  %v1452 = vld [vmem:[%s1428 + $0xb8] sm:$0xff]
  %v1453 = vld [vmem:[%s1428 + $0xc0] sm:$0xff]
  %v1454 = vld [vmem:[%s1428 + $0xc8] sm:$0xff]
  %v1455 = vld [vmem:[%s1428 + $0xd0] sm:$0xff]
  %v1456 = vld [vmem:[%s1428 + $0xd8] sm:$0xff]
  %v1457 = vld [vmem:[%s1428 + $0xe0] sm:$0xff]
  %v1458 = vld [vmem:[%s1428 + $0xe8] sm:$0xff]
  %v1459 = vld [vmem:[%s1428 + $0xf0] sm:$0xff]
  %v1460 = vld [vmem:[%s1428 + $0xf8] sm:$0xff]
  %v1461 = vld [vmem:[%s1428 + $0x100] sm:$0xff]
  %v1462 = vld [vmem:[%s1428 + $0x108] sm:$0xff]
  %v1463 = vld [vmem:[%s1428 + $0x110] sm:$0xff]
  %v1464 = vld [vmem:[%s1428 + $0x118] sm:$0xff]
  %v1465 = vld [vmem:[%s1428 + $0x120] sm:$0xff]
  %v1466 = vld [vmem:[%s1428 + $0x128] sm:$0xff]
  %v1467 = vld [vmem:[%s1428 + $0x130] sm:$0xff]
  %v1468 = vld [vmem:[%s1428 + $0x138] sm:$0xff]
  %v1469 = vld [vmem:[%s1428 + $0x140] sm:$0xff]
  %v1470 = vld [vmem:[%s1428 + $0x148] sm:$0xff]
  %v1471 = vld [vmem:[%s1428 + $0x150] sm:$0xff]
  %v1472 = vld [vmem:[%s1428 + $0x158] sm:$0xff]
  %v1473 = vld [vmem:[%s1428 + $0x160] sm:$0xff]
  %v1474 = vld [vmem:[%s1428 + $0x168] sm:$0xff]
  %v1475 = vld [vmem:[%s1428 + $0x170] sm:$0xff]
  %v1476 = vld [vmem:[%s1428 + $0x178] sm:$0xff]
  %v1477 = vld [vmem:[%s1428 + $0x180] sm:$0xff]
  %v1478 = vld [vmem:[%s1428 + $0x188] sm:$0xff]
  %s1479 = scalar_lea.vmem %s1, 152
  %v1480 = vld [vmem:[%s1479] sm:$0xf]
  %v1481 = vld [vmem:[%s1479 + $0x4] sm:$0xf]
  %v1482 = vld [vmem:[%s1479 + $0x8] sm:$0xf]
  %v1483 = vld [vmem:[%s1479 + $0xc] sm:$0xf]
  %v1484 = vld [vmem:[%s1479 + $0x10] sm:$0xf]
  %v1485 = vld [vmem:[%s1479 + $0x14] sm:$0xf]
  %v1486 = vld [vmem:[%s1479 + $0x18] sm:$0xf]
  %v1487 = vld [vmem:[%s1479 + $0x1c] sm:$0xf]
  %v1488 = vld [vmem:[%s1479 + $0x20] sm:$0xf]
  %v1489 = vld [vmem:[%s1479 + $0x24] sm:$0xf]
  %v1490 = vld [vmem:[%s1479 + $0x28] sm:$0xf]
  %v1491 = vld [vmem:[%s1479 + $0x2c] sm:$0xf]
  %v1492 = vld [vmem:[%s1479 + $0x30] sm:$0xf]
  %v1493 = vld [vmem:[%s1479 + $0x34] sm:$0xf]
  %v1494 = vld [vmem:[%s1479 + $0x38] sm:$0xf]
  %v1495 = vld [vmem:[%s1479 + $0x3c] sm:$0xf]
  %v1496 = vld [vmem:[%s1479 + $0x40] sm:$0xf]
  %v1497 = vld [vmem:[%s1479 + $0x44] sm:$0xf]
  %v1498 = vld [vmem:[%s1479 + $0x48] sm:$0x3]
  %v1549 = vunpack.c.l.b16 %v1429
  %v1550 = vunpack.c.h.b16 %v1429
  %v1551 = vunpack.c.l.b16 %v1430
  %v1552 = vunpack.c.h.b16 %v1430
  %v1553 = vunpack.c.l.b16 %v1431
  %v1554 = vunpack.c.h.b16 %v1431
  %v1555 = vunpack.c.l.b16 %v1432
  %v1556 = vunpack.c.h.b16 %v1432
  %v1557 = vunpack.c.l.b16 %v1433
  %v1558 = vunpack.c.h.b16 %v1433
  %v1559 = vunpack.c.l.b16 %v1434
  %v1560 = vunpack.c.h.b16 %v1434
  %v1561 = vunpack.c.l.b16 %v1435
  %v1562 = vunpack.c.h.b16 %v1435
  %v1563 = vunpack.c.l.b16 %v1436
  %v1564 = vunpack.c.h.b16 %v1436
  %v1565 = vunpack.c.l.b16 %v1437
  %v1566 = vunpack.c.h.b16 %v1437
  %v1567 = vunpack.c.l.b16 %v1438
  %v1568 = vunpack.c.h.b16 %v1438
  %v1569 = vunpack.c.l.b16 %v1439
  %v1570 = vunpack.c.h.b16 %v1439
  %v1571 = vunpack.c.l.b16 %v1440
  %v1572 = vunpack.c.h.b16 %v1440
  %v1573 = vunpack.c.l.b16 %v1441
  %v1574 = vunpack.c.h.b16 %v1441
  %v1575 = vunpack.c.l.b16 %v1442
  %v1576 = vunpack.c.h.b16 %v1442
  %v1577 = vunpack.c.l.b16 %v1443
  %v1578 = vunpack.c.h.b16 %v1443
  %v1579 = vunpack.c.l.b16 %v1444
  %v1580 = vunpack.c.h.b16 %v1444
  %v1581 = vunpack.c.l.b16 %v1445
  %v1582 = vunpack.c.h.b16 %v1445
  %v1583 = vunpack.c.l.b16 %v1446
  %v1584 = vunpack.c.h.b16 %v1446
  %v1585 = vunpack.c.l.b16 %v1447
  %v1586 = vunpack.c.h.b16 %v1447
  %v1587 = vunpack.c.l.b16 %v1448
  %v1588 = vunpack.c.h.b16 %v1448
  %v1589 = vunpack.c.l.b16 %v1449
  %v1590 = vunpack.c.h.b16 %v1449
  %v1591 = vunpack.c.l.b16 %v1450
  %v1592 = vunpack.c.h.b16 %v1450
  %v1593 = vunpack.c.l.b16 %v1451
  %v1594 = vunpack.c.h.b16 %v1451
  %v1595 = vunpack.c.l.b16 %v1452
  %v1596 = vunpack.c.h.b16 %v1452
  %v1597 = vunpack.c.l.b16 %v1453
  %v1598 = vunpack.c.h.b16 %v1453
  %v1599 = vunpack.c.l.b16 %v1454
  %v1600 = vunpack.c.h.b16 %v1454
  %v1601 = vunpack.c.l.b16 %v1455
  %v1602 = vunpack.c.h.b16 %v1455
  %v1603 = vunpack.c.l.b16 %v1456
  %v1604 = vunpack.c.h.b16 %v1456
  %v1605 = vunpack.c.l.b16 %v1457
  %v1606 = vunpack.c.h.b16 %v1457
  %v1607 = vunpack.c.l.b16 %v1458
  %v1608 = vunpack.c.h.b16 %v1458
  %v1609 = vunpack.c.l.b16 %v1459
  %v1610 = vunpack.c.h.b16 %v1459
  %v1611 = vunpack.c.l.b16 %v1460
  %v1612 = vunpack.c.h.b16 %v1460
  %v1613 = vunpack.c.l.b16 %v1461
  %v1614 = vunpack.c.h.b16 %v1461
  %v1615 = vunpack.c.l.b16 %v1462
  %v1616 = vunpack.c.h.b16 %v1462
  %v1617 = vunpack.c.l.b16 %v1463
  %v1618 = vunpack.c.h.b16 %v1463
  %v1619 = vunpack.c.l.b16 %v1464
  %v1620 = vunpack.c.h.b16 %v1464
  %v1621 = vunpack.c.l.b16 %v1465
  %v1622 = vunpack.c.h.b16 %v1465
  %v1623 = vunpack.c.l.b16 %v1466
  %v1624 = vunpack.c.h.b16 %v1466
  %v1625 = vunpack.c.l.b16 %v1467
  %v1626 = vunpack.c.h.b16 %v1467
  %v1627 = vunpack.c.l.b16 %v1468
  %v1628 = vunpack.c.h.b16 %v1468
  %v1629 = vunpack.c.l.b16 %v1469
  %v1630 = vunpack.c.h.b16 %v1469
  %v1631 = vunpack.c.l.b16 %v1470
  %v1632 = vunpack.c.h.b16 %v1470
  %v1633 = vunpack.c.l.b16 %v1471
  %v1634 = vunpack.c.h.b16 %v1471
  %v1635 = vunpack.c.l.b16 %v1472
  %v1636 = vunpack.c.h.b16 %v1472
  %v1637 = vunpack.c.l.b16 %v1473
  %v1638 = vunpack.c.h.b16 %v1473
  %v1639 = vunpack.c.l.b16 %v1474
  %v1640 = vunpack.c.h.b16 %v1474
  %v1641 = vunpack.c.l.b16 %v1475
  %v1642 = vunpack.c.h.b16 %v1475
  %v1643 = vunpack.c.l.b16 %v1476
  %v1644 = vunpack.c.h.b16 %v1476
  %v1645 = vunpack.c.l.b16 %v1477
  %v1646 = vunpack.c.h.b16 %v1477
  %v1647 = vunpack.c.l.b16 %v1478
  %v1648 = vunpack.c.h.b16 %v1478
  %v1649 = vpack.c.b16 %v1551, %v1549
  %v1650 = vpack.c.b16 %v1552, %v1550
  %v1651 = vpack.c.b16 %v1555, %v1553
  %v1652 = vpack.c.b16 %v1556, %v1554
  %v1653 = vpack.c.b16 %v1559, %v1557
  %v1654 = vpack.c.b16 %v1560, %v1558
  %v1655 = vpack.c.b16 %v1563, %v1561
  %v1656 = vpack.c.b16 %v1564, %v1562
  %v1657 = vpack.c.b16 %v1567, %v1565
  %v1658 = vpack.c.b16 %v1568, %v1566
  %v1659 = vpack.c.b16 %v1571, %v1569
  %v1660 = vpack.c.b16 %v1572, %v1570
  %v1661 = vpack.c.b16 %v1575, %v1573
  %v1662 = vpack.c.b16 %v1576, %v1574
  %v1663 = vpack.c.b16 %v1579, %v1577
  %v1664 = vpack.c.b16 %v1580, %v1578
  %v1665 = vpack.c.b16 %v1583, %v1581
  %v1666 = vpack.c.b16 %v1584, %v1582
  %v1667 = vpack.c.b16 %v1587, %v1585
  %v1668 = vpack.c.b16 %v1588, %v1586
  %v1669 = vpack.c.b16 %v1591, %v1589
  %v1670 = vpack.c.b16 %v1592, %v1590
  %v1671 = vpack.c.b16 %v1595, %v1593
  %v1672 = vpack.c.b16 %v1596, %v1594
  %v1673 = vpack.c.b16 %v1599, %v1597
  %v1674 = vpack.c.b16 %v1600, %v1598
  %v1675 = vpack.c.b16 %v1603, %v1601
  %v1676 = vpack.c.b16 %v1604, %v1602
  %v1677 = vpack.c.b16 %v1607, %v1605
  %v1678 = vpack.c.b16 %v1608, %v1606
  %v1679 = vpack.c.b16 %v1611, %v1609
  %v1680 = vpack.c.b16 %v1612, %v1610
  %v1681 = vpack.c.b16 %v1615, %v1613
  %v1682 = vpack.c.b16 %v1616, %v1614
  %v1683 = vpack.c.b16 %v1619, %v1617
  %v1684 = vpack.c.b16 %v1620, %v1618
  %v1685 = vpack.c.b16 %v1623, %v1621
  %v1686 = vpack.c.b16 %v1624, %v1622
  %v1687 = vpack.c.b16 %v1627, %v1625
  %v1688 = vpack.c.b16 %v1628, %v1626
  %v1689 = vpack.c.b16 %v1631, %v1629
  %v1690 = vpack.c.b16 %v1632, %v1630
  %v1691 = vpack.c.b16 %v1635, %v1633
  %v1692 = vpack.c.b16 %v1636, %v1634
  %v1693 = vpack.c.b16 %v1639, %v1637
  %v1694 = vpack.c.b16 %v1640, %v1638
  %v1695 = vpack.c.b16 %v1643, %v1641
  %v1696 = vpack.c.b16 %v1644, %v1642
  %v1697 = vpack.c.b16 %v1647, %v1645
  %v1698 = vpack.c.b16 %v1648, %v1646
  %v1743 = vunpack.c.l.b16 %v1480
  %v1744 = vunpack.c.l.b16 %v1481
  %v1745 = vunpack.c.l.b16 %v1482
  %v1746 = vunpack.c.l.b16 %v1483
  %v1747 = vunpack.c.l.b16 %v1484
  %v1748 = vunpack.c.l.b16 %v1485
  %v1749 = vunpack.c.l.b16 %v1486
  %v1750 = vunpack.c.l.b16 %v1487
  %v1751 = vunpack.c.l.b16 %v1488
  %v1752 = vunpack.c.l.b16 %v1489
  %v1753 = vunpack.c.l.b16 %v1490
  %v1754 = vunpack.c.l.b16 %v1491
  %v1755 = vunpack.c.l.b16 %v1492
  %v1756 = vunpack.c.l.b16 %v1493
  %v1757 = vunpack.c.l.b16 %v1494
  %v1758 = vunpack.c.l.b16 %v1495
  %v1759 = vunpack.c.l.b16 %v1496
  %v1760 = vunpack.c.l.b16 %v1497
  %v1761 = vunpack.c.l.b16 %v1498
  %v1762 = vpack.c.b16 %v1744, %v1743
  %v1763 = vpack.c.b16 %v1746, %v1745
  %v1764 = vpack.c.b16 %v1748, %v1747
  %v1765 = vpack.c.b16 %v1750, %v1749
  %v1766 = vpack.c.b16 %v1752, %v1751
  %v1767 = vpack.c.b16 %v1754, %v1753
  %v1768 = vpack.c.b16 %v1756, %v1755
  %v1769 = vpack.c.b16 %v1758, %v1757
  %v1770 = vpack.c.b16 %v1760, %v1759
  %v1771 = vpack.c.b16 %v1761, %v1761
  %v1782 = vsel %vm449, %v1650, 0
  %v1785 = vsel %vm449, %v1652, 0
  %v1788 = vsel %vm449, %v1654, 0
  %v1791 = vsel %vm449, %v1656, 0
  %v1794 = vsel %vm449, %v1658, 0
  %v1797 = vsel %vm449, %v1660, 0
  %v1800 = vsel %vm449, %v1662, 0
  %v1803 = vsel %vm449, %v1664, 0
  %v1806 = vsel %vm449, %v1666, 0
  %v1809 = vsel %vm449, %v1668, 0
  %v1812 = vsel %vm449, %v1670, 0
  %v1815 = vsel %vm449, %v1672, 0
  %v1818 = vsel %vm449, %v1674, 0
  %v1821 = vsel %vm449, %v1676, 0
  %v1824 = vsel %vm449, %v1678, 0
  %v1827 = vsel %vm449, %v1680, 0
  %v1830 = vsel %vm449, %v1682, 0
  %v1833 = vsel %vm449, %v1684, 0
  %v1836 = vsel %vm449, %v1686, 0
  %v1839 = vsel %vm449, %v1688, 0
  %v1842 = vsel %vm449, %v1690, 0
  %v1845 = vsel %vm449, %v1692, 0
  %v1848 = vsel %vm449, %v1694, 0
  %v1851 = vsel %vm449, %v1696, 0
  %v1854 = vsel %vm449, %v1698, 0
  %v1857 = vand.u32 %v1771, %v528
  %1859 = vmatpush.bf16.msra.mxu0 %v1769
  %1860 = vmatpush.bf16.msra.mxu0 %v1768
  %1861 = vmatpush.bf16.msra.mxu0 %v1767
  %1862 = vmatpush.bf16.msra.mxu0 %v1766
  %1863 = vmatpush.bf16.msra.mxu0 %v1765
  %1864 = vmatpush.bf16.msra.mxu0 %v1764
  %1865 = vmatpush.bf16.msra.mxu0 %v1763
  %1866 = vmatpush.bf16.msra.mxu0 %v1762
  %1867 = vmatmul.bf16.gmra.mxu0 %v1649
  %v1868 = vpop.f32.mrf.mxu0
  %v1869 = vadd.f32 0.0, %v1868
  %v1870 = vpop.f32.mrf.mxu0
  %v1871 = vadd.f32 0.0, %v1870
  %1872 = vmatmul.bf16.gmra.mxu0 %v1651
  %v1873 = vpop.f32.mrf.mxu0
  %v1874 = vadd.f32 0.0, %v1873
  %v1875 = vpop.f32.mrf.mxu0
  %v1876 = vadd.f32 0.0, %v1875
  %1877 = vmatmul.bf16.gmra.mxu0 %v1653
  %v1878 = vpop.f32.mrf.mxu0
  %v1879 = vadd.f32 0.0, %v1878
  %v1880 = vpop.f32.mrf.mxu0
  %v1881 = vadd.f32 0.0, %v1880
  %1882 = vmatmul.bf16.gmra.mxu0 %v1655
  %v1883 = vpop.f32.mrf.mxu0
  %v1884 = vadd.f32 0.0, %v1883
  %v1885 = vpop.f32.mrf.mxu0
  %v1886 = vadd.f32 0.0, %v1885
  %1887 = vmatmul.bf16.gmra.mxu0 %v1657
  %v1888 = vpop.f32.mrf.mxu0
  %v1889 = vadd.f32 0.0, %v1888
  %v1890 = vpop.f32.mrf.mxu0
  %v1891 = vadd.f32 0.0, %v1890
  %1892 = vmatmul.bf16.gmra.mxu0 %v1659
  %v1893 = vpop.f32.mrf.mxu0
  %v1894 = vadd.f32 0.0, %v1893
  %v1895 = vpop.f32.mrf.mxu0
  %v1896 = vadd.f32 0.0, %v1895
  %1897 = vmatmul.bf16.gmra.mxu0 %v1661
  %v1898 = vpop.f32.mrf.mxu0
  %v1899 = vadd.f32 0.0, %v1898
  %v1900 = vpop.f32.mrf.mxu0
  %v1901 = vadd.f32 0.0, %v1900
  %1902 = vmatmul.bf16.gmra.mxu0 %v1663
  %v1903 = vpop.f32.mrf.mxu0
  %v1904 = vadd.f32 0.0, %v1903
  %v1905 = vpop.f32.mrf.mxu0
  %v1906 = vadd.f32 0.0, %v1905
  %1907 = vmatmul.bf16.gmra.mxu0 %v1665
  %v1908 = vpop.f32.mrf.mxu0
  %v1909 = vadd.f32 0.0, %v1908
  %v1910 = vpop.f32.mrf.mxu0
  %v1911 = vadd.f32 0.0, %v1910
  %1912 = vmatmul.bf16.gmra.mxu0 %v1667
  %v1913 = vpop.f32.mrf.mxu0
  %v1914 = vadd.f32 0.0, %v1913
  %v1915 = vpop.f32.mrf.mxu0
  %v1916 = vadd.f32 0.0, %v1915
  %1917 = vmatmul.bf16.gmra.mxu0 %v1669
  %v1918 = vpop.f32.mrf.mxu0
  %v1919 = vadd.f32 0.0, %v1918
  %v1920 = vpop.f32.mrf.mxu0
  %v1921 = vadd.f32 0.0, %v1920
  %1922 = vmatmul.bf16.gmra.mxu0 %v1671
  %v1923 = vpop.f32.mrf.mxu0
  %v1924 = vadd.f32 0.0, %v1923
  %v1925 = vpop.f32.mrf.mxu0
  %v1926 = vadd.f32 0.0, %v1925
  %1927 = vmatmul.bf16.gmra.mxu0 %v1673
  %v1928 = vpop.f32.mrf.mxu0
  %v1929 = vadd.f32 0.0, %v1928
  %v1930 = vpop.f32.mrf.mxu0
  %v1931 = vadd.f32 0.0, %v1930
  %1932 = vmatmul.bf16.gmra.mxu0 %v1675
  %v1933 = vpop.f32.mrf.mxu0
  %v1934 = vadd.f32 0.0, %v1933
  %v1935 = vpop.f32.mrf.mxu0
  %v1936 = vadd.f32 0.0, %v1935
  %1937 = vmatmul.bf16.gmra.mxu0 %v1677
  %v1938 = vpop.f32.mrf.mxu0
  %v1939 = vadd.f32 0.0, %v1938
  %v1940 = vpop.f32.mrf.mxu0
  %v1941 = vadd.f32 0.0, %v1940
  %1942 = vmatmul.bf16.gmra.mxu0 %v1679
  %v1943 = vpop.f32.mrf.mxu0
  %v1944 = vadd.f32 0.0, %v1943
  %v1945 = vpop.f32.mrf.mxu0
  %v1946 = vadd.f32 0.0, %v1945
  %1947 = vmatmul.bf16.gmra.mxu0 %v1681
  %v1948 = vpop.f32.mrf.mxu0
  %v1949 = vadd.f32 0.0, %v1948
  %v1950 = vpop.f32.mrf.mxu0
  %v1951 = vadd.f32 0.0, %v1950
  %1952 = vmatmul.bf16.gmra.mxu0 %v1683
  %v1953 = vpop.f32.mrf.mxu0
  %v1954 = vadd.f32 0.0, %v1953
  %v1955 = vpop.f32.mrf.mxu0
  %v1956 = vadd.f32 0.0, %v1955
  %1957 = vmatmul.bf16.gmra.mxu0 %v1685
  %v1958 = vpop.f32.mrf.mxu0
  %v1959 = vadd.f32 0.0, %v1958
  %v1960 = vpop.f32.mrf.mxu0
  %v1961 = vadd.f32 0.0, %v1960
  %1962 = vmatmul.bf16.gmra.mxu0 %v1687
  %v1963 = vpop.f32.mrf.mxu0
  %v1964 = vadd.f32 0.0, %v1963
  %v1965 = vpop.f32.mrf.mxu0
  %v1966 = vadd.f32 0.0, %v1965
  %1967 = vmatmul.bf16.gmra.mxu0 %v1689
  %v1968 = vpop.f32.mrf.mxu0
  %v1969 = vadd.f32 0.0, %v1968
  %v1970 = vpop.f32.mrf.mxu0
  %v1971 = vadd.f32 0.0, %v1970
  %1972 = vmatmul.bf16.gmra.mxu0 %v1691
  %v1973 = vpop.f32.mrf.mxu0
  %v1974 = vadd.f32 0.0, %v1973
  %v1975 = vpop.f32.mrf.mxu0
  %v1976 = vadd.f32 0.0, %v1975
  %1977 = vmatmul.bf16.gmra.mxu0 %v1693
  %v1978 = vpop.f32.mrf.mxu0
  %v1979 = vadd.f32 0.0, %v1978
  %v1980 = vpop.f32.mrf.mxu0
  %v1981 = vadd.f32 0.0, %v1980
  %1982 = vmatmul.bf16.gmra.mxu0 %v1695
  %v1983 = vpop.f32.mrf.mxu0
  %v1984 = vadd.f32 0.0, %v1983
  %v1985 = vpop.f32.mrf.mxu0
  %v1986 = vadd.f32 0.0, %v1985
  %1987 = vmatmul.bf16.gmra.mxu0 %v1697
  %v1988 = vpop.f32.mrf.mxu0
  %v1989 = vadd.f32 0.0, %v1988
  %v1990 = vpop.f32.mrf.mxu0
  %v1991 = vadd.f32 0.0, %v1990
  %1992 = vdwg.mxu0
  %1993 = vmatpush.bf16.msra.mxu0 0
  %1994 = vmatpush.bf16.msra.mxu0 0
  %1995 = vmatpush.bf16.msra.mxu0 0
  %1996 = vmatpush.bf16.msra.mxu0 0
  %1997 = vmatpush.bf16.msra.mxu0 0
  %1998 = vmatpush.bf16.msra.mxu0 0
  %1999 = vmatpush.bf16.msra.mxu0 %v1857
  %2000 = vmatpush.bf16.msra.mxu0 %v1770
  %2001 = vmatmul.bf16.gmra.mxu0 %v1782
  %v2002 = vpop.f32.mrf.mxu0
  %v2003 = vadd.f32 %v1869, %v2002
  %v2004 = vpop.f32.mrf.mxu0
  %v2005 = vadd.f32 %v1871, %v2004
  %2006 = vmatmul.bf16.gmra.mxu0 %v1785
  %v2007 = vpop.f32.mrf.mxu0
  %v2008 = vadd.f32 %v1874, %v2007
  %v2009 = vpop.f32.mrf.mxu0
  %v2010 = vadd.f32 %v1876, %v2009
  %2011 = vmatmul.bf16.gmra.mxu0 %v1788
  %v2012 = vpop.f32.mrf.mxu0
  %v2013 = vadd.f32 %v1879, %v2012
  %v2014 = vpop.f32.mrf.mxu0
  %v2015 = vadd.f32 %v1881, %v2014
  %2016 = vmatmul.bf16.gmra.mxu0 %v1791
  %v2017 = vpop.f32.mrf.mxu0
  %v2018 = vadd.f32 %v1884, %v2017
  %v2019 = vpop.f32.mrf.mxu0
  %v2020 = vadd.f32 %v1886, %v2019
  %2021 = vmatmul.bf16.gmra.mxu0 %v1794
  %v2022 = vpop.f32.mrf.mxu0
  %v2023 = vadd.f32 %v1889, %v2022
  %v2024 = vpop.f32.mrf.mxu0
  %v2025 = vadd.f32 %v1891, %v2024
  %2026 = vmatmul.bf16.gmra.mxu0 %v1797
  %v2027 = vpop.f32.mrf.mxu0
  %v2028 = vadd.f32 %v1894, %v2027
  %v2029 = vpop.f32.mrf.mxu0
  %v2030 = vadd.f32 %v1896, %v2029
  %2031 = vmatmul.bf16.gmra.mxu0 %v1800
  %v2032 = vpop.f32.mrf.mxu0
  %v2033 = vadd.f32 %v1899, %v2032
  %v2034 = vpop.f32.mrf.mxu0
  %v2035 = vadd.f32 %v1901, %v2034
  %2036 = vmatmul.bf16.gmra.mxu0 %v1803
  %v2037 = vpop.f32.mrf.mxu0
  %v2038 = vadd.f32 %v1904, %v2037
  %v2039 = vpop.f32.mrf.mxu0
  %v2040 = vadd.f32 %v1906, %v2039
  %2041 = vmatmul.bf16.gmra.mxu0 %v1806
  %v2042 = vpop.f32.mrf.mxu0
  %v2043 = vadd.f32 %v1909, %v2042
  %v2044 = vpop.f32.mrf.mxu0
  %v2045 = vadd.f32 %v1911, %v2044
  %2046 = vmatmul.bf16.gmra.mxu0 %v1809
  %v2047 = vpop.f32.mrf.mxu0
  %v2048 = vadd.f32 %v1914, %v2047
  %v2049 = vpop.f32.mrf.mxu0
  %v2050 = vadd.f32 %v1916, %v2049
  %2051 = vmatmul.bf16.gmra.mxu0 %v1812
  %v2052 = vpop.f32.mrf.mxu0
  %v2053 = vadd.f32 %v1919, %v2052
  %v2054 = vpop.f32.mrf.mxu0
  %v2055 = vadd.f32 %v1921, %v2054
  %2056 = vmatmul.bf16.gmra.mxu0 %v1815
  %v2057 = vpop.f32.mrf.mxu0
  %v2058 = vadd.f32 %v1924, %v2057
  %v2059 = vpop.f32.mrf.mxu0
  %v2060 = vadd.f32 %v1926, %v2059
  %2061 = vmatmul.bf16.gmra.mxu0 %v1818
  %v2062 = vpop.f32.mrf.mxu0
  %v2063 = vadd.f32 %v1929, %v2062
  %v2064 = vpop.f32.mrf.mxu0
  %v2065 = vadd.f32 %v1931, %v2064
  %2066 = vmatmul.bf16.gmra.mxu0 %v1821
  %v2067 = vpop.f32.mrf.mxu0
  %v2068 = vadd.f32 %v1934, %v2067
  %v2069 = vpop.f32.mrf.mxu0
  %v2070 = vadd.f32 %v1936, %v2069
  %2071 = vmatmul.bf16.gmra.mxu0 %v1824
  %v2072 = vpop.f32.mrf.mxu0
  %v2073 = vadd.f32 %v1939, %v2072
  %v2074 = vpop.f32.mrf.mxu0
  %v2075 = vadd.f32 %v1941, %v2074
  %2076 = vmatmul.bf16.gmra.mxu0 %v1827
  %v2077 = vpop.f32.mrf.mxu0
  %v2078 = vadd.f32 %v1944, %v2077
  %v2079 = vpop.f32.mrf.mxu0
  %v2080 = vadd.f32 %v1946, %v2079
  %2081 = vmatmul.bf16.gmra.mxu0 %v1830
  %v2082 = vpop.f32.mrf.mxu0
  %v2083 = vadd.f32 %v1949, %v2082
  %v2084 = vpop.f32.mrf.mxu0
  %v2085 = vadd.f32 %v1951, %v2084
  %2086 = vmatmul.bf16.gmra.mxu0 %v1833
  %v2087 = vpop.f32.mrf.mxu0
  %v2088 = vadd.f32 %v1954, %v2087
  %v2089 = vpop.f32.mrf.mxu0
  %v2090 = vadd.f32 %v1956, %v2089
  %2091 = vmatmul.bf16.gmra.mxu0 %v1836
  %v2092 = vpop.f32.mrf.mxu0
  %v2093 = vadd.f32 %v1959, %v2092
  %v2094 = vpop.f32.mrf.mxu0
  %v2095 = vadd.f32 %v1961, %v2094
  %2096 = vmatmul.bf16.gmra.mxu0 %v1839
  %v2097 = vpop.f32.mrf.mxu0
  %v2098 = vadd.f32 %v1964, %v2097
  %v2099 = vpop.f32.mrf.mxu0
  %v2100 = vadd.f32 %v1966, %v2099
  %2101 = vmatmul.bf16.gmra.mxu0 %v1842
  %v2102 = vpop.f32.mrf.mxu0
  %v2103 = vadd.f32 %v1969, %v2102
  %v2104 = vpop.f32.mrf.mxu0
  %v2105 = vadd.f32 %v1971, %v2104
  %2106 = vmatmul.bf16.gmra.mxu0 %v1845
  %v2107 = vpop.f32.mrf.mxu0
  %v2108 = vadd.f32 %v1974, %v2107
  %v2109 = vpop.f32.mrf.mxu0
  %v2110 = vadd.f32 %v1976, %v2109
  %2111 = vmatmul.bf16.gmra.mxu0 %v1848
  %v2112 = vpop.f32.mrf.mxu0
  %v2113 = vadd.f32 %v1979, %v2112
  %v2114 = vpop.f32.mrf.mxu0
  %v2115 = vadd.f32 %v1981, %v2114
  %2116 = vmatmul.bf16.gmra.mxu0 %v1851
  %v2117 = vpop.f32.mrf.mxu0
  %v2118 = vadd.f32 %v1984, %v2117
  %v2119 = vpop.f32.mrf.mxu0
  %v2120 = vadd.f32 %v1986, %v2119
  %2121 = vmatmul.bf16.gmra.mxu0 %v1854
  %v2122 = vpop.f32.mrf.mxu0
  %v2123 = vadd.f32 %v1989, %v2122
  %v2124 = vpop.f32.mrf.mxu0
  %v2125 = vadd.f32 %v1991, %v2124
  %2126 = vdwg.mxu0
  %v2127 = vadd.f32 %v1304, %v2003
  %v2128 = vadd.f32 %v1306, %v2005
  %v2129 = vadd.f32 %v1309, %v2008
  %v2130 = vadd.f32 %v1311, %v2010
  %v2131 = vadd.f32 %v1314, %v2013
  %v2132 = vadd.f32 %v1316, %v2015
  %v2133 = vadd.f32 %v1319, %v2018
  %v2134 = vadd.f32 %v1321, %v2020
  %v2135 = vadd.f32 %v1324, %v2023
  %v2136 = vadd.f32 %v1326, %v2025
  %v2137 = vadd.f32 %v1329, %v2028
  %v2138 = vadd.f32 %v1331, %v2030
  %v2139 = vadd.f32 %v1334, %v2033
  %v2140 = vadd.f32 %v1336, %v2035
  %v2141 = vadd.f32 %v1339, %v2038
  %v2142 = vadd.f32 %v1341, %v2040
  %v2143 = vadd.f32 %v1344, %v2043
  %v2144 = vadd.f32 %v1346, %v2045
  %v2145 = vadd.f32 %v1349, %v2048
  %v2146 = vadd.f32 %v1351, %v2050
  %v2147 = vadd.f32 %v1354, %v2053
  %v2148 = vadd.f32 %v1356, %v2055
  %v2149 = vadd.f32 %v1359, %v2058
  %v2150 = vadd.f32 %v1361, %v2060
  %v2151 = vadd.f32 %v1364, %v2063
  %v2152 = vadd.f32 %v1366, %v2065
  %v2153 = vadd.f32 %v1369, %v2068
  %v2154 = vadd.f32 %v1371, %v2070
  %v2155 = vadd.f32 %v1374, %v2073
  %v2156 = vadd.f32 %v1376, %v2075
  %v2157 = vadd.f32 %v1379, %v2078
  %v2158 = vadd.f32 %v1381, %v2080
  %v2159 = vadd.f32 %v1384, %v2083
  %v2160 = vadd.f32 %v1386, %v2085
  %v2161 = vadd.f32 %v1389, %v2088
  %v2162 = vadd.f32 %v1391, %v2090
  %v2163 = vadd.f32 %v1394, %v2093
  %v2164 = vadd.f32 %v1396, %v2095
  %v2165 = vadd.f32 %v1399, %v2098
  %v2166 = vadd.f32 %v1401, %v2100
  %v2167 = vadd.f32 %v1404, %v2103
  %v2168 = vadd.f32 %v1406, %v2105
  %v2169 = vadd.f32 %v1409, %v2108
  %v2170 = vadd.f32 %v1411, %v2110
  %v2171 = vadd.f32 %v1414, %v2113
  %v2172 = vadd.f32 %v1416, %v2115
  %v2173 = vadd.f32 %v1419, %v2118
  %v2174 = vadd.f32 %v1421, %v2120
  %v2175 = vadd.f32 %v1424, %v2123
  %v2176 = vadd.f32 %v1426, %v2125
  %v2177 = vld [vmem:[%s2] sm:$0x1]
  %v2179 = vperm.slane %v2177, 0
  %v2181 = vadd.f32 %v2127, %v2179
  %v2182 = vadd.f32 %v2128, %v2179
  %v2183 = vadd.f32 %v2129, %v2179
  %v2184 = vadd.f32 %v2130, %v2179
  %v2185 = vadd.f32 %v2131, %v2179
  %v2186 = vadd.f32 %v2132, %v2179
  %v2187 = vadd.f32 %v2133, %v2179
  %v2188 = vadd.f32 %v2134, %v2179
  %v2189 = vadd.f32 %v2135, %v2179
  %v2190 = vadd.f32 %v2136, %v2179
  %v2191 = vadd.f32 %v2137, %v2179
  %v2192 = vadd.f32 %v2138, %v2179
  %v2193 = vadd.f32 %v2139, %v2179
  %v2194 = vadd.f32 %v2140, %v2179
  %v2195 = vadd.f32 %v2141, %v2179
  %v2196 = vadd.f32 %v2142, %v2179
  %v2197 = vadd.f32 %v2143, %v2179
  %v2198 = vadd.f32 %v2144, %v2179
  %v2199 = vadd.f32 %v2145, %v2179
  %v2200 = vadd.f32 %v2146, %v2179
  %v2201 = vadd.f32 %v2147, %v2179
  %v2202 = vadd.f32 %v2148, %v2179
  %v2203 = vadd.f32 %v2149, %v2179
  %v2204 = vadd.f32 %v2150, %v2179
  %v2205 = vadd.f32 %v2151, %v2179
  %v2206 = vadd.f32 %v2152, %v2179
  %v2207 = vadd.f32 %v2153, %v2179
  %v2208 = vadd.f32 %v2154, %v2179
  %v2209 = vadd.f32 %v2155, %v2179
  %v2210 = vadd.f32 %v2156, %v2179
  %v2211 = vadd.f32 %v2157, %v2179
  %v2212 = vadd.f32 %v2158, %v2179
  %v2213 = vadd.f32 %v2159, %v2179
  %v2214 = vadd.f32 %v2160, %v2179
  %v2215 = vadd.f32 %v2161, %v2179
  %v2216 = vadd.f32 %v2162, %v2179
  %v2217 = vadd.f32 %v2163, %v2179
  %v2218 = vadd.f32 %v2164, %v2179
  %v2219 = vadd.f32 %v2165, %v2179
  %v2220 = vadd.f32 %v2166, %v2179
  %v2221 = vadd.f32 %v2167, %v2179
  %v2222 = vadd.f32 %v2168, %v2179
  %v2223 = vadd.f32 %v2169, %v2179
  %v2224 = vadd.f32 %v2170, %v2179
  %v2225 = vadd.f32 %v2171, %v2179
  %v2226 = vadd.f32 %v2172, %v2179
  %v2227 = vadd.f32 %v2173, %v2179
  %v2228 = vadd.f32 %v2174, %v2179
  %v2229 = vadd.f32 %v2175, %v2179
  %v2230 = vadd.f32 %v2176, %v2179
  %v2231 = vmax.f32 %v2181, 0.0
  %v2232 = vmax.f32 %v2182, 0.0
  %v2233 = vmax.f32 %v2183, 0.0
  %v2234 = vmax.f32 %v2184, 0.0
  %v2235 = vmax.f32 %v2185, 0.0
  %v2236 = vmax.f32 %v2186, 0.0
  %v2237 = vmax.f32 %v2187, 0.0
  %v2238 = vmax.f32 %v2188, 0.0
  %v2239 = vmax.f32 %v2189, 0.0
  %v2240 = vmax.f32 %v2190, 0.0
  %v2241 = vmax.f32 %v2191, 0.0
  %v2242 = vmax.f32 %v2192, 0.0
  %v2243 = vmax.f32 %v2193, 0.0
  %v2244 = vmax.f32 %v2194, 0.0
  %v2245 = vmax.f32 %v2195, 0.0
  %v2246 = vmax.f32 %v2196, 0.0
  %v2247 = vmax.f32 %v2197, 0.0
  %v2248 = vmax.f32 %v2198, 0.0
  %v2249 = vmax.f32 %v2199, 0.0
  %v2250 = vmax.f32 %v2200, 0.0
  %v2251 = vmax.f32 %v2201, 0.0
  %v2252 = vmax.f32 %v2202, 0.0
  %v2253 = vmax.f32 %v2203, 0.0
  %v2254 = vmax.f32 %v2204, 0.0
  %v2255 = vmax.f32 %v2205, 0.0
  %v2256 = vmax.f32 %v2206, 0.0
  %v2257 = vmax.f32 %v2207, 0.0
  %v2258 = vmax.f32 %v2208, 0.0
  %v2259 = vmax.f32 %v2209, 0.0
  %v2260 = vmax.f32 %v2210, 0.0
  %v2261 = vmax.f32 %v2211, 0.0
  %v2262 = vmax.f32 %v2212, 0.0
  %v2263 = vmax.f32 %v2213, 0.0
  %v2264 = vmax.f32 %v2214, 0.0
  %v2265 = vmax.f32 %v2215, 0.0
  %v2266 = vmax.f32 %v2216, 0.0
  %v2267 = vmax.f32 %v2217, 0.0
  %v2268 = vmax.f32 %v2218, 0.0
  %v2269 = vmax.f32 %v2219, 0.0
  %v2270 = vmax.f32 %v2220, 0.0
  %v2271 = vmax.f32 %v2221, 0.0
  %v2272 = vmax.f32 %v2222, 0.0
  %v2273 = vmax.f32 %v2223, 0.0
  %v2274 = vmax.f32 %v2224, 0.0
  %v2275 = vmax.f32 %v2225, 0.0
  %v2276 = vmax.f32 %v2226, 0.0
  %v2277 = vmax.f32 %v2227, 0.0
  %v2278 = vmax.f32 %v2228, 0.0
  %v2279 = vmax.f32 %v2229, 0.0
  %v2280 = vmax.f32 %v2230, 0.0
  %v2281 = vpack.c.bf16 %v2232, %v2231
  %v2282 = vpack.c.bf16 %v2234, %v2233
  %v2283 = vpack.c.bf16 %v2236, %v2235
  %v2284 = vpack.c.bf16 %v2238, %v2237
  %v2285 = vpack.c.bf16 %v2240, %v2239
  %v2286 = vpack.c.bf16 %v2242, %v2241
  %v2287 = vpack.c.bf16 %v2244, %v2243
  %v2288 = vpack.c.bf16 %v2246, %v2245
  %v2289 = vpack.c.bf16 %v2248, %v2247
  %v2290 = vpack.c.bf16 %v2250, %v2249
  %v2291 = vpack.c.bf16 %v2252, %v2251
  %v2292 = vpack.c.bf16 %v2254, %v2253
  %v2293 = vpack.c.bf16 %v2256, %v2255
  %v2294 = vpack.c.bf16 %v2258, %v2257
  %v2295 = vpack.c.bf16 %v2260, %v2259
  %v2296 = vpack.c.bf16 %v2262, %v2261
  %v2297 = vpack.c.bf16 %v2264, %v2263
  %v2298 = vpack.c.bf16 %v2266, %v2265
  %v2299 = vpack.c.bf16 %v2268, %v2267
  %v2300 = vpack.c.bf16 %v2270, %v2269
  %v2301 = vpack.c.bf16 %v2272, %v2271
  %v2302 = vpack.c.bf16 %v2274, %v2273
  %v2303 = vpack.c.bf16 %v2276, %v2275
  %v2304 = vpack.c.bf16 %v2278, %v2277
  %v2305 = vpack.c.bf16 %v2280, %v2279
  %v2306 = vld [vmem:[%s3] sm:$0xf]
  %v2307 = vld [vmem:[%s3 + $0x4] sm:$0xf]
  %v2308 = vld [vmem:[%s3 + $0x8] sm:$0xf]
  %v2309 = vld [vmem:[%s3 + $0xc] sm:$0xf]
  %v2310 = vld [vmem:[%s3 + $0x10] sm:$0xf]
  %v2311 = vld [vmem:[%s3 + $0x14] sm:$0xf]
  %v2312 = vld [vmem:[%s3 + $0x18] sm:$0xf]
  %v2313 = vld [vmem:[%s3 + $0x1c] sm:$0xf]
  %v2314 = vld [vmem:[%s3 + $0x20] sm:$0xf]
  %v2315 = vld [vmem:[%s3 + $0x24] sm:$0xf]
  %v2316 = vld [vmem:[%s3 + $0x28] sm:$0xf]
  %v2317 = vld [vmem:[%s3 + $0x2c] sm:$0xf]
  %v2318 = vld [vmem:[%s3 + $0x30] sm:$0xf]
  %v2319 = vld [vmem:[%s3 + $0x34] sm:$0xf]
  %v2320 = vld [vmem:[%s3 + $0x38] sm:$0xf]
  %v2321 = vld [vmem:[%s3 + $0x3c] sm:$0xf]
  %v2322 = vld [vmem:[%s4] sm:$0x1]
  %v2324 = vperm.slane %v2322, 0
  %v2342 = vunpack.c.l.b16 %v2306
  %v2343 = vunpack.c.l.b16 %v2307
  %v2344 = vunpack.c.l.b16 %v2308
  %v2345 = vunpack.c.l.b16 %v2309
  %v2346 = vunpack.c.l.b16 %v2310
  %v2347 = vunpack.c.l.b16 %v2311
  %v2348 = vunpack.c.l.b16 %v2312
  %v2349 = vunpack.c.l.b16 %v2313
  %v2350 = vunpack.c.l.b16 %v2314
  %v2351 = vunpack.c.l.b16 %v2315
  %v2352 = vunpack.c.l.b16 %v2316
  %v2353 = vunpack.c.l.b16 %v2317
  %v2354 = vunpack.c.l.b16 %v2318
  %v2355 = vunpack.c.l.b16 %v2319
  %v2356 = vunpack.c.l.b16 %v2320
  %v2357 = vunpack.c.l.b16 %v2321
  %v2358 = vpack.c.b16 %v2343, %v2342
  %v2359 = vpack.c.b16 %v2345, %v2344
  %v2360 = vpack.c.b16 %v2347, %v2346
  %v2361 = vpack.c.b16 %v2349, %v2348
  %v2362 = vpack.c.b16 %v2351, %v2350
  %v2363 = vpack.c.b16 %v2353, %v2352
  %v2364 = vpack.c.b16 %v2355, %v2354
  %v2365 = vpack.c.b16 %v2357, %v2356
  %2374 = vmatpush.bf16.msra.mxu0 %v2365
  %2375 = vmatpush.bf16.msra.mxu0 %v2364
  %2376 = vmatpush.bf16.msra.mxu0 %v2363
  %2377 = vmatpush.bf16.msra.mxu0 %v2362
  %2378 = vmatpush.bf16.msra.mxu0 %v2361
  %2379 = vmatpush.bf16.msra.mxu0 %v2360
  %2380 = vmatpush.bf16.msra.mxu0 %v2359
  %2381 = vmatpush.bf16.msra.mxu0 %v2358
  %2382 = vmatmul.bf16.gmra.mxu0 %v2281
  %v2383 = vpop.f32.mrf.mxu0
  %v2384 = vadd.f32 %v2324, %v2383
  %v2385 = vpop.f32.mrf.mxu0
  %v2386 = vadd.f32 %v2324, %v2385
  %2387 = vmatmul.bf16.gmra.mxu0 %v2282
  %v2388 = vpop.f32.mrf.mxu0
  %v2389 = vadd.f32 %v2324, %v2388
  %v2390 = vpop.f32.mrf.mxu0
  %v2391 = vadd.f32 %v2324, %v2390
  %2392 = vmatmul.bf16.gmra.mxu0 %v2283
  %v2393 = vpop.f32.mrf.mxu0
  %v2394 = vadd.f32 %v2324, %v2393
  %v2395 = vpop.f32.mrf.mxu0
  %v2396 = vadd.f32 %v2324, %v2395
  %2397 = vmatmul.bf16.gmra.mxu0 %v2284
  %v2398 = vpop.f32.mrf.mxu0
  %v2399 = vadd.f32 %v2324, %v2398
  %v2400 = vpop.f32.mrf.mxu0
  %v2401 = vadd.f32 %v2324, %v2400
  %2402 = vmatmul.bf16.gmra.mxu0 %v2285
  %v2403 = vpop.f32.mrf.mxu0
  %v2404 = vadd.f32 %v2324, %v2403
  %v2405 = vpop.f32.mrf.mxu0
  %v2406 = vadd.f32 %v2324, %v2405
  %2407 = vmatmul.bf16.gmra.mxu0 %v2286
  %v2408 = vpop.f32.mrf.mxu0
  %v2409 = vadd.f32 %v2324, %v2408
  %v2410 = vpop.f32.mrf.mxu0
  %v2411 = vadd.f32 %v2324, %v2410
  %2412 = vmatmul.bf16.gmra.mxu0 %v2287
  %v2413 = vpop.f32.mrf.mxu0
  %v2414 = vadd.f32 %v2324, %v2413
  %v2415 = vpop.f32.mrf.mxu0
  %v2416 = vadd.f32 %v2324, %v2415
  %2417 = vmatmul.bf16.gmra.mxu0 %v2288
  %v2418 = vpop.f32.mrf.mxu0
  %v2419 = vadd.f32 %v2324, %v2418
  %v2420 = vpop.f32.mrf.mxu0
  %v2421 = vadd.f32 %v2324, %v2420
  %2422 = vmatmul.bf16.gmra.mxu0 %v2289
  %v2423 = vpop.f32.mrf.mxu0
  %v2424 = vadd.f32 %v2324, %v2423
  %v2425 = vpop.f32.mrf.mxu0
  %v2426 = vadd.f32 %v2324, %v2425
  %2427 = vmatmul.bf16.gmra.mxu0 %v2290
  %v2428 = vpop.f32.mrf.mxu0
  %v2429 = vadd.f32 %v2324, %v2428
  %v2430 = vpop.f32.mrf.mxu0
  %v2431 = vadd.f32 %v2324, %v2430
  %2432 = vmatmul.bf16.gmra.mxu0 %v2291
  %v2433 = vpop.f32.mrf.mxu0
  %v2434 = vadd.f32 %v2324, %v2433
  %v2435 = vpop.f32.mrf.mxu0
  %v2436 = vadd.f32 %v2324, %v2435
  %2437 = vmatmul.bf16.gmra.mxu0 %v2292
  %v2438 = vpop.f32.mrf.mxu0
  %v2439 = vadd.f32 %v2324, %v2438
  %v2440 = vpop.f32.mrf.mxu0
  %v2441 = vadd.f32 %v2324, %v2440
  %2442 = vmatmul.bf16.gmra.mxu0 %v2293
  %v2443 = vpop.f32.mrf.mxu0
  %v2444 = vadd.f32 %v2324, %v2443
  %v2445 = vpop.f32.mrf.mxu0
  %v2446 = vadd.f32 %v2324, %v2445
  %2447 = vmatmul.bf16.gmra.mxu0 %v2294
  %v2448 = vpop.f32.mrf.mxu0
  %v2449 = vadd.f32 %v2324, %v2448
  %v2450 = vpop.f32.mrf.mxu0
  %v2451 = vadd.f32 %v2324, %v2450
  %2452 = vmatmul.bf16.gmra.mxu0 %v2295
  %v2453 = vpop.f32.mrf.mxu0
  %v2454 = vadd.f32 %v2324, %v2453
  %v2455 = vpop.f32.mrf.mxu0
  %v2456 = vadd.f32 %v2324, %v2455
  %2457 = vmatmul.bf16.gmra.mxu0 %v2296
  %v2458 = vpop.f32.mrf.mxu0
  %v2459 = vadd.f32 %v2324, %v2458
  %v2460 = vpop.f32.mrf.mxu0
  %v2461 = vadd.f32 %v2324, %v2460
  %2462 = vmatmul.bf16.gmra.mxu0 %v2297
  %v2463 = vpop.f32.mrf.mxu0
  %v2464 = vadd.f32 %v2324, %v2463
  %v2465 = vpop.f32.mrf.mxu0
  %v2466 = vadd.f32 %v2324, %v2465
  %2467 = vmatmul.bf16.gmra.mxu0 %v2298
  %v2468 = vpop.f32.mrf.mxu0
  %v2469 = vadd.f32 %v2324, %v2468
  %v2470 = vpop.f32.mrf.mxu0
  %v2471 = vadd.f32 %v2324, %v2470
  %2472 = vmatmul.bf16.gmra.mxu0 %v2299
  %v2473 = vpop.f32.mrf.mxu0
  %v2474 = vadd.f32 %v2324, %v2473
  %v2475 = vpop.f32.mrf.mxu0
  %v2476 = vadd.f32 %v2324, %v2475
  %2477 = vmatmul.bf16.gmra.mxu0 %v2300
  %v2478 = vpop.f32.mrf.mxu0
  %v2479 = vadd.f32 %v2324, %v2478
  %v2480 = vpop.f32.mrf.mxu0
  %v2481 = vadd.f32 %v2324, %v2480
  %2482 = vmatmul.bf16.gmra.mxu0 %v2301
  %v2483 = vpop.f32.mrf.mxu0
  %v2484 = vadd.f32 %v2324, %v2483
  %v2485 = vpop.f32.mrf.mxu0
  %v2486 = vadd.f32 %v2324, %v2485
  %2487 = vmatmul.bf16.gmra.mxu0 %v2302
  %v2488 = vpop.f32.mrf.mxu0
  %v2489 = vadd.f32 %v2324, %v2488
  %v2490 = vpop.f32.mrf.mxu0
  %v2491 = vadd.f32 %v2324, %v2490
  %2492 = vmatmul.bf16.gmra.mxu0 %v2303
  %v2493 = vpop.f32.mrf.mxu0
  %v2494 = vadd.f32 %v2324, %v2493
  %v2495 = vpop.f32.mrf.mxu0
  %v2496 = vadd.f32 %v2324, %v2495
  %2497 = vmatmul.bf16.gmra.mxu0 %v2304
  %v2498 = vpop.f32.mrf.mxu0
  %v2499 = vadd.f32 %v2324, %v2498
  %v2500 = vpop.f32.mrf.mxu0
  %v2501 = vadd.f32 %v2324, %v2500
  %2502 = vmatmul.bf16.gmra.mxu0 %v2305
  %v2503 = vpop.f32.mrf.mxu0
  %v2504 = vadd.f32 %v2324, %v2503
  %v2505 = vpop.f32.mrf.mxu0
  %v2506 = vadd.f32 %v2324, %v2505
  %2507 = vdwg.mxu0
  %v2508 = vmax.f32 %v2384, 0.0
  %v2509 = vmax.f32 %v2386, 0.0
  %v2510 = vmax.f32 %v2389, 0.0
  %v2511 = vmax.f32 %v2391, 0.0
  %v2512 = vmax.f32 %v2394, 0.0
  %v2513 = vmax.f32 %v2396, 0.0
  %v2514 = vmax.f32 %v2399, 0.0
  %v2515 = vmax.f32 %v2401, 0.0
  %v2516 = vmax.f32 %v2404, 0.0
  %v2517 = vmax.f32 %v2406, 0.0
  %v2518 = vmax.f32 %v2409, 0.0
  %v2519 = vmax.f32 %v2411, 0.0
  %v2520 = vmax.f32 %v2414, 0.0
  %v2521 = vmax.f32 %v2416, 0.0
  %v2522 = vmax.f32 %v2419, 0.0
  %v2523 = vmax.f32 %v2421, 0.0
  %v2524 = vmax.f32 %v2424, 0.0
  %v2525 = vmax.f32 %v2426, 0.0
  %v2526 = vmax.f32 %v2429, 0.0
  %v2527 = vmax.f32 %v2431, 0.0
  %v2528 = vmax.f32 %v2434, 0.0
  %v2529 = vmax.f32 %v2436, 0.0
  %v2530 = vmax.f32 %v2439, 0.0
  %v2531 = vmax.f32 %v2441, 0.0
  %v2532 = vmax.f32 %v2444, 0.0
  %v2533 = vmax.f32 %v2446, 0.0
  %v2534 = vmax.f32 %v2449, 0.0
  %v2535 = vmax.f32 %v2451, 0.0
  %v2536 = vmax.f32 %v2454, 0.0
  %v2537 = vmax.f32 %v2456, 0.0
  %v2538 = vmax.f32 %v2459, 0.0
  %v2539 = vmax.f32 %v2461, 0.0
  %v2540 = vmax.f32 %v2464, 0.0
  %v2541 = vmax.f32 %v2466, 0.0
  %v2542 = vmax.f32 %v2469, 0.0
  %v2543 = vmax.f32 %v2471, 0.0
  %v2544 = vmax.f32 %v2474, 0.0
  %v2545 = vmax.f32 %v2476, 0.0
  %v2546 = vmax.f32 %v2479, 0.0
  %v2547 = vmax.f32 %v2481, 0.0
  %v2548 = vmax.f32 %v2484, 0.0
  %v2549 = vmax.f32 %v2486, 0.0
  %v2550 = vmax.f32 %v2489, 0.0
  %v2551 = vmax.f32 %v2491, 0.0
  %v2552 = vmax.f32 %v2494, 0.0
  %v2553 = vmax.f32 %v2496, 0.0
  %v2554 = vmax.f32 %v2499, 0.0
  %v2555 = vmax.f32 %v2501, 0.0
  %v2556 = vmax.f32 %v2504, 0.0
  %v2557 = vmax.f32 %v2506, 0.0
  %v2558 = vpack.c.bf16 %v2508, %v2508
  %v2559 = vpack.c.bf16 %v2509, %v2509
  %v2560 = vpack.c.bf16 %v2510, %v2510
  %v2561 = vpack.c.bf16 %v2511, %v2511
  %v2562 = vpack.c.bf16 %v2512, %v2512
  %v2563 = vpack.c.bf16 %v2513, %v2513
  %v2564 = vpack.c.bf16 %v2514, %v2514
  %v2565 = vpack.c.bf16 %v2515, %v2515
  %v2566 = vpack.c.bf16 %v2516, %v2516
  %v2567 = vpack.c.bf16 %v2517, %v2517
  %v2568 = vpack.c.bf16 %v2518, %v2518
  %v2569 = vpack.c.bf16 %v2519, %v2519
  %v2570 = vpack.c.bf16 %v2520, %v2520
  %v2571 = vpack.c.bf16 %v2521, %v2521
  %v2572 = vpack.c.bf16 %v2522, %v2522
  %v2573 = vpack.c.bf16 %v2523, %v2523
  %v2574 = vpack.c.bf16 %v2524, %v2524
  %v2575 = vpack.c.bf16 %v2525, %v2525
  %v2576 = vpack.c.bf16 %v2526, %v2526
  %v2577 = vpack.c.bf16 %v2527, %v2527
  %v2578 = vpack.c.bf16 %v2528, %v2528
  %v2579 = vpack.c.bf16 %v2529, %v2529
  %v2580 = vpack.c.bf16 %v2530, %v2530
  %v2581 = vpack.c.bf16 %v2531, %v2531
  %v2582 = vpack.c.bf16 %v2532, %v2532
  %v2583 = vpack.c.bf16 %v2533, %v2533
  %v2584 = vpack.c.bf16 %v2534, %v2534
  %v2585 = vpack.c.bf16 %v2535, %v2535
  %v2586 = vpack.c.bf16 %v2536, %v2536
  %v2587 = vpack.c.bf16 %v2537, %v2537
  %v2588 = vpack.c.bf16 %v2538, %v2538
  %v2589 = vpack.c.bf16 %v2539, %v2539
  %v2590 = vpack.c.bf16 %v2540, %v2540
  %v2591 = vpack.c.bf16 %v2541, %v2541
  %v2592 = vpack.c.bf16 %v2542, %v2542
  %v2593 = vpack.c.bf16 %v2543, %v2543
  %v2594 = vpack.c.bf16 %v2544, %v2544
  %v2595 = vpack.c.bf16 %v2545, %v2545
  %v2596 = vpack.c.bf16 %v2546, %v2546
  %v2597 = vpack.c.bf16 %v2547, %v2547
  %v2598 = vpack.c.bf16 %v2548, %v2548
  %v2599 = vpack.c.bf16 %v2549, %v2549
  %v2600 = vpack.c.bf16 %v2550, %v2550
  %v2601 = vpack.c.bf16 %v2551, %v2551
  %v2602 = vpack.c.bf16 %v2552, %v2552
  %v2603 = vpack.c.bf16 %v2553, %v2553
  %v2604 = vpack.c.bf16 %v2554, %v2554
  %v2605 = vpack.c.bf16 %v2555, %v2555
  %v2606 = vpack.c.bf16 %v2556, %v2556
  %v2607 = vpack.c.bf16 %v2557, %v2557
  %v2608 = vld [vmem:[%s5] sm:$0xf]
  %v2609 = vld [vmem:[%s5 + $0x4] sm:$0xf]
  %v2610 = vld [vmem:[%s5 + $0x8] sm:$0xf]
  %v2611 = vld [vmem:[%s5 + $0xc] sm:$0xf]
  %v2612 = vld [vmem:[%s5 + $0x10] sm:$0xf]
  %v2613 = vld [vmem:[%s5 + $0x14] sm:$0xf]
  %v2614 = vld [vmem:[%s5 + $0x18] sm:$0xf]
  %v2615 = vld [vmem:[%s5 + $0x1c] sm:$0xf]
  %v2616 = vld [vmem:[%s5 + $0x20] sm:$0xf]
  %v2617 = vld [vmem:[%s5 + $0x24] sm:$0xf]
  %v2618 = vld [vmem:[%s5 + $0x28] sm:$0xf]
  %v2619 = vld [vmem:[%s5 + $0x2c] sm:$0xf]
  %v2620 = vld [vmem:[%s5 + $0x30] sm:$0xf]
  %v2621 = vld [vmem:[%s5 + $0x34] sm:$0xf]
  %v2622 = vld [vmem:[%s5 + $0x38] sm:$0xf]
  %v2623 = vld [vmem:[%s5 + $0x3c] sm:$0xf]
  %v2624 = vld [vmem:[%s5 + $0x40] sm:$0xf]
  %v2625 = vld [vmem:[%s5 + $0x44] sm:$0xf]
  %v2626 = vld [vmem:[%s5 + $0x48] sm:$0xf]
  %v2627 = vld [vmem:[%s5 + $0x4c] sm:$0xf]
  %v2628 = vld [vmem:[%s5 + $0x50] sm:$0xf]
  %v2629 = vld [vmem:[%s5 + $0x54] sm:$0xf]
  %v2630 = vld [vmem:[%s5 + $0x58] sm:$0xf]
  %v2631 = vld [vmem:[%s5 + $0x5c] sm:$0xf]
  %v2632 = vld [vmem:[%s5 + $0x60] sm:$0xf]
  %v2633 = vld [vmem:[%s5 + $0x64] sm:$0xf]
  %v2634 = vld [vmem:[%s5 + $0x68] sm:$0xf]
  %v2635 = vld [vmem:[%s5 + $0x6c] sm:$0xf]
  %v2636 = vld [vmem:[%s5 + $0x70] sm:$0xf]
  %v2637 = vld [vmem:[%s5 + $0x74] sm:$0xf]
  %v2638 = vld [vmem:[%s5 + $0x78] sm:$0xf]
  %v2639 = vld [vmem:[%s5 + $0x7c] sm:$0xf]
  %v2640 = vld [vmem:[%s5 + $0x80] sm:$0xf]
  %v2641 = vld [vmem:[%s5 + $0x84] sm:$0xf]
  %v2642 = vld [vmem:[%s5 + $0x88] sm:$0xf]
  %v2643 = vld [vmem:[%s5 + $0x8c] sm:$0xf]
  %v2644 = vld [vmem:[%s5 + $0x90] sm:$0xf]
  %v2645 = vld [vmem:[%s5 + $0x94] sm:$0xf]
  %v2646 = vld [vmem:[%s5 + $0x98] sm:$0xf]
  %v2647 = vld [vmem:[%s5 + $0x9c] sm:$0xf]
  %v2648 = vld [vmem:[%s5 + $0xa0] sm:$0xf]
  %v2649 = vld [vmem:[%s5 + $0xa4] sm:$0xf]
  %v2650 = vld [vmem:[%s5 + $0xa8] sm:$0xf]
  %v2651 = vld [vmem:[%s5 + $0xac] sm:$0xf]
  %v2652 = vld [vmem:[%s5 + $0xb0] sm:$0xf]
  %v2653 = vld [vmem:[%s5 + $0xb4] sm:$0xf]
  %v2654 = vld [vmem:[%s5 + $0xb8] sm:$0xf]
  %v2655 = vld [vmem:[%s5 + $0xbc] sm:$0xf]
  %v2656 = vld [vmem:[%s5 + $0xc0] sm:$0xf]
  %v2657 = vld [vmem:[%s5 + $0xc4] sm:$0xf]
  %v2658 = vld [vmem:[%s5 + $0xc8] sm:$0xf]
  %v2659 = vld [vmem:[%s5 + $0xcc] sm:$0xf]
  %v2660 = vld [vmem:[%s5 + $0xd0] sm:$0xf]
  %v2661 = vld [vmem:[%s5 + $0xd4] sm:$0xf]
  %v2662 = vld [vmem:[%s5 + $0xd8] sm:$0xf]
  %v2663 = vld [vmem:[%s5 + $0xdc] sm:$0xf]
  %v2664 = vld [vmem:[%s5 + $0xe0] sm:$0xf]
  %v2665 = vld [vmem:[%s5 + $0xe4] sm:$0xf]
  %v2666 = vld [vmem:[%s5 + $0xe8] sm:$0xf]
  %v2667 = vld [vmem:[%s5 + $0xec] sm:$0xf]
  %v2668 = vld [vmem:[%s5 + $0xf0] sm:$0xf]
  %v2669 = vld [vmem:[%s5 + $0xf4] sm:$0xf]
  %v2670 = vld [vmem:[%s5 + $0xf8] sm:$0xf]
  %v2671 = vld [vmem:[%s5 + $0xfc] sm:$0xf]
  %v2672 = vld [vmem:[%s5 + $0x100] sm:$0xf]
  %v2673 = vld [vmem:[%s5 + $0x104] sm:$0xf]
  %v2674 = vld [vmem:[%s5 + $0x108] sm:$0xf]
  %v2675 = vld [vmem:[%s5 + $0x10c] sm:$0xf]
  %v2676 = vld [vmem:[%s5 + $0x110] sm:$0xf]
  %v2677 = vld [vmem:[%s5 + $0x114] sm:$0xf]
  %v2678 = vld [vmem:[%s5 + $0x118] sm:$0xf]
  %v2679 = vld [vmem:[%s5 + $0x11c] sm:$0xf]
  %v2680 = vld [vmem:[%s5 + $0x120] sm:$0xf]
  %v2681 = vld [vmem:[%s5 + $0x124] sm:$0xf]
  %v2682 = vld [vmem:[%s5 + $0x128] sm:$0xf]
  %v2683 = vld [vmem:[%s5 + $0x12c] sm:$0xf]
  %v2684 = vld [vmem:[%s5 + $0x130] sm:$0xf]
  %v2685 = vld [vmem:[%s5 + $0x134] sm:$0xf]
  %v2686 = vld [vmem:[%s5 + $0x138] sm:$0xf]
  %v2687 = vld [vmem:[%s5 + $0x13c] sm:$0xf]
  %v2688 = vld [vmem:[%s5 + $0x140] sm:$0xf]
  %v2689 = vld [vmem:[%s5 + $0x144] sm:$0xf]
  %v2690 = vld [vmem:[%s5 + $0x148] sm:$0xf]
  %v2691 = vld [vmem:[%s5 + $0x14c] sm:$0xf]
  %v2692 = vld [vmem:[%s5 + $0x150] sm:$0xf]
  %v2693 = vld [vmem:[%s5 + $0x154] sm:$0xf]
  %v2694 = vld [vmem:[%s5 + $0x158] sm:$0xf]
  %v2695 = vld [vmem:[%s5 + $0x15c] sm:$0xf]
  %v2696 = vld [vmem:[%s5 + $0x160] sm:$0xf]
  %v2697 = vld [vmem:[%s5 + $0x164] sm:$0xf]
  %v2698 = vld [vmem:[%s5 + $0x168] sm:$0xf]
  %v2699 = vld [vmem:[%s5 + $0x16c] sm:$0xf]
  %v2700 = vld [vmem:[%s5 + $0x170] sm:$0xf]
  %v2701 = vld [vmem:[%s5 + $0x174] sm:$0xf]
  %v2702 = vld [vmem:[%s5 + $0x178] sm:$0xf]
  %v2703 = vld [vmem:[%s5 + $0x17c] sm:$0xf]
  %v2704 = vld [vmem:[%s5 + $0x180] sm:$0xf]
  %v2705 = vld [vmem:[%s5 + $0x184] sm:$0xf]
  %v2706 = vld [vmem:[%s5 + $0x188] sm:$0xf]
  %v2707 = vld [vmem:[%s5 + $0x18c] sm:$0xf]
  %v2708 = vld [vmem:[%s5 + $0x190] sm:$0xf]
  %v2709 = vld [vmem:[%s5 + $0x194] sm:$0xf]
  %v2710 = vld [vmem:[%s5 + $0x198] sm:$0xf]
  %v2711 = vld [vmem:[%s5 + $0x19c] sm:$0xf]
  %v2712 = vld [vmem:[%s5 + $0x1a0] sm:$0xf]
  %v2713 = vld [vmem:[%s5 + $0x1a4] sm:$0xf]
  %v2714 = vld [vmem:[%s5 + $0x1a8] sm:$0xf]
  %v2715 = vld [vmem:[%s5 + $0x1ac] sm:$0xf]
  %v2716 = vld [vmem:[%s5 + $0x1b0] sm:$0xf]
  %v2717 = vld [vmem:[%s5 + $0x1b4] sm:$0xf]
  %v2718 = vld [vmem:[%s5 + $0x1b8] sm:$0xf]
  %v2719 = vld [vmem:[%s5 + $0x1bc] sm:$0xf]
  %v2720 = vld [vmem:[%s5 + $0x1c0] sm:$0xf]
  %v2721 = vld [vmem:[%s5 + $0x1c4] sm:$0xf]
  %v2722 = vld [vmem:[%s5 + $0x1c8] sm:$0xf]
  %v2723 = vld [vmem:[%s5 + $0x1cc] sm:$0xf]
  %v2724 = vld [vmem:[%s5 + $0x1d0] sm:$0xf]
  %v2725 = vld [vmem:[%s5 + $0x1d4] sm:$0xf]
  %v2726 = vld [vmem:[%s5 + $0x1d8] sm:$0xf]
  %v2727 = vld [vmem:[%s5 + $0x1dc] sm:$0xf]
  %v2728 = vld [vmem:[%s5 + $0x1e0] sm:$0xf]
  %v2729 = vld [vmem:[%s5 + $0x1e4] sm:$0xf]
  %v2730 = vld [vmem:[%s5 + $0x1e8] sm:$0xf]
  %v2731 = vld [vmem:[%s5 + $0x1ec] sm:$0xf]
  %v2732 = vld [vmem:[%s5 + $0x1f0] sm:$0xf]
  %v2733 = vld [vmem:[%s5 + $0x1f4] sm:$0xf]
  %v2734 = vld [vmem:[%s5 + $0x1f8] sm:$0xf]
  %v2735 = vld [vmem:[%s5 + $0x1fc] sm:$0xf]
  %v2736 = vld [vmem:[%s5 + $0x200] sm:$0xf]
  %v2737 = vld [vmem:[%s5 + $0x204] sm:$0xf]
  %v2738 = vld [vmem:[%s5 + $0x208] sm:$0xf]
  %v2739 = vld [vmem:[%s5 + $0x20c] sm:$0xf]
  %v2740 = vld [vmem:[%s5 + $0x210] sm:$0xf]
  %v2741 = vld [vmem:[%s5 + $0x214] sm:$0xf]
  %v2742 = vld [vmem:[%s5 + $0x218] sm:$0xf]
  %v2743 = vld [vmem:[%s5 + $0x21c] sm:$0xf]
  %v2744 = vld [vmem:[%s5 + $0x220] sm:$0xf]
  %v2745 = vld [vmem:[%s5 + $0x224] sm:$0xf]
  %v2746 = vld [vmem:[%s5 + $0x228] sm:$0xf]
  %v2747 = vld [vmem:[%s5 + $0x22c] sm:$0xf]
  %v2748 = vld [vmem:[%s5 + $0x230] sm:$0xf]
  %v2749 = vld [vmem:[%s5 + $0x234] sm:$0xf]
  %v2750 = vld [vmem:[%s5 + $0x238] sm:$0xf]
  %v2751 = vld [vmem:[%s5 + $0x23c] sm:$0xf]
  %v2752 = vld [vmem:[%s5 + $0x240] sm:$0xf]
  %v2753 = vld [vmem:[%s5 + $0x244] sm:$0xf]
  %v2754 = vld [vmem:[%s5 + $0x248] sm:$0xf]
  %v2755 = vld [vmem:[%s5 + $0x24c] sm:$0xf]
  %v2756 = vld [vmem:[%s5 + $0x250] sm:$0xf]
  %v2757 = vld [vmem:[%s5 + $0x254] sm:$0xf]
  %v2758 = vld [vmem:[%s5 + $0x258] sm:$0xf]
  %v2759 = vld [vmem:[%s5 + $0x25c] sm:$0xf]
  %v2760 = vld [vmem:[%s5 + $0x260] sm:$0xf]
  %v2761 = vld [vmem:[%s5 + $0x264] sm:$0xf]
  %v2762 = vld [vmem:[%s5 + $0x268] sm:$0xf]
  %v2763 = vld [vmem:[%s5 + $0x26c] sm:$0xf]
  %v2764 = vld [vmem:[%s5 + $0x270] sm:$0xf]
  %v2765 = vld [vmem:[%s5 + $0x274] sm:$0xf]
  %v2766 = vld [vmem:[%s5 + $0x278] sm:$0xf]
  %v2767 = vld [vmem:[%s5 + $0x27c] sm:$0xf]
  %v2768 = vld [vmem:[%s5 + $0x280] sm:$0xf]
  %v2769 = vld [vmem:[%s5 + $0x284] sm:$0xf]
  %v2770 = vld [vmem:[%s5 + $0x288] sm:$0xf]
  %v2771 = vld [vmem:[%s5 + $0x28c] sm:$0xf]
  %v2772 = vld [vmem:[%s5 + $0x290] sm:$0xf]
  %v2773 = vld [vmem:[%s5 + $0x294] sm:$0xf]
  %v2774 = vld [vmem:[%s5 + $0x298] sm:$0xf]
  %v2775 = vld [vmem:[%s5 + $0x29c] sm:$0xf]
  %v2776 = vld [vmem:[%s5 + $0x2a0] sm:$0xf]
  %v2777 = vld [vmem:[%s5 + $0x2a4] sm:$0xf]
  %v2778 = vld [vmem:[%s5 + $0x2a8] sm:$0xf]
  %v2779 = vld [vmem:[%s5 + $0x2ac] sm:$0xf]
  %v2780 = vld [vmem:[%s5 + $0x2b0] sm:$0xf]
  %v2781 = vld [vmem:[%s5 + $0x2b4] sm:$0xf]
  %v2782 = vld [vmem:[%s5 + $0x2b8] sm:$0xf]
  %v2783 = vld [vmem:[%s5 + $0x2bc] sm:$0xf]
  %v2784 = vld [vmem:[%s5 + $0x2c0] sm:$0xf]
  %v2785 = vld [vmem:[%s5 + $0x2c4] sm:$0xf]
  %v2786 = vld [vmem:[%s5 + $0x2c8] sm:$0xf]
  %v2787 = vld [vmem:[%s5 + $0x2cc] sm:$0xf]
  %v2788 = vld [vmem:[%s5 + $0x2d0] sm:$0xf]
  %v2789 = vld [vmem:[%s5 + $0x2d4] sm:$0xf]
  %v2790 = vld [vmem:[%s5 + $0x2d8] sm:$0xf]
  %v2791 = vld [vmem:[%s5 + $0x2dc] sm:$0xf]
  %v2792 = vld [vmem:[%s5 + $0x2e0] sm:$0xf]
  %v2793 = vld [vmem:[%s5 + $0x2e4] sm:$0xf]
  %v2794 = vld [vmem:[%s5 + $0x2e8] sm:$0xf]
  %v2795 = vld [vmem:[%s5 + $0x2ec] sm:$0xf]
  %v2796 = vld [vmem:[%s5 + $0x2f0] sm:$0xf]
  %v2797 = vld [vmem:[%s5 + $0x2f4] sm:$0xf]
  %v2798 = vld [vmem:[%s5 + $0x2f8] sm:$0xf]
  %v2799 = vld [vmem:[%s5 + $0x2fc] sm:$0xf]
  %v2800 = vld [vmem:[%s5 + $0x300] sm:$0xf]
  %v2801 = vld [vmem:[%s5 + $0x304] sm:$0xf]
  %v2802 = vld [vmem:[%s5 + $0x308] sm:$0xf]
  %v2803 = vld [vmem:[%s5 + $0x30c] sm:$0xf]
  %v2804 = vld [vmem:[%s5 + $0x310] sm:$0xf]
  %v2805 = vld [vmem:[%s5 + $0x314] sm:$0xf]
  %v2806 = vld [vmem:[%s5 + $0x318] sm:$0xf]
  %v2807 = vld [vmem:[%s5 + $0x31c] sm:$0xf]
  %v2810 = vunpack.c.l.b16 %v2558
  %v2811 = vunpack.c.l.b16 %v2559
  %v2812 = vpack.c.b16 %v2811, %v2810
  %v2821 = vunpack.c.l.b16 %v2608
  %v2822 = vunpack.c.l.b16 %v2609
  %v2823 = vunpack.c.l.b16 %v2610
  %v2824 = vunpack.c.l.b16 %v2611
  %v2825 = vunpack.c.l.b16 %v2612
  %v2826 = vunpack.c.l.b16 %v2613
  %v2827 = vunpack.c.l.b16 %v2614
  %v2828 = vunpack.c.l.b16 %v2615
  %v2829 = vpack.c.b16 %v2822, %v2821
  %v2830 = vpack.c.b16 %v2824, %v2823
  %v2831 = vpack.c.b16 %v2826, %v2825
  %v2832 = vpack.c.b16 %v2828, %v2827
  %vm2837 = vcmask 523264
  %v2839 = vsel %vm2837, %v2812, 0
  %2841 = vmatpush.bf16.msra.mxu0 0
  %2842 = vmatpush.bf16.msra.mxu0 0
  %2843 = vmatpush.bf16.msra.mxu0 0
  %2844 = vmatpush.bf16.msra.mxu0 0
  %2845 = vmatpush.bf16.msra.mxu0 %v2832
  %2846 = vmatpush.bf16.msra.mxu0 %v2831
  %2847 = vmatpush.bf16.msra.mxu0 %v2830
  %2848 = vmatpush.bf16.msra.mxu0 %v2829
  %2849 = vmatmul.bf16.gmra.mxu0 %v2839
  %v2850 = vpop.f32.mrf.mxu0
  %v2851 = vadd.f32 0.0, %v2850
  %v2852 = vpop.f32.mrf.mxu0
  %v2853 = vadd.f32 0.0, %v2852
  %2854 = vdwg.mxu0
  %v2857 = vunpack.c.l.b16 %v2560
  %v2858 = vunpack.c.l.b16 %v2561
  %v2859 = vpack.c.b16 %v2858, %v2857
  %v2868 = vunpack.c.l.b16 %v2616
  %v2869 = vunpack.c.l.b16 %v2617
  %v2870 = vunpack.c.l.b16 %v2618
  %v2871 = vunpack.c.l.b16 %v2619
  %v2872 = vunpack.c.l.b16 %v2620
  %v2873 = vunpack.c.l.b16 %v2621
  %v2874 = vunpack.c.l.b16 %v2622
  %v2875 = vunpack.c.l.b16 %v2623
  %v2876 = vpack.c.b16 %v2869, %v2868
  %v2877 = vpack.c.b16 %v2871, %v2870
  %v2878 = vpack.c.b16 %v2873, %v2872
  %v2879 = vpack.c.b16 %v2875, %v2874
  %v2885 = vsel %vm2837, %v2859, 0
  %2887 = vmatpush.bf16.msra.mxu0 0
  %2888 = vmatpush.bf16.msra.mxu0 0
  %2889 = vmatpush.bf16.msra.mxu0 0
  %2890 = vmatpush.bf16.msra.mxu0 0
  %2891 = vmatpush.bf16.msra.mxu0 %v2879
  %2892 = vmatpush.bf16.msra.mxu0 %v2878
  %2893 = vmatpush.bf16.msra.mxu0 %v2877
  %2894 = vmatpush.bf16.msra.mxu0 %v2876
  %2895 = vmatmul.bf16.gmra.mxu0 %v2885
  %v2896 = vpop.f32.mrf.mxu0
  %v2897 = vadd.f32 0.0, %v2896
  %v2898 = vpop.f32.mrf.mxu0
  %v2899 = vadd.f32 0.0, %v2898
  %2900 = vdwg.mxu0
  %v2903 = vunpack.c.l.b16 %v2562
  %v2904 = vunpack.c.l.b16 %v2563
  %v2905 = vpack.c.b16 %v2904, %v2903
  %v2914 = vunpack.c.l.b16 %v2624
  %v2915 = vunpack.c.l.b16 %v2625
  %v2916 = vunpack.c.l.b16 %v2626
  %v2917 = vunpack.c.l.b16 %v2627
  %v2918 = vunpack.c.l.b16 %v2628
  %v2919 = vunpack.c.l.b16 %v2629
  %v2920 = vunpack.c.l.b16 %v2630
  %v2921 = vunpack.c.l.b16 %v2631
  %v2922 = vpack.c.b16 %v2915, %v2914
  %v2923 = vpack.c.b16 %v2917, %v2916
  %v2924 = vpack.c.b16 %v2919, %v2918
  %v2925 = vpack.c.b16 %v2921, %v2920
  %v2931 = vsel %vm2837, %v2905, 0
  %2933 = vmatpush.bf16.msra.mxu0 0
  %2934 = vmatpush.bf16.msra.mxu0 0
  %2935 = vmatpush.bf16.msra.mxu0 0
  %2936 = vmatpush.bf16.msra.mxu0 0
  %2937 = vmatpush.bf16.msra.mxu0 %v2925
  %2938 = vmatpush.bf16.msra.mxu0 %v2924
  %2939 = vmatpush.bf16.msra.mxu0 %v2923
  %2940 = vmatpush.bf16.msra.mxu0 %v2922
  %2941 = vmatmul.bf16.gmra.mxu0 %v2931
  %v2942 = vpop.f32.mrf.mxu0
  %v2943 = vadd.f32 0.0, %v2942
  %v2944 = vpop.f32.mrf.mxu0
  %v2945 = vadd.f32 0.0, %v2944
  %2946 = vdwg.mxu0
  %v2949 = vunpack.c.l.b16 %v2564
  %v2950 = vunpack.c.l.b16 %v2565
  %v2951 = vpack.c.b16 %v2950, %v2949
  %v2960 = vunpack.c.l.b16 %v2632
  %v2961 = vunpack.c.l.b16 %v2633
  %v2962 = vunpack.c.l.b16 %v2634
  %v2963 = vunpack.c.l.b16 %v2635
  %v2964 = vunpack.c.l.b16 %v2636
  %v2965 = vunpack.c.l.b16 %v2637
  %v2966 = vunpack.c.l.b16 %v2638
  %v2967 = vunpack.c.l.b16 %v2639
  %v2968 = vpack.c.b16 %v2961, %v2960
  %v2969 = vpack.c.b16 %v2963, %v2962
  %v2970 = vpack.c.b16 %v2965, %v2964
  %v2971 = vpack.c.b16 %v2967, %v2966
  %v2977 = vsel %vm2837, %v2951, 0
  %2979 = vmatpush.bf16.msra.mxu0 0
  %2980 = vmatpush.bf16.msra.mxu0 0
  %2981 = vmatpush.bf16.msra.mxu0 0
  %2982 = vmatpush.bf16.msra.mxu0 0
  %2983 = vmatpush.bf16.msra.mxu0 %v2971
  %2984 = vmatpush.bf16.msra.mxu0 %v2970
  %2985 = vmatpush.bf16.msra.mxu0 %v2969
  %2986 = vmatpush.bf16.msra.mxu0 %v2968
  %2987 = vmatmul.bf16.gmra.mxu0 %v2977
  %v2988 = vpop.f32.mrf.mxu0
  %v2989 = vadd.f32 0.0, %v2988
  %v2990 = vpop.f32.mrf.mxu0
  %v2991 = vadd.f32 0.0, %v2990
  %2992 = vdwg.mxu0
  %v2995 = vunpack.c.l.b16 %v2566
  %v2996 = vunpack.c.l.b16 %v2567
  %v2997 = vpack.c.b16 %v2996, %v2995
  %v3006 = vunpack.c.l.b16 %v2640
  %v3007 = vunpack.c.l.b16 %v2641
  %v3008 = vunpack.c.l.b16 %v2642
  %v3009 = vunpack.c.l.b16 %v2643
  %v3010 = vunpack.c.l.b16 %v2644
  %v3011 = vunpack.c.l.b16 %v2645
  %v3012 = vunpack.c.l.b16 %v2646
  %v3013 = vunpack.c.l.b16 %v2647
  %v3014 = vpack.c.b16 %v3007, %v3006
  %v3015 = vpack.c.b16 %v3009, %v3008
  %v3016 = vpack.c.b16 %v3011, %v3010
  %v3017 = vpack.c.b16 %v3013, %v3012
  %v3023 = vsel %vm2837, %v2997, 0
  %3025 = vmatpush.bf16.msra.mxu0 0
  %3026 = vmatpush.bf16.msra.mxu0 0
  %3027 = vmatpush.bf16.msra.mxu0 0
  %3028 = vmatpush.bf16.msra.mxu0 0
  %3029 = vmatpush.bf16.msra.mxu0 %v3017
  %3030 = vmatpush.bf16.msra.mxu0 %v3016
  %3031 = vmatpush.bf16.msra.mxu0 %v3015
  %3032 = vmatpush.bf16.msra.mxu0 %v3014
  %3033 = vmatmul.bf16.gmra.mxu0 %v3023
  %v3034 = vpop.f32.mrf.mxu0
  %v3035 = vadd.f32 0.0, %v3034
  %v3036 = vpop.f32.mrf.mxu0
  %v3037 = vadd.f32 0.0, %v3036
  %3038 = vdwg.mxu0
  %v3041 = vunpack.c.l.b16 %v2568
  %v3042 = vunpack.c.l.b16 %v2569
  %v3043 = vpack.c.b16 %v3042, %v3041
  %v3052 = vunpack.c.l.b16 %v2648
  %v3053 = vunpack.c.l.b16 %v2649
  %v3054 = vunpack.c.l.b16 %v2650
  %v3055 = vunpack.c.l.b16 %v2651
  %v3056 = vunpack.c.l.b16 %v2652
  %v3057 = vunpack.c.l.b16 %v2653
  %v3058 = vunpack.c.l.b16 %v2654
  %v3059 = vunpack.c.l.b16 %v2655
  %v3060 = vpack.c.b16 %v3053, %v3052
  %v3061 = vpack.c.b16 %v3055, %v3054
  %v3062 = vpack.c.b16 %v3057, %v3056
  %v3063 = vpack.c.b16 %v3059, %v3058
  %v3069 = vsel %vm2837, %v3043, 0
  %3071 = vmatpush.bf16.msra.mxu0 0
  %3072 = vmatpush.bf16.msra.mxu0 0
  %3073 = vmatpush.bf16.msra.mxu0 0
  %3074 = vmatpush.bf16.msra.mxu0 0
  %3075 = vmatpush.bf16.msra.mxu0 %v3063
  %3076 = vmatpush.bf16.msra.mxu0 %v3062
  %3077 = vmatpush.bf16.msra.mxu0 %v3061
  %3078 = vmatpush.bf16.msra.mxu0 %v3060
  %3079 = vmatmul.bf16.gmra.mxu0 %v3069
  %v3080 = vpop.f32.mrf.mxu0
  %v3081 = vadd.f32 0.0, %v3080
  %v3082 = vpop.f32.mrf.mxu0
  %v3083 = vadd.f32 0.0, %v3082
  %3084 = vdwg.mxu0
  %v3087 = vunpack.c.l.b16 %v2570
  %v3088 = vunpack.c.l.b16 %v2571
  %v3089 = vpack.c.b16 %v3088, %v3087
  %v3098 = vunpack.c.l.b16 %v2656
  %v3099 = vunpack.c.l.b16 %v2657
  %v3100 = vunpack.c.l.b16 %v2658
  %v3101 = vunpack.c.l.b16 %v2659
  %v3102 = vunpack.c.l.b16 %v2660
  %v3103 = vunpack.c.l.b16 %v2661
  %v3104 = vunpack.c.l.b16 %v2662
  %v3105 = vunpack.c.l.b16 %v2663
  %v3106 = vpack.c.b16 %v3099, %v3098
  %v3107 = vpack.c.b16 %v3101, %v3100
  %v3108 = vpack.c.b16 %v3103, %v3102
  %v3109 = vpack.c.b16 %v3105, %v3104
  %v3115 = vsel %vm2837, %v3089, 0
  %3117 = vmatpush.bf16.msra.mxu0 0
  %3118 = vmatpush.bf16.msra.mxu0 0
  %3119 = vmatpush.bf16.msra.mxu0 0
  %3120 = vmatpush.bf16.msra.mxu0 0
  %3121 = vmatpush.bf16.msra.mxu0 %v3109
  %3122 = vmatpush.bf16.msra.mxu0 %v3108
  %3123 = vmatpush.bf16.msra.mxu0 %v3107
  %3124 = vmatpush.bf16.msra.mxu0 %v3106
  %3125 = vmatmul.bf16.gmra.mxu0 %v3115
  %v3126 = vpop.f32.mrf.mxu0
  %v3127 = vadd.f32 0.0, %v3126
  %v3128 = vpop.f32.mrf.mxu0
  %v3129 = vadd.f32 0.0, %v3128
  %3130 = vdwg.mxu0
  %v3133 = vunpack.c.l.b16 %v2572
  %v3134 = vunpack.c.l.b16 %v2573
  %v3135 = vpack.c.b16 %v3134, %v3133
  %v3144 = vunpack.c.l.b16 %v2664
  %v3145 = vunpack.c.l.b16 %v2665
  %v3146 = vunpack.c.l.b16 %v2666
  %v3147 = vunpack.c.l.b16 %v2667
  %v3148 = vunpack.c.l.b16 %v2668
  %v3149 = vunpack.c.l.b16 %v2669
  %v3150 = vunpack.c.l.b16 %v2670
  %v3151 = vunpack.c.l.b16 %v2671
  %v3152 = vpack.c.b16 %v3145, %v3144
  %v3153 = vpack.c.b16 %v3147, %v3146
  %v3154 = vpack.c.b16 %v3149, %v3148
  %v3155 = vpack.c.b16 %v3151, %v3150
  %v3161 = vsel %vm2837, %v3135, 0
  %3163 = vmatpush.bf16.msra.mxu0 0
  %3164 = vmatpush.bf16.msra.mxu0 0
  %3165 = vmatpush.bf16.msra.mxu0 0
  %3166 = vmatpush.bf16.msra.mxu0 0
  %3167 = vmatpush.bf16.msra.mxu0 %v3155
  %3168 = vmatpush.bf16.msra.mxu0 %v3154
  %3169 = vmatpush.bf16.msra.mxu0 %v3153
  %3170 = vmatpush.bf16.msra.mxu0 %v3152
  %3171 = vmatmul.bf16.gmra.mxu0 %v3161
  %v3172 = vpop.f32.mrf.mxu0
  %v3173 = vadd.f32 0.0, %v3172
  %v3174 = vpop.f32.mrf.mxu0
  %v3175 = vadd.f32 0.0, %v3174
  %3176 = vdwg.mxu0
  %v3179 = vunpack.c.l.b16 %v2574
  %v3180 = vunpack.c.l.b16 %v2575
  %v3181 = vpack.c.b16 %v3180, %v3179
  %v3190 = vunpack.c.l.b16 %v2672
  %v3191 = vunpack.c.l.b16 %v2673
  %v3192 = vunpack.c.l.b16 %v2674
  %v3193 = vunpack.c.l.b16 %v2675
  %v3194 = vunpack.c.l.b16 %v2676
  %v3195 = vunpack.c.l.b16 %v2677
  %v3196 = vunpack.c.l.b16 %v2678
  %v3197 = vunpack.c.l.b16 %v2679
  %v3198 = vpack.c.b16 %v3191, %v3190
  %v3199 = vpack.c.b16 %v3193, %v3192
  %v3200 = vpack.c.b16 %v3195, %v3194
  %v3201 = vpack.c.b16 %v3197, %v3196
  %v3207 = vsel %vm2837, %v3181, 0
  %3209 = vmatpush.bf16.msra.mxu0 0
  %3210 = vmatpush.bf16.msra.mxu0 0
  %3211 = vmatpush.bf16.msra.mxu0 0
  %3212 = vmatpush.bf16.msra.mxu0 0
  %3213 = vmatpush.bf16.msra.mxu0 %v3201
  %3214 = vmatpush.bf16.msra.mxu0 %v3200
  %3215 = vmatpush.bf16.msra.mxu0 %v3199
  %3216 = vmatpush.bf16.msra.mxu0 %v3198
  %3217 = vmatmul.bf16.gmra.mxu0 %v3207
  %v3218 = vpop.f32.mrf.mxu0
  %v3219 = vadd.f32 0.0, %v3218
  %v3220 = vpop.f32.mrf.mxu0
  %v3221 = vadd.f32 0.0, %v3220
  %3222 = vdwg.mxu0
  %v3225 = vunpack.c.l.b16 %v2576
  %v3226 = vunpack.c.l.b16 %v2577
  %v3227 = vpack.c.b16 %v3226, %v3225
  %v3236 = vunpack.c.l.b16 %v2680
  %v3237 = vunpack.c.l.b16 %v2681
  %v3238 = vunpack.c.l.b16 %v2682
  %v3239 = vunpack.c.l.b16 %v2683
  %v3240 = vunpack.c.l.b16 %v2684
  %v3241 = vunpack.c.l.b16 %v2685
  %v3242 = vunpack.c.l.b16 %v2686
  %v3243 = vunpack.c.l.b16 %v2687
  %v3244 = vpack.c.b16 %v3237, %v3236
  %v3245 = vpack.c.b16 %v3239, %v3238
  %v3246 = vpack.c.b16 %v3241, %v3240
  %v3247 = vpack.c.b16 %v3243, %v3242
  %v3253 = vsel %vm2837, %v3227, 0
  %3255 = vmatpush.bf16.msra.mxu0 0
  %3256 = vmatpush.bf16.msra.mxu0 0
  %3257 = vmatpush.bf16.msra.mxu0 0
  %3258 = vmatpush.bf16.msra.mxu0 0
  %3259 = vmatpush.bf16.msra.mxu0 %v3247
  %3260 = vmatpush.bf16.msra.mxu0 %v3246
  %3261 = vmatpush.bf16.msra.mxu0 %v3245
  %3262 = vmatpush.bf16.msra.mxu0 %v3244
  %3263 = vmatmul.bf16.gmra.mxu0 %v3253
  %v3264 = vpop.f32.mrf.mxu0
  %v3265 = vadd.f32 0.0, %v3264
  %v3266 = vpop.f32.mrf.mxu0
  %v3267 = vadd.f32 0.0, %v3266
  %3268 = vdwg.mxu0
  %v3271 = vunpack.c.l.b16 %v2578
  %v3272 = vunpack.c.l.b16 %v2579
  %v3273 = vpack.c.b16 %v3272, %v3271
  %v3282 = vunpack.c.l.b16 %v2688
  %v3283 = vunpack.c.l.b16 %v2689
  %v3284 = vunpack.c.l.b16 %v2690
  %v3285 = vunpack.c.l.b16 %v2691
  %v3286 = vunpack.c.l.b16 %v2692
  %v3287 = vunpack.c.l.b16 %v2693
  %v3288 = vunpack.c.l.b16 %v2694
  %v3289 = vunpack.c.l.b16 %v2695
  %v3290 = vpack.c.b16 %v3283, %v3282
  %v3291 = vpack.c.b16 %v3285, %v3284
  %v3292 = vpack.c.b16 %v3287, %v3286
  %v3293 = vpack.c.b16 %v3289, %v3288
  %v3299 = vsel %vm2837, %v3273, 0
  %3301 = vmatpush.bf16.msra.mxu0 0
  %3302 = vmatpush.bf16.msra.mxu0 0
  %3303 = vmatpush.bf16.msra.mxu0 0
  %3304 = vmatpush.bf16.msra.mxu0 0
  %3305 = vmatpush.bf16.msra.mxu0 %v3293
  %3306 = vmatpush.bf16.msra.mxu0 %v3292
  %3307 = vmatpush.bf16.msra.mxu0 %v3291
  %3308 = vmatpush.bf16.msra.mxu0 %v3290
  %3309 = vmatmul.bf16.gmra.mxu0 %v3299
  %v3310 = vpop.f32.mrf.mxu0
  %v3311 = vadd.f32 0.0, %v3310
  %v3312 = vpop.f32.mrf.mxu0
  %v3313 = vadd.f32 0.0, %v3312
  %3314 = vdwg.mxu0
  %v3317 = vunpack.c.l.b16 %v2580
  %v3318 = vunpack.c.l.b16 %v2581
  %v3319 = vpack.c.b16 %v3318, %v3317
  %v3328 = vunpack.c.l.b16 %v2696
  %v3329 = vunpack.c.l.b16 %v2697
  %v3330 = vunpack.c.l.b16 %v2698
  %v3331 = vunpack.c.l.b16 %v2699
  %v3332 = vunpack.c.l.b16 %v2700
  %v3333 = vunpack.c.l.b16 %v2701
  %v3334 = vunpack.c.l.b16 %v2702
  %v3335 = vunpack.c.l.b16 %v2703
  %v3336 = vpack.c.b16 %v3329, %v3328
  %v3337 = vpack.c.b16 %v3331, %v3330
  %v3338 = vpack.c.b16 %v3333, %v3332
  %v3339 = vpack.c.b16 %v3335, %v3334
  %v3345 = vsel %vm2837, %v3319, 0
  %3347 = vmatpush.bf16.msra.mxu0 0
  %3348 = vmatpush.bf16.msra.mxu0 0
  %3349 = vmatpush.bf16.msra.mxu0 0
  %3350 = vmatpush.bf16.msra.mxu0 0
  %3351 = vmatpush.bf16.msra.mxu0 %v3339
  %3352 = vmatpush.bf16.msra.mxu0 %v3338
  %3353 = vmatpush.bf16.msra.mxu0 %v3337
  %3354 = vmatpush.bf16.msra.mxu0 %v3336
  %3355 = vmatmul.bf16.gmra.mxu0 %v3345
  %v3356 = vpop.f32.mrf.mxu0
  %v3357 = vadd.f32 0.0, %v3356
  %v3358 = vpop.f32.mrf.mxu0
  %v3359 = vadd.f32 0.0, %v3358
  %3360 = vdwg.mxu0
  %v3363 = vunpack.c.l.b16 %v2582
  %v3364 = vunpack.c.l.b16 %v2583
  %v3365 = vpack.c.b16 %v3364, %v3363
  %v3374 = vunpack.c.l.b16 %v2704
  %v3375 = vunpack.c.l.b16 %v2705
  %v3376 = vunpack.c.l.b16 %v2706
  %v3377 = vunpack.c.l.b16 %v2707
  %v3378 = vunpack.c.l.b16 %v2708
  %v3379 = vunpack.c.l.b16 %v2709
  %v3380 = vunpack.c.l.b16 %v2710
  %v3381 = vunpack.c.l.b16 %v2711
  %v3382 = vpack.c.b16 %v3375, %v3374
  %v3383 = vpack.c.b16 %v3377, %v3376
  %v3384 = vpack.c.b16 %v3379, %v3378
  %v3385 = vpack.c.b16 %v3381, %v3380
  %v3391 = vsel %vm2837, %v3365, 0
  %3393 = vmatpush.bf16.msra.mxu0 0
  %3394 = vmatpush.bf16.msra.mxu0 0
  %3395 = vmatpush.bf16.msra.mxu0 0
  %3396 = vmatpush.bf16.msra.mxu0 0
  %3397 = vmatpush.bf16.msra.mxu0 %v3385
  %3398 = vmatpush.bf16.msra.mxu0 %v3384
  %3399 = vmatpush.bf16.msra.mxu0 %v3383
  %3400 = vmatpush.bf16.msra.mxu0 %v3382
  %3401 = vmatmul.bf16.gmra.mxu0 %v3391
  %v3402 = vpop.f32.mrf.mxu0
  %v3403 = vadd.f32 0.0, %v3402
  %v3404 = vpop.f32.mrf.mxu0
  %v3405 = vadd.f32 0.0, %v3404
  %3406 = vdwg.mxu0
  %v3409 = vunpack.c.l.b16 %v2584
  %v3410 = vunpack.c.l.b16 %v2585
  %v3411 = vpack.c.b16 %v3410, %v3409
  %v3420 = vunpack.c.l.b16 %v2712
  %v3421 = vunpack.c.l.b16 %v2713
  %v3422 = vunpack.c.l.b16 %v2714
  %v3423 = vunpack.c.l.b16 %v2715
  %v3424 = vunpack.c.l.b16 %v2716
  %v3425 = vunpack.c.l.b16 %v2717
  %v3426 = vunpack.c.l.b16 %v2718
  %v3427 = vunpack.c.l.b16 %v2719
  %v3428 = vpack.c.b16 %v3421, %v3420
  %v3429 = vpack.c.b16 %v3423, %v3422
  %v3430 = vpack.c.b16 %v3425, %v3424
  %v3431 = vpack.c.b16 %v3427, %v3426
  %v3437 = vsel %vm2837, %v3411, 0
  %3439 = vmatpush.bf16.msra.mxu0 0
  %3440 = vmatpush.bf16.msra.mxu0 0
  %3441 = vmatpush.bf16.msra.mxu0 0
  %3442 = vmatpush.bf16.msra.mxu0 0
  %3443 = vmatpush.bf16.msra.mxu0 %v3431
  %3444 = vmatpush.bf16.msra.mxu0 %v3430
  %3445 = vmatpush.bf16.msra.mxu0 %v3429
  %3446 = vmatpush.bf16.msra.mxu0 %v3428
  %3447 = vmatmul.bf16.gmra.mxu0 %v3437
  %v3448 = vpop.f32.mrf.mxu0
  %v3449 = vadd.f32 0.0, %v3448
  %v3450 = vpop.f32.mrf.mxu0
  %v3451 = vadd.f32 0.0, %v3450
  %3452 = vdwg.mxu0
  %v3455 = vunpack.c.l.b16 %v2586
  %v3456 = vunpack.c.l.b16 %v2587
  %v3457 = vpack.c.b16 %v3456, %v3455
  %v3466 = vunpack.c.l.b16 %v2720
  %v3467 = vunpack.c.l.b16 %v2721
  %v3468 = vunpack.c.l.b16 %v2722
  %v3469 = vunpack.c.l.b16 %v2723
  %v3470 = vunpack.c.l.b16 %v2724
  %v3471 = vunpack.c.l.b16 %v2725
  %v3472 = vunpack.c.l.b16 %v2726
  %v3473 = vunpack.c.l.b16 %v2727
  %v3474 = vpack.c.b16 %v3467, %v3466
  %v3475 = vpack.c.b16 %v3469, %v3468
  %v3476 = vpack.c.b16 %v3471, %v3470
  %v3477 = vpack.c.b16 %v3473, %v3472
  %v3483 = vsel %vm2837, %v3457, 0
  %3485 = vmatpush.bf16.msra.mxu0 0
  %3486 = vmatpush.bf16.msra.mxu0 0
  %3487 = vmatpush.bf16.msra.mxu0 0
  %3488 = vmatpush.bf16.msra.mxu0 0
  %3489 = vmatpush.bf16.msra.mxu0 %v3477
  %3490 = vmatpush.bf16.msra.mxu0 %v3476
  %3491 = vmatpush.bf16.msra.mxu0 %v3475
  %3492 = vmatpush.bf16.msra.mxu0 %v3474
  %3493 = vmatmul.bf16.gmra.mxu0 %v3483
  %v3494 = vpop.f32.mrf.mxu0
  %v3495 = vadd.f32 0.0, %v3494
  %v3496 = vpop.f32.mrf.mxu0
  %v3497 = vadd.f32 0.0, %v3496
  %3498 = vdwg.mxu0
  %v3501 = vunpack.c.l.b16 %v2588
  %v3502 = vunpack.c.l.b16 %v2589
  %v3503 = vpack.c.b16 %v3502, %v3501
  %v3512 = vunpack.c.l.b16 %v2728
  %v3513 = vunpack.c.l.b16 %v2729
  %v3514 = vunpack.c.l.b16 %v2730
  %v3515 = vunpack.c.l.b16 %v2731
  %v3516 = vunpack.c.l.b16 %v2732
  %v3517 = vunpack.c.l.b16 %v2733
  %v3518 = vunpack.c.l.b16 %v2734
  %v3519 = vunpack.c.l.b16 %v2735
  %v3520 = vpack.c.b16 %v3513, %v3512
  %v3521 = vpack.c.b16 %v3515, %v3514
  %v3522 = vpack.c.b16 %v3517, %v3516
  %v3523 = vpack.c.b16 %v3519, %v3518
  %v3529 = vsel %vm2837, %v3503, 0
  %3531 = vmatpush.bf16.msra.mxu0 0
  %3532 = vmatpush.bf16.msra.mxu0 0
  %3533 = vmatpush.bf16.msra.mxu0 0
  %3534 = vmatpush.bf16.msra.mxu0 0
  %3535 = vmatpush.bf16.msra.mxu0 %v3523
  %3536 = vmatpush.bf16.msra.mxu0 %v3522
  %3537 = vmatpush.bf16.msra.mxu0 %v3521
  %3538 = vmatpush.bf16.msra.mxu0 %v3520
  %3539 = vmatmul.bf16.gmra.mxu0 %v3529
  %v3540 = vpop.f32.mrf.mxu0
  %v3541 = vadd.f32 0.0, %v3540
  %v3542 = vpop.f32.mrf.mxu0
  %v3543 = vadd.f32 0.0, %v3542
  %3544 = vdwg.mxu0
  %v3547 = vunpack.c.l.b16 %v2590
  %v3548 = vunpack.c.l.b16 %v2591
  %v3549 = vpack.c.b16 %v3548, %v3547
  %v3558 = vunpack.c.l.b16 %v2736
  %v3559 = vunpack.c.l.b16 %v2737
  %v3560 = vunpack.c.l.b16 %v2738
  %v3561 = vunpack.c.l.b16 %v2739
  %v3562 = vunpack.c.l.b16 %v2740
  %v3563 = vunpack.c.l.b16 %v2741
  %v3564 = vunpack.c.l.b16 %v2742
  %v3565 = vunpack.c.l.b16 %v2743
  %v3566 = vpack.c.b16 %v3559, %v3558
  %v3567 = vpack.c.b16 %v3561, %v3560
  %v3568 = vpack.c.b16 %v3563, %v3562
  %v3569 = vpack.c.b16 %v3565, %v3564
  %v3575 = vsel %vm2837, %v3549, 0
  %3577 = vmatpush.bf16.msra.mxu0 0
  %3578 = vmatpush.bf16.msra.mxu0 0
  %3579 = vmatpush.bf16.msra.mxu0 0
  %3580 = vmatpush.bf16.msra.mxu0 0
  %3581 = vmatpush.bf16.msra.mxu0 %v3569
  %3582 = vmatpush.bf16.msra.mxu0 %v3568
  %3583 = vmatpush.bf16.msra.mxu0 %v3567
  %3584 = vmatpush.bf16.msra.mxu0 %v3566
  %3585 = vmatmul.bf16.gmra.mxu0 %v3575
  %v3586 = vpop.f32.mrf.mxu0
  %v3587 = vadd.f32 0.0, %v3586
  %v3588 = vpop.f32.mrf.mxu0
  %v3589 = vadd.f32 0.0, %v3588
  %3590 = vdwg.mxu0
  %v3593 = vunpack.c.l.b16 %v2592
  %v3594 = vunpack.c.l.b16 %v2593
  %v3595 = vpack.c.b16 %v3594, %v3593
  %v3604 = vunpack.c.l.b16 %v2744
  %v3605 = vunpack.c.l.b16 %v2745
  %v3606 = vunpack.c.l.b16 %v2746
  %v3607 = vunpack.c.l.b16 %v2747
  %v3608 = vunpack.c.l.b16 %v2748
  %v3609 = vunpack.c.l.b16 %v2749
  %v3610 = vunpack.c.l.b16 %v2750
  %v3611 = vunpack.c.l.b16 %v2751
  %v3612 = vpack.c.b16 %v3605, %v3604
  %v3613 = vpack.c.b16 %v3607, %v3606
  %v3614 = vpack.c.b16 %v3609, %v3608
  %v3615 = vpack.c.b16 %v3611, %v3610
  %v3621 = vsel %vm2837, %v3595, 0
  %3623 = vmatpush.bf16.msra.mxu0 0
  %3624 = vmatpush.bf16.msra.mxu0 0
  %3625 = vmatpush.bf16.msra.mxu0 0
  %3626 = vmatpush.bf16.msra.mxu0 0
  %3627 = vmatpush.bf16.msra.mxu0 %v3615
  %3628 = vmatpush.bf16.msra.mxu0 %v3614
  %3629 = vmatpush.bf16.msra.mxu0 %v3613
  %3630 = vmatpush.bf16.msra.mxu0 %v3612
  %3631 = vmatmul.bf16.gmra.mxu0 %v3621
  %v3632 = vpop.f32.mrf.mxu0
  %v3633 = vadd.f32 0.0, %v3632
  %v3634 = vpop.f32.mrf.mxu0
  %v3635 = vadd.f32 0.0, %v3634
  %3636 = vdwg.mxu0
  %v3639 = vunpack.c.l.b16 %v2594
  %v3640 = vunpack.c.l.b16 %v2595
  %v3641 = vpack.c.b16 %v3640, %v3639
  %v3650 = vunpack.c.l.b16 %v2752
  %v3651 = vunpack.c.l.b16 %v2753
  %v3652 = vunpack.c.l.b16 %v2754
  %v3653 = vunpack.c.l.b16 %v2755
  %v3654 = vunpack.c.l.b16 %v2756
  %v3655 = vunpack.c.l.b16 %v2757
  %v3656 = vunpack.c.l.b16 %v2758
  %v3657 = vunpack.c.l.b16 %v2759
  %v3658 = vpack.c.b16 %v3651, %v3650
  %v3659 = vpack.c.b16 %v3653, %v3652
  %v3660 = vpack.c.b16 %v3655, %v3654
  %v3661 = vpack.c.b16 %v3657, %v3656
  %v3667 = vsel %vm2837, %v3641, 0
  %3669 = vmatpush.bf16.msra.mxu0 0
  %3670 = vmatpush.bf16.msra.mxu0 0
  %3671 = vmatpush.bf16.msra.mxu0 0
  %3672 = vmatpush.bf16.msra.mxu0 0
  %3673 = vmatpush.bf16.msra.mxu0 %v3661
  %3674 = vmatpush.bf16.msra.mxu0 %v3660
  %3675 = vmatpush.bf16.msra.mxu0 %v3659
  %3676 = vmatpush.bf16.msra.mxu0 %v3658
  %3677 = vmatmul.bf16.gmra.mxu0 %v3667
  %v3678 = vpop.f32.mrf.mxu0
  %v3679 = vadd.f32 0.0, %v3678
  %v3680 = vpop.f32.mrf.mxu0
  %v3681 = vadd.f32 0.0, %v3680
  %3682 = vdwg.mxu0
  %v3685 = vunpack.c.l.b16 %v2596
  %v3686 = vunpack.c.l.b16 %v2597
  %v3687 = vpack.c.b16 %v3686, %v3685
  %v3696 = vunpack.c.l.b16 %v2760
  %v3697 = vunpack.c.l.b16 %v2761
  %v3698 = vunpack.c.l.b16 %v2762
  %v3699 = vunpack.c.l.b16 %v2763
  %v3700 = vunpack.c.l.b16 %v2764
  %v3701 = vunpack.c.l.b16 %v2765
  %v3702 = vunpack.c.l.b16 %v2766
  %v3703 = vunpack.c.l.b16 %v2767
  %v3704 = vpack.c.b16 %v3697, %v3696
  %v3705 = vpack.c.b16 %v3699, %v3698
  %v3706 = vpack.c.b16 %v3701, %v3700
  %v3707 = vpack.c.b16 %v3703, %v3702
  %v3713 = vsel %vm2837, %v3687, 0
  %3715 = vmatpush.bf16.msra.mxu0 0
  %3716 = vmatpush.bf16.msra.mxu0 0
  %3717 = vmatpush.bf16.msra.mxu0 0
  %3718 = vmatpush.bf16.msra.mxu0 0
  %3719 = vmatpush.bf16.msra.mxu0 %v3707
  %3720 = vmatpush.bf16.msra.mxu0 %v3706
  %3721 = vmatpush.bf16.msra.mxu0 %v3705
  %3722 = vmatpush.bf16.msra.mxu0 %v3704
  %3723 = vmatmul.bf16.gmra.mxu0 %v3713
  %v3724 = vpop.f32.mrf.mxu0
  %v3725 = vadd.f32 0.0, %v3724
  %v3726 = vpop.f32.mrf.mxu0
  %v3727 = vadd.f32 0.0, %v3726
  %3728 = vdwg.mxu0
  %v3731 = vunpack.c.l.b16 %v2598
  %v3732 = vunpack.c.l.b16 %v2599
  %v3733 = vpack.c.b16 %v3732, %v3731
  %v3742 = vunpack.c.l.b16 %v2768
  %v3743 = vunpack.c.l.b16 %v2769
  %v3744 = vunpack.c.l.b16 %v2770
  %v3745 = vunpack.c.l.b16 %v2771
  %v3746 = vunpack.c.l.b16 %v2772
  %v3747 = vunpack.c.l.b16 %v2773
  %v3748 = vunpack.c.l.b16 %v2774
  %v3749 = vunpack.c.l.b16 %v2775
  %v3750 = vpack.c.b16 %v3743, %v3742
  %v3751 = vpack.c.b16 %v3745, %v3744
  %v3752 = vpack.c.b16 %v3747, %v3746
  %v3753 = vpack.c.b16 %v3749, %v3748
  %v3759 = vsel %vm2837, %v3733, 0
  %3761 = vmatpush.bf16.msra.mxu0 0
  %3762 = vmatpush.bf16.msra.mxu0 0
  %3763 = vmatpush.bf16.msra.mxu0 0
  %3764 = vmatpush.bf16.msra.mxu0 0
  %3765 = vmatpush.bf16.msra.mxu0 %v3753
  %3766 = vmatpush.bf16.msra.mxu0 %v3752
  %3767 = vmatpush.bf16.msra.mxu0 %v3751
  %3768 = vmatpush.bf16.msra.mxu0 %v3750
  %3769 = vmatmul.bf16.gmra.mxu0 %v3759
  %v3770 = vpop.f32.mrf.mxu0
  %v3771 = vadd.f32 0.0, %v3770
  %v3772 = vpop.f32.mrf.mxu0
  %v3773 = vadd.f32 0.0, %v3772
  %3774 = vdwg.mxu0
  %v3777 = vunpack.c.l.b16 %v2600
  %v3778 = vunpack.c.l.b16 %v2601
  %v3779 = vpack.c.b16 %v3778, %v3777
  %v3788 = vunpack.c.l.b16 %v2776
  %v3789 = vunpack.c.l.b16 %v2777
  %v3790 = vunpack.c.l.b16 %v2778
  %v3791 = vunpack.c.l.b16 %v2779
  %v3792 = vunpack.c.l.b16 %v2780
  %v3793 = vunpack.c.l.b16 %v2781
  %v3794 = vunpack.c.l.b16 %v2782
  %v3795 = vunpack.c.l.b16 %v2783
  %v3796 = vpack.c.b16 %v3789, %v3788
  %v3797 = vpack.c.b16 %v3791, %v3790
  %v3798 = vpack.c.b16 %v3793, %v3792
  %v3799 = vpack.c.b16 %v3795, %v3794
  %v3805 = vsel %vm2837, %v3779, 0
  %3807 = vmatpush.bf16.msra.mxu0 0
  %3808 = vmatpush.bf16.msra.mxu0 0
  %3809 = vmatpush.bf16.msra.mxu0 0
  %3810 = vmatpush.bf16.msra.mxu0 0
  %3811 = vmatpush.bf16.msra.mxu0 %v3799
  %3812 = vmatpush.bf16.msra.mxu0 %v3798
  %3813 = vmatpush.bf16.msra.mxu0 %v3797
  %3814 = vmatpush.bf16.msra.mxu0 %v3796
  %3815 = vmatmul.bf16.gmra.mxu0 %v3805
  %v3816 = vpop.f32.mrf.mxu0
  %v3817 = vadd.f32 0.0, %v3816
  %v3818 = vpop.f32.mrf.mxu0
  %v3819 = vadd.f32 0.0, %v3818
  %3820 = vdwg.mxu0
  %v3823 = vunpack.c.l.b16 %v2602
  %v3824 = vunpack.c.l.b16 %v2603
  %v3825 = vpack.c.b16 %v3824, %v3823
  %v3834 = vunpack.c.l.b16 %v2784
  %v3835 = vunpack.c.l.b16 %v2785
  %v3836 = vunpack.c.l.b16 %v2786
  %v3837 = vunpack.c.l.b16 %v2787
  %v3838 = vunpack.c.l.b16 %v2788
  %v3839 = vunpack.c.l.b16 %v2789
  %v3840 = vunpack.c.l.b16 %v2790
  %v3841 = vunpack.c.l.b16 %v2791
  %v3842 = vpack.c.b16 %v3835, %v3834
  %v3843 = vpack.c.b16 %v3837, %v3836
  %v3844 = vpack.c.b16 %v3839, %v3838
  %v3845 = vpack.c.b16 %v3841, %v3840
  %v3851 = vsel %vm2837, %v3825, 0
  %3853 = vmatpush.bf16.msra.mxu0 0
  %3854 = vmatpush.bf16.msra.mxu0 0
  %3855 = vmatpush.bf16.msra.mxu0 0
  %3856 = vmatpush.bf16.msra.mxu0 0
  %3857 = vmatpush.bf16.msra.mxu0 %v3845
  %3858 = vmatpush.bf16.msra.mxu0 %v3844
  %3859 = vmatpush.bf16.msra.mxu0 %v3843
  %3860 = vmatpush.bf16.msra.mxu0 %v3842
  %3861 = vmatmul.bf16.gmra.mxu0 %v3851
  %v3862 = vpop.f32.mrf.mxu0
  %v3863 = vadd.f32 0.0, %v3862
  %v3864 = vpop.f32.mrf.mxu0
  %v3865 = vadd.f32 0.0, %v3864
  %3866 = vdwg.mxu0
  %v3869 = vunpack.c.l.b16 %v2604
  %v3870 = vunpack.c.l.b16 %v2605
  %v3871 = vpack.c.b16 %v3870, %v3869
  %v3880 = vunpack.c.l.b16 %v2792
  %v3881 = vunpack.c.l.b16 %v2793
  %v3882 = vunpack.c.l.b16 %v2794
  %v3883 = vunpack.c.l.b16 %v2795
  %v3884 = vunpack.c.l.b16 %v2796
  %v3885 = vunpack.c.l.b16 %v2797
  %v3886 = vunpack.c.l.b16 %v2798
  %v3887 = vunpack.c.l.b16 %v2799
  %v3888 = vpack.c.b16 %v3881, %v3880
  %v3889 = vpack.c.b16 %v3883, %v3882
  %v3890 = vpack.c.b16 %v3885, %v3884
  %v3891 = vpack.c.b16 %v3887, %v3886
  %v3897 = vsel %vm2837, %v3871, 0
  %3899 = vmatpush.bf16.msra.mxu0 0
  %3900 = vmatpush.bf16.msra.mxu0 0
  %3901 = vmatpush.bf16.msra.mxu0 0
  %3902 = vmatpush.bf16.msra.mxu0 0
  %3903 = vmatpush.bf16.msra.mxu0 %v3891
  %3904 = vmatpush.bf16.msra.mxu0 %v3890
  %3905 = vmatpush.bf16.msra.mxu0 %v3889
  %3906 = vmatpush.bf16.msra.mxu0 %v3888
  %3907 = vmatmul.bf16.gmra.mxu0 %v3897
  %v3908 = vpop.f32.mrf.mxu0
  %v3909 = vadd.f32 0.0, %v3908
  %v3910 = vpop.f32.mrf.mxu0
  %v3911 = vadd.f32 0.0, %v3910
  %3912 = vdwg.mxu0
  %v3915 = vunpack.c.l.b16 %v2606
  %v3916 = vunpack.c.l.b16 %v2607
  %v3917 = vpack.c.b16 %v3916, %v3915
  %v3926 = vunpack.c.l.b16 %v2800
  %v3927 = vunpack.c.l.b16 %v2801
  %v3928 = vunpack.c.l.b16 %v2802
  %v3929 = vunpack.c.l.b16 %v2803
  %v3930 = vunpack.c.l.b16 %v2804
  %v3931 = vunpack.c.l.b16 %v2805
  %v3932 = vunpack.c.l.b16 %v2806
  %v3933 = vunpack.c.l.b16 %v2807
  %v3934 = vpack.c.b16 %v3927, %v3926
  %v3935 = vpack.c.b16 %v3929, %v3928
  %v3936 = vpack.c.b16 %v3931, %v3930
  %v3937 = vpack.c.b16 %v3933, %v3932
  %v3943 = vsel %vm2837, %v3917, 0
  %3945 = vmatpush.bf16.msra.mxu0 0
  %3946 = vmatpush.bf16.msra.mxu0 0
  %3947 = vmatpush.bf16.msra.mxu0 0
  %3948 = vmatpush.bf16.msra.mxu0 0
  %3949 = vmatpush.bf16.msra.mxu0 %v3937
  %3950 = vmatpush.bf16.msra.mxu0 %v3936
  %3951 = vmatpush.bf16.msra.mxu0 %v3935
  %3952 = vmatpush.bf16.msra.mxu0 %v3934
  %3953 = vmatmul.bf16.gmra.mxu0 %v3943
  %v3954 = vpop.f32.mrf.mxu0
  %v3955 = vadd.f32 0.0, %v3954
  %v3956 = vpop.f32.mrf.mxu0
  %v3957 = vadd.f32 0.0, %v3956
  %3958 = vdwg.mxu0
  %vm3959 = vcmask 72704
  %v3960 = vsel %vm3959, %v2851, 0.0
  %v3961 = vsel %vm3959, %v2897, 0.0
  %v3962 = vadd.f32 %v3960, %v3961
  %v3963 = vsel %vm3959, %v2943, 0.0
  %v3964 = vadd.f32 %v3962, %v3963
  %v3965 = vsel %vm3959, %v2989, 0.0
  %v3966 = vadd.f32 %v3964, %v3965
  %v3967 = vsel %vm3959, %v3035, 0.0
  %v3968 = vadd.f32 %v3966, %v3967
  %v3969 = vsel %vm3959, %v3081, 0.0
  %v3970 = vadd.f32 %v3968, %v3969
  %v3971 = vsel %vm3959, %v3127, 0.0
  %v3972 = vadd.f32 %v3970, %v3971
  %v3973 = vsel %vm3959, %v3173, 0.0
  %v3974 = vadd.f32 %v3972, %v3973
  %v3975 = vsel %vm3959, %v3219, 0.0
  %v3976 = vadd.f32 %v3974, %v3975
  %v3977 = vsel %vm3959, %v3265, 0.0
  %v3978 = vadd.f32 %v3976, %v3977
  %v3979 = vsel %vm3959, %v3311, 0.0
  %v3980 = vadd.f32 %v3978, %v3979
  %v3981 = vsel %vm3959, %v3357, 0.0
  %v3982 = vadd.f32 %v3980, %v3981
  %v3983 = vsel %vm3959, %v3403, 0.0
  %v3984 = vadd.f32 %v3982, %v3983
  %v3985 = vsel %vm3959, %v3449, 0.0
  %v3986 = vadd.f32 %v3984, %v3985
  %v3987 = vsel %vm3959, %v3495, 0.0
  %v3988 = vadd.f32 %v3986, %v3987
  %v3989 = vsel %vm3959, %v3541, 0.0
  %v3990 = vadd.f32 %v3988, %v3989
  %v3991 = vsel %vm3959, %v3587, 0.0
  %v3992 = vadd.f32 %v3990, %v3991
  %v3993 = vsel %vm3959, %v3633, 0.0
  %v3994 = vadd.f32 %v3992, %v3993
  %v3995 = vsel %vm3959, %v3679, 0.0
  %v3996 = vadd.f32 %v3994, %v3995
  %v3997 = vsel %vm3959, %v3725, 0.0
  %v3998 = vadd.f32 %v3996, %v3997
  %v3999 = vsel %vm3959, %v3771, 0.0
  %v4000 = vadd.f32 %v3998, %v3999
  %v4001 = vsel %vm3959, %v3817, 0.0
  %v4002 = vadd.f32 %v4000, %v4001
  %v4003 = vsel %vm3959, %v3863, 0.0
  %v4004 = vadd.f32 %v4002, %v4003
  %v4005 = vsel %vm3959, %v3909, 0.0
  %v4006 = vadd.f32 %v4004, %v4005
  %v4007 = vsel %vm3959, %v3955, 0.0
  %v4008 = vadd.f32 %v4006, %v4007
  %v4009 = vsel %vm3959, %v2853, 0.0
  %v4010 = vsel %vm3959, %v2899, 0.0
  %v4011 = vadd.f32 %v4009, %v4010
  %v4012 = vsel %vm3959, %v2945, 0.0
  %v4013 = vadd.f32 %v4011, %v4012
  %v4014 = vsel %vm3959, %v2991, 0.0
  %v4015 = vadd.f32 %v4013, %v4014
  %v4016 = vsel %vm3959, %v3037, 0.0
  %v4017 = vadd.f32 %v4015, %v4016
  %v4018 = vsel %vm3959, %v3083, 0.0
  %v4019 = vadd.f32 %v4017, %v4018
  %v4020 = vsel %vm3959, %v3129, 0.0
  %v4021 = vadd.f32 %v4019, %v4020
  %v4022 = vsel %vm3959, %v3175, 0.0
  %v4023 = vadd.f32 %v4021, %v4022
  %v4024 = vsel %vm3959, %v3221, 0.0
  %v4025 = vadd.f32 %v4023, %v4024
  %v4026 = vsel %vm3959, %v3267, 0.0
  %v4027 = vadd.f32 %v4025, %v4026
  %v4028 = vsel %vm3959, %v3313, 0.0
  %v4029 = vadd.f32 %v4027, %v4028
  %v4030 = vsel %vm3959, %v3359, 0.0
  %v4031 = vadd.f32 %v4029, %v4030
  %v4032 = vsel %vm3959, %v3405, 0.0
  %v4033 = vadd.f32 %v4031, %v4032
  %v4034 = vsel %vm3959, %v3451, 0.0
  %v4035 = vadd.f32 %v4033, %v4034
  %v4036 = vsel %vm3959, %v3497, 0.0
  %v4037 = vadd.f32 %v4035, %v4036
  %v4038 = vsel %vm3959, %v3543, 0.0
  %v4039 = vadd.f32 %v4037, %v4038
  %v4040 = vsel %vm3959, %v3589, 0.0
  %v4041 = vadd.f32 %v4039, %v4040
  %v4042 = vsel %vm3959, %v3635, 0.0
  %v4043 = vadd.f32 %v4041, %v4042
  %v4044 = vsel %vm3959, %v3681, 0.0
  %v4045 = vadd.f32 %v4043, %v4044
  %v4046 = vsel %vm3959, %v3727, 0.0
  %v4047 = vadd.f32 %v4045, %v4046
  %v4048 = vsel %vm3959, %v3773, 0.0
  %v4049 = vadd.f32 %v4047, %v4048
  %v4050 = vsel %vm3959, %v3819, 0.0
  %v4051 = vadd.f32 %v4049, %v4050
  %v4052 = vsel %vm3959, %v3865, 0.0
  %v4053 = vadd.f32 %v4051, %v4052
  %v4054 = vsel %vm3959, %v3911, 0.0
  %v4055 = vadd.f32 %v4053, %v4054
  %v4056 = vsel %vm3959, %v3957, 0.0
  %v4057 = vadd.f32 %v4055, %v4056
  %v4058 = vld [vmem:[%s6] sm:$0x1]
  %v4060 = vperm.slane %v4058, 0
  %v4062 = vadd.f32 %v4008, %v4060
  %v4063 = vadd.f32 %v4057, %v4060
  %4064 = vst.msk [vmem:[%s7] sm:$0xff] %vm3959, %v4062
  %4065 = vst.msk [vmem:[%s7 + $0x8] sm:$0xff] %vm3959, %v4063
  // Predicated region
  $region30: #{matching_feat_regression.1} parent=0 // pred_check
    _
  $region31: #{matching_feat_regression.1} parent=0 // pred_check_branch
    %4067 = sbr.rel (0) target = $region33
  $region32: #{matching_feat_regression.1} parent=0 // pred_region
    _
  $region33: #{matching_feat_regression.1} parent=0 // pred_fallthru
    _
  // Predicated region
  $region34: #{matching_feat_regression.1} parent=0 // pred_check
    _
  $region35: #{matching_feat_regression.1} parent=0 // pred_check_branch
    %4069 = sbr.rel (0) target = $region37
  $region36: #{matching_feat_regression.1} parent=0 // pred_region
    _
  $region37: #{matching_feat_regression.1} parent=0 // pred_fallthru
    _

</llo_original>
